<compile_context>
chip_gen: v7x
topology: tpu7x:2x2x1
jax: 0.10.0
libtpu: 0.0.40
codegen_flags: <defaults>
</compile_context>

<pallas_src>
import jax
import jax.numpy as jnp
from jax.experimental import pallas as pl
from jax.experimental.pallas import tpu as pltpu


# ------------------------------ fused kernel --------------------------------

def _make_fused_kernel(gnn_layers, tb, npad):
    """One grid step processes TB states packed along the lane axis."""

    def kernel(a_f_ref, a_b_ref, pool_ref, x_ref, mask_ref,
               w_gcn_ref, b_gcn_ref, w_heads_ref, small_ref, out_ref):
        f32 = jnp.float32
        bf16 = jnp.bfloat16

        a_f = a_f_ref[...]                    # [NP, NP]      bf16, row-normalised fwd adj
        a_b = a_b_ref[...]                    # [NP, NP]      bf16, row-normalised bwd adj
        pool = pool_ref[...]                  # [NP, 1]       f32, 1/n on real rows else 0
        x = x_ref[0]                          # [NP, TB*Dp]   bf16, TB states lane-packed
        mask = mask_ref[0]                    # [TB, NP]      f32, candidate masks
        b_gcn = b_gcn_ref[...]                # [2L, TB*Dp]   f32, tiled GCN biases

        # ---- bidirectional GCN encoder: TB states per matmul (block-diag W) ----
        hf = x
        hb = x
        for l in range(gnn_layers):
            wf = w_gcn_ref[2 * l]             # [TB*Dp, TB*Dp] bf16, block-diagonal
            wb = w_gcn_ref[2 * l + 1]
            bf_row = b_gcn[2 * l:2 * l + 1, :]
            bb_row = b_gcn[2 * l + 1:2 * l + 2, :]
            tf = jnp.dot(hf, wf, preferred_element_type=f32).astype(bf16)
            tb_ = jnp.dot(hb, wb, preferred_element_type=f32).astype(bf16)
            hf = jnp.maximum(jnp.dot(a_f, tf, preferred_element_type=f32) + bf_row,
                             0.0).astype(bf16)
            hb = jnp.maximum(jnp.dot(a_b, tb_, preferred_element_type=f32) + bb_row,
                             0.0).astype(bf16)

        # ---- graph mean pooling (1/n pre-folded into pool, hoisted to host) ----
        hfb = jnp.concatenate([hf, hb], axis=-1)                       # [NP, 2*TB*Dp]
        gfb = jnp.sum(hfb.astype(f32) * pool, axis=0, keepdims=True)   # [1,  2*TB*Dp]
        gfb_b = gfb.astype(bf16)

        w_act_n = w_heads_ref[0]              # [2*TB*Dp, TB*H] bf16 (node part of wa1)
        w_act_p = w_heads_ref[1]              # [2*TB*Dp, TB*H] bf16 (pooled part of wa1)
        w_crit = w_heads_ref[2]               # [2*TB*Dp, TB*H] bf16 (folded wc1)
        small0 = small_ref[0]                 # [8, TB*H] f32: row0=ba1, row1=bc1, [2,0]=bc2
        wa2_t = small_ref[1]                  # [TB, TB*H] f32, block rows of wa2
        wc2_t = small_ref[2]                  # [TB, TB*H] f32, block rows of wc2
        ba1 = small0[0:1, :]
        bc1 = small0[1:2, :]
        bc2 = small0[2:3, 0:1]

        # ---- actor head: one wide [NP,2*TBD]@[2*TBD,TBH] dot + pooled row bias ----
        pooled_row = jnp.dot(gfb_b, w_act_p, preferred_element_type=f32) + ba1
        h_act = jnp.maximum(
            jnp.dot(hfb, w_act_n, preferred_element_type=f32) + pooled_row, 0.0)
        # per-state scores directly in [TB, NP] (lane-dense for the softmax)
        scores = jnp.einsum('sh,nh->sn', wa2_t, h_act,
                            preferred_element_type=f32)                # [TB, NP]
        # TODO(synk): actor output bias ba2 cancels in log-softmax, so it is omitted.

        neg = f32(-1e9)
        is_cand = mask > 0.5
        masked = jnp.where(is_cand, scores, neg)
        m = jnp.max(masked, axis=-1, keepdims=True)                    # [TB, 1]
        e = jnp.where(is_cand, jnp.exp(masked - m), 0.0)
        z = jnp.maximum(jnp.sum(e, axis=-1, keepdims=True), f32(1e-30))
        logp = jnp.where(is_cand, masked - m - jnp.log(z), neg)        # [TB, NP]
        p = e * pl.reciprocal(z, approx=True)
        ent = -jnp.sum(jnp.where(is_cand, p * logp, 0.0), axis=-1,
                       keepdims=True)                                   # [TB, 1]

        # ---- critic head: value via VPU multiply + lane reduce (no transpose) ----
        hv = jnp.maximum(jnp.dot(gfb_b, w_crit, preferred_element_type=f32) + bc1,
                         0.0)                                           # [1, TB*H]
        val = jnp.sum(hv * wc2_t, axis=-1, keepdims=True) + bc2         # [TB, 1]

        # ---- one lane-dense [3*TB, NP] slab, single unmasked store ----
        slab = jnp.concatenate(
            [logp,
             jnp.broadcast_to(ent, (tb, npad)),
             jnp.broadcast_to(val, (tb, npad))], axis=0)
        out_ref[0] = slab

    return kernel


# ------------------------------- glue / model -------------------------------

class Memory:
    def __init__(self):
        self.states = []
        self.candidates = []
        self.actions = []
        self.logprobs = []


class ActorCritic:
    TB = 8            # states packed per grid step (sublane count)
    H = 32            # actor / critic hidden width

    def __init__(self, dag_adj, node_feature_dim, node_output_size, batch_norm,
                 one_hot_degree, gnn_layers, key):
        self.node_feature_dim = node_feature_dim
        self.node_output_size = node_output_size
        self.batch_norm = batch_norm  # TODO(synk): batch_norm not implemented (identity)
        self.one_hot_degree = one_hot_degree
        self.gnn_layers = gnn_layers

        n = dag_adj.shape[0]
        npad = ((n + 127) // 128) * 128          # lane/sublane-aligned node count
        self.n = n
        self.np_nodes = npad

        # ---- hoisted graph preprocessing (DAG is fixed per model) ----
        adj = dag_adj.astype(jnp.float32)
        eye = jnp.eye(n, dtype=jnp.float32)
        a_f = adj + eye
        a_f = a_f / jnp.sum(a_f, axis=1, keepdims=True)
        a_b = adj.T + eye
        a_b = a_b / jnp.sum(a_b, axis=1, keepdims=True)
        padn = npad - n
        self.a_f = jnp.pad(a_f, ((0, padn), (0, padn))).astype(jnp.bfloat16)
        self.a_b = jnp.pad(a_b, ((0, padn), (0, padn))).astype(jnp.bfloat16)

        # mean-pool mask with 1/n pre-folded (hoisted out of the kernel)
        pool = (jnp.arange(npad) < n).astype(jnp.float32) / jnp.float32(n)
        self.pool_mask = pool.reshape(npad, 1)

        if one_hot_degree > 0:
            deg = jnp.clip(jnp.sum(adj, axis=1).astype(jnp.int32), 0, one_hot_degree)
            self.deg_onehot = jax.nn.one_hot(deg, one_hot_degree + 1, dtype=jnp.float32)
        else:
            self.deg_onehot = None

        in_dim = node_feature_dim + (one_hot_degree + 1 if one_hot_degree > 0 else 0)
        D = node_output_size
        self.in_dim = in_dim
        self.Dpack = ((max(in_dim, D) + 15) // 16) * 16   # per-state lane block
        state_dim = 4 * D

        keys = jax.random.split(key, 4 * gnn_layers + 9)
        ki = iter(range(len(keys)))

        def init(shape, k):
            return (0.1 * jax.random.normal(keys[k], shape)).astype(jnp.float32)

        params = {}
        for l in range(gnn_layers):
            din = in_dim if l == 0 else D
            params[f'wf{l}'] = init((din, D), next(ki))
            params[f'bf{l}'] = init((1, D), next(ki))
            params[f'wb{l}'] = init((din, D), next(ki))
            params[f'bb{l}'] = init((1, D), next(ki))
        params['wa1'] = init((state_dim, self.H), next(ki))
        params['ba1'] = init((1, self.H), next(ki))
        params['wa2'] = init((self.H, 1), next(ki))
        params['ba2'] = init((1, 1), next(ki))
        params['wc1'] = init((state_dim, self.H), next(ki))
        params['bc1'] = init((1, self.H), next(ki))
        params['wc2'] = init((self.H, 1), next(ki))
        params['bc2'] = init((1, 1), next(ki))
        self.params = params
        self._act_key = keys[next(ki)]

        self._kernel = _make_fused_kernel(gnn_layers, self.TB, npad)
        self._forward = jax.jit(self._forward_impl)

    # ---- kernel weights re-derived from live params on every forward ----
    def _pack_kernel_weights(self, params):
        TB, D, H, L = self.TB, self.node_output_size, self.H, self.gnn_layers
        Dp, in_dim = self.Dpack, self.in_dim
        eye = jnp.eye(TB, dtype=jnp.float32)
        blockdiag = lambda w: jnp.kron(eye, w)

        w_gcn, b_gcn = [], []
        for l in range(L):
            din = in_dim if l == 0 else D
            for tag in ('f', 'b'):
                w = jnp.zeros((Dp, Dp), jnp.float32).at[:din, :D].set(params[f'w{tag}{l}'])
                b = jnp.zeros((Dp,), jnp.float32).at[:D].set(params[f'b{tag}{l}'][0])
                w_gcn.append(blockdiag(w))
                b_gcn.append(jnp.tile(b, TB))
        w_gcn = jnp.stack(w_gcn).astype(jnp.bfloat16)        # [2L, TB*Dp, TB*Dp]
        b_gcn = jnp.stack(b_gcn)                             # [2L, TB*Dp]   f32

        def pad_rows(w):                                     # [D, H] -> [Dp, H]
            return jnp.zeros((Dp, H), jnp.float32).at[:D, :].set(w)

        wa1, wc1 = params['wa1'], params['wc1']
        # state feature order [hf_i, gf, hb_i, gb]
        w_act_n = jnp.concatenate([blockdiag(pad_rows(wa1[0:D])),
                                   blockdiag(pad_rows(wa1[2 * D:3 * D]))], axis=0)
        w_act_p = jnp.concatenate([blockdiag(pad_rows(wa1[D:2 * D])),
                                   blockdiag(pad_rows(wa1[3 * D:4 * D]))], axis=0)
        # critic pools mean(concat(hf_i, gf, hb_i, gb)) over nodes -> [gf, gf, gb, gb]
        w_crit = jnp.concatenate(
            [blockdiag(pad_rows(wc1[0:D] + wc1[D:2 * D])),
             blockdiag(pad_rows(wc1[2 * D:3 * D] + wc1[3 * D:4 * D]))], axis=0)
        w_heads = jnp.stack([w_act_n, w_act_p, w_crit]).astype(jnp.bfloat16)

        TBH = TB * H
        biases = jnp.zeros((8, TBH), jnp.float32)
        biases = biases.at[0].set(jnp.tile(params['ba1'][0], TB))
        biases = biases.at[1].set(jnp.tile(params['bc1'][0], TB))
        biases = biases.at[2, 0].set(params['bc2'][0, 0])
        wa2_t = blockdiag(params['wa2']).T                   # [TB, TBH]
        wc2_t = blockdiag(params['wc2']).T                   # [TB, TBH]
        small = jnp.stack([biases, wa2_t, wc2_t])            # [3, 8, TBH] f32
        return w_gcn, b_gcn, w_heads, small

    def _prep_inputs(self, node_feats, cand_masks):
        B = node_feats.shape[0]
        n, npad, TB, Dp = self.n, self.np_nodes, self.TB, self.Dpack
        nb = -(-B // TB)

        x = node_feats.astype(jnp.float32)
        if self.deg_onehot is not None:
            deg = jnp.broadcast_to(self.deg_onehot, (B,) + self.deg_onehot.shape)
            x = jnp.concatenate([x, deg], axis=-1)
        x = jnp.pad(x, ((0, nb * TB - B), (0, npad - n), (0, Dp - x.shape[-1])))
        x = x.reshape(nb, TB, npad, Dp).transpose(0, 2, 1, 3).reshape(nb, npad, TB * Dp)
        x = x.astype(jnp.bfloat16)

        m = jnp.pad(cand_masks.astype(jnp.float32), ((0, nb * TB - B), (0, npad - n)))
        m = m.reshape(nb, TB, npad)
        return x, m, nb, B

    # ---- fused forward over a batch of states: grid=(nb,), TB states / step ----
    def _forward_impl(self, params, node_feats, cand_masks):
        x, mask, nb, B = self._prep_inputs(node_feats, cand_masks)
        w_gcn, b_gcn, w_heads, small = self._pack_kernel_weights(params)

        TB, L, npad = self.TB, self.gnn_layers, self.np_nodes
        TBD = TB * self.Dpack
        TBH = TB * self.H

        const2 = lambda i: (0, 0)
        const3 = lambda i: (0, 0, 0)
        bat3 = lambda i: (i, 0, 0)

        in_specs = [
            pl.BlockSpec((npad, npad), const2),          # a_f  (bf16, VMEM resident)
            pl.BlockSpec((npad, npad), const2),          # a_b
            pl.BlockSpec((npad, 1), const2),             # pool mask (1/n folded)
            pl.BlockSpec((1, npad, TBD), bat3),          # packed node features
            pl.BlockSpec((1, TB, npad), bat3),           # candidate masks
            pl.BlockSpec((2 * L, TBD, TBD), const3),     # block-diag GCN weights
            pl.BlockSpec((2 * L, TBD), const2),          # tiled GCN biases
            pl.BlockSpec((3, 2 * TBD, TBH), const3),     # actor/critic block weights
            pl.BlockSpec((3, 8, TBH), const3),           # head biases + wa2/wc2 rows
        ]
        out_spec = pl.BlockSpec((1, 3 * TB, npad), bat3)

        # rough cost hint for the XLA scheduler + explicit VMEM budget
        mac_gcn = 2 * L * (npad * TBD * TBD + npad * npad * TBD)
        mac_head = npad * (2 * TBD) * TBH + 2 * (2 * TBD) * TBH + npad * TBH * TB
        flops = int(nb * 2 * (mac_gcn + mac_head))
        transcendentals = int(nb * (TB * npad + 4 * TB))
        fixed_bytes = (2 * npad * npad * 2 + npad * 4
                       + 2 * L * TBD * TBD * 2 + 2 * L * TBD * 4
                       + 3 * 2 * TBD * TBH * 2 + 3 * 8 * TBH * 4)
        per_step_bytes = npad * TBD * 2 + TB * npad * 4 + 3 * TB * npad * 4
        bytes_accessed = int(fixed_bytes + nb * per_step_bytes)
        vmem_limit = int(min(max(2 * (fixed_bytes + 2 * per_step_bytes) + (4 << 20),
                                 16 << 20), 100 << 20))

        out = pl.pallas_call(
            self._kernel,
            grid=(nb,),
            out_shape=jax.ShapeDtypeStruct((nb, 3 * TB, npad), jnp.float32),
            in_specs=in_specs,
            out_specs=out_spec,
            compiler_params=pltpu.CompilerParams(
                dimension_semantics=("parallel",),
                vmem_limit_bytes=vmem_limit),
            cost_estimate=pl.CostEstimate(flops=flops,
                                          transcendentals=transcendentals,
                                          bytes_accessed=bytes_accessed),
        )(self.a_f, self.a_b, self.pool_mask, x, mask, w_gcn, b_gcn, w_heads, small)

        logp = out[:, 0:TB, :].reshape(nb * TB, npad)[:B]     # -1e9 on non-candidates
        entropy = out[:, TB:2 * TB, 0].reshape(nb * TB)[:B]
        value = out[:, 2 * TB:3 * TB, 0].reshape(nb * TB)[:B]
        return logp, entropy, value

    def act(self, node_feat, cand_mask, memory, key=None):
        logp, entropy, value = self._forward(self.params, node_feat[None],
                                             cand_mask[None])
        if key is None:
            self._act_key, key = jax.random.split(self._act_key)
        action = jax.random.categorical(key, logp[0])   # masked nodes have logit -1e9
        memory.states.append(node_feat)
        memory.candidates.append(cand_mask)
        memory.actions.append(action)
        memory.logprobs.append(logp[0, action])
        return action

    def evaluate(self, node_feat, cand_mask, action):
        logp, entropy, value = self._forward(self.params, node_feat[None],
                                             cand_mask[None])
        return logp[0, action], value[0], entropy[0]

    def evaluate_batch(self, node_feats, cand_masks, actions):
        logp, entropy, value = self._forward(self.params, node_feats, cand_masks)
        action_logits = jnp.take_along_axis(logp, actions[:, None], axis=1)[:, 0]
        return action_logits, value, entropy


# ----------------------------------- main ------------------------------------

if __name__ == "__main__":
    key = jax.random.PRNGKey(0)
    N, F, D, L = 8, 4, 16, 3        # nodes, node_feature_dim, node_output_size, gnn_layers
    k_adj, k_feat, k_param = jax.random.split(key, 3)

    # deterministic random DAG: strictly upper-triangular adjacency
    adj = jnp.triu(jax.random.bernoulli(k_adj, 0.4, (N, N)).astype(jnp.float32), k=1)
    node_feat = jax.random.normal(k_feat, (N, F), dtype=jnp.float32)
    cand_mask = jnp.zeros((N,), jnp.float32).at[jnp.array([1, 3, 5, 6])].set(1.0)

    model = ActorCritic(adj, node_feature_dim=F, node_output_size=D,
                        batch_norm=False, one_hot_degree=0, gnn_layers=L, key=k_param)

    memory = Memory()
    a0 = model.act(node_feat, cand_mask, memory)

    # a second rollout step with different node features / candidates
    node_feat2 = 0.5 * node_feat + 1.0
    cand_mask2 = jnp.zeros((N,), jnp.float32).at[jnp.array([0, 2, 4])].set(1.0)
    a1 = model.act(node_feat2, cand_mask2, memory)

    # single-state evaluate
    lp, val, ent = model.evaluate(node_feat, cand_mask, a0)

    # batched evaluate over the collected memory (one grid step handles 8 states)
    states = jnp.stack(memory.states)
    masks = jnp.stack(memory.candidates)
    actions = jnp.stack(memory.actions)
    blp, bval, bent = model.evaluate_batch(states, masks, actions)

    jax.block_until_ready((a0, a1, lp, val, ent, blp, bval, bent))
    print("KERNEL_OK")
</pallas_src>

<mosaic_0001>
module attributes {stable_mosaic.version = 11 : i64} {
  func.func @kernel(%arg0: i32, %arg1: memref<128x128xbf16, #tpu.memory_space<vmem>>, %arg2: memref<128x128xbf16, #tpu.memory_space<vmem>>, %arg3: memref<128x1xf32, #tpu.memory_space<vmem>>, %arg4: memref<1x128x128xbf16, #tpu.memory_space<vmem>>, %arg5: memref<1x8x128xf32, #tpu.memory_space<vmem>>, %arg6: memref<6x128x128xbf16, #tpu.memory_space<vmem>>, %arg7: memref<6x128xf32, #tpu.memory_space<vmem>>, %arg8: memref<3x256x256xbf16, #tpu.memory_space<vmem>>, %arg9: memref<3x8x256xf32, #tpu.memory_space<vmem>>, %arg10: memref<1x24x128xf32, #tpu.memory_space<vmem>>) attributes {dimension_semantics = [#tpu.dimension_semantics<parallel>], iteration_bounds = array<i64: 1>, scalar_prefetch = 0 : i64, scratch_operands = 0 : i64, tpu.core_type = #tpu.core_type<tc>, window_params = [{pipeline_mode = #tpu.pipeline_mode<synchronous>, transform_indices = @transform_0, window_bounds = array<i64: 128, 128>}, {pipeline_mode = #tpu.pipeline_mode<synchronous>, transform_indices = @transform_1, window_bounds = array<i64: 128, 128>}, {pipeline_mode = #tpu.pipeline_mode<synchronous>, transform_indices = @transform_2, window_bounds = array<i64: 128, 1>}, {transform_indices = @transform_3, window_bounds = array<i64: 1, 128, 128>}, {transform_indices = @transform_4, window_bounds = array<i64: 1, 8, 128>}, {pipeline_mode = #tpu.pipeline_mode<synchronous>, transform_indices = @transform_5, window_bounds = array<i64: 6, 128, 128>}, {pipeline_mode = #tpu.pipeline_mode<synchronous>, transform_indices = @transform_6, window_bounds = array<i64: 6, 128>}, {pipeline_mode = #tpu.pipeline_mode<synchronous>, transform_indices = @transform_7, window_bounds = array<i64: 3, 256, 256>}, {pipeline_mode = #tpu.pipeline_mode<synchronous>, transform_indices = @transform_8, window_bounds = array<i64: 3, 8, 256>}, {transform_indices = @transform_9, window_bounds = array<i64: 1, 24, 128>}]} {
    %c0 = arith.constant 0 : index
    %c0_0 = arith.constant 0 : index
    %0 = vector.load %arg1[%c0, %c0_0] : memref<128x128xbf16, #tpu.memory_space<vmem>>, vector<128x128xbf16>
    %c0_1 = arith.constant 0 : index
    %c0_2 = arith.constant 0 : index
    %1 = vector.load %arg2[%c0_1, %c0_2] : memref<128x128xbf16, #tpu.memory_space<vmem>>, vector<128x128xbf16>
    %c0_3 = arith.constant 0 : index
    %c0_4 = arith.constant 0 : index
    %2 = vector.load %arg3[%c0_3, %c0_4] : memref<128x1xf32, #tpu.memory_space<vmem>>, vector<128x1xf32>
    %c0_5 = arith.constant 0 : index
    %c0_6 = arith.constant 0 : index
    %c0_7 = arith.constant 0 : index
    %3 = vector.load %arg4[%c0_5, %c0_6, %c0_7] : memref<1x128x128xbf16, #tpu.memory_space<vmem>>, vector<1x128x128xbf16>
    %4 = vector.shape_cast %3 : vector<1x128x128xbf16> to vector<128x128xbf16>
    %c0_8 = arith.constant 0 : index
    %c0_9 = arith.constant 0 : index
    %c0_10 = arith.constant 0 : index
    %5 = vector.load %arg5[%c0_8, %c0_9, %c0_10] : memref<1x8x128xf32, #tpu.memory_space<vmem>>, vector<1x8x128xf32>
    %6 = vector.shape_cast %5 : vector<1x8x128xf32> to vector<8x128xf32>
    %c0_11 = arith.constant 0 : index
    %c0_12 = arith.constant 0 : index
    %7 = vector.load %arg7[%c0_11, %c0_12] : memref<6x128xf32, #tpu.memory_space<vmem>>, vector<6x128xf32>
    %c0_13 = arith.constant 0 : index
    %c0_14 = arith.constant 0 : index
    %c0_15 = arith.constant 0 : index
    %8 = vector.load %arg6[%c0_13, %c0_14, %c0_15] : memref<6x128x128xbf16, #tpu.memory_space<vmem>>, vector<1x128x128xbf16>
    %9 = vector.shape_cast %8 : vector<1x128x128xbf16> to vector<128x128xbf16>
    %c1 = arith.constant 1 : index
    %c0_16 = arith.constant 0 : index
    %c0_17 = arith.constant 0 : index
    %10 = vector.load %arg6[%c1, %c0_16, %c0_17] : memref<6x128x128xbf16, #tpu.memory_space<vmem>>, vector<1x128x128xbf16>
    %11 = vector.shape_cast %10 : vector<1x128x128xbf16> to vector<128x128xbf16>
    %12 = vector.extract_strided_slice %7 {offsets = [0, 0], sizes = [1, 128], strides = [1, 1]} : vector<6x128xf32> to vector<1x128xf32>
    %13 = vector.extract_strided_slice %7 {offsets = [1, 0], sizes = [1, 128], strides = [1, 1]} : vector<6x128xf32> to vector<1x128xf32>
    %cst = arith.constant dense<0.000000e+00> : vector<128x128xf32>
    %14 = tpu.matmul %4, %9, %cst {dimension_numbers = #tpu.dot_dimension_numbers<[1], [0], [0], [1], [0, 0, 1, 1], [], []>} : vector<128x128xbf16>, vector<128x128xbf16>, vector<128x128xf32> -> vector<128x128xf32>
    %15 = arith.truncf %14 : vector<128x128xf32> to vector<128x128xbf16>
    %cst_18 = arith.constant dense<0.000000e+00> : vector<128x128xf32>
    %16 = tpu.matmul %4, %11, %cst_18 {dimension_numbers = #tpu.dot_dimension_numbers<[1], [0], [0], [1], [0, 0, 1, 1], [], []>} : vector<128x128xbf16>, vector<128x128xbf16>, vector<128x128xf32> -> vector<128x128xf32>
    %17 = arith.truncf %16 : vector<128x128xf32> to vector<128x128xbf16>
    %cst_19 = arith.constant dense<0.000000e+00> : vector<128x128xf32>
    %18 = tpu.matmul %0, %15, %cst_19 {dimension_numbers = #tpu.dot_dimension_numbers<[1], [0], [0], [1], [0, 0, 1, 1], [], []>} : vector<128x128xbf16>, vector<128x128xbf16>, vector<128x128xf32> -> vector<128x128xf32>
    %19 = vector.broadcast %12 : vector<1x128xf32> to vector<128x128xf32>
    %20 = arith.addf %18, %19 : vector<128x128xf32>
    %cst_20 = arith.constant 0.000000e+00 : f32
    %21 = vector.broadcast %cst_20 : f32 to vector<128x128xf32>
    %22 = arith.maximumf %20, %21 : vector<128x128xf32>
    %23 = arith.truncf %22 : vector<128x128xf32> to vector<128x128xbf16>
    %cst_21 = arith.constant dense<0.000000e+00> : vector<128x128xf32>
    %24 = tpu.matmul %1, %17, %cst_21 {dimension_numbers = #tpu.dot_dimension_numbers<[1], [0], [0], [1], [0, 0, 1, 1], [], []>} : vector<128x128xbf16>, vector<128x128xbf16>, vector<128x128xf32> -> vector<128x128xf32>
    %25 = vector.broadcast %13 : vector<1x128xf32> to vector<128x128xf32>
    %26 = arith.addf %24, %25 : vector<128x128xf32>
    %cst_22 = arith.constant 0.000000e+00 : f32
    %27 = vector.broadcast %cst_22 : f32 to vector<128x128xf32>
    %28 = arith.maximumf %26, %27 : vector<128x128xf32>
    %29 = arith.truncf %28 : vector<128x128xf32> to vector<128x128xbf16>
    %c2 = arith.constant 2 : index
    %c0_23 = arith.constant 0 : index
    %c0_24 = arith.constant 0 : index
    %30 = vector.load %arg6[%c2, %c0_23, %c0_24] : memref<6x128x128xbf16, #tpu.memory_space<vmem>>, vector<1x128x128xbf16>
    %31 = vector.shape_cast %30 : vector<1x128x128xbf16> to vector<128x128xbf16>
    %c3 = arith.constant 3 : index
    %c0_25 = arith.constant 0 : index
    %c0_26 = arith.constant 0 : index
    %32 = vector.load %arg6[%c3, %c0_25, %c0_26] : memref<6x128x128xbf16, #tpu.memory_space<vmem>>, vector<1x128x128xbf16>
    %33 = vector.shape_cast %32 : vector<1x128x128xbf16> to vector<128x128xbf16>
    %34 = vector.extract_strided_slice %7 {offsets = [2, 0], sizes = [1, 128], strides = [1, 1]} : vector<6x128xf32> to vector<1x128xf32>
    %35 = vector.extract_strided_slice %7 {offsets = [3, 0], sizes = [1, 128], strides = [1, 1]} : vector<6x128xf32> to vector<1x128xf32>
    %cst_27 = arith.constant dense<0.000000e+00> : vector<128x128xf32>
    %36 = tpu.matmul %23, %31, %cst_27 {dimension_numbers = #tpu.dot_dimension_numbers<[1], [0], [0], [1], [0, 0, 1, 1], [], []>} : vector<128x128xbf16>, vector<128x128xbf16>, vector<128x128xf32> -> vector<128x128xf32>
    %37 = arith.truncf %36 : vector<128x128xf32> to vector<128x128xbf16>
    %cst_28 = arith.constant dense<0.000000e+00> : vector<128x128xf32>
    %38 = tpu.matmul %29, %33, %cst_28 {dimension_numbers = #tpu.dot_dimension_numbers<[1], [0], [0], [1], [0, 0, 1, 1], [], []>} : vector<128x128xbf16>, vector<128x128xbf16>, vector<128x128xf32> -> vector<128x128xf32>
    %39 = arith.truncf %38 : vector<128x128xf32> to vector<128x128xbf16>
    %cst_29 = arith.constant dense<0.000000e+00> : vector<128x128xf32>
    %40 = tpu.matmul %0, %37, %cst_29 {dimension_numbers = #tpu.dot_dimension_numbers<[1], [0], [0], [1], [0, 0, 1, 1], [], []>} : vector<128x128xbf16>, vector<128x128xbf16>, vector<128x128xf32> -> vector<128x128xf32>
    %41 = vector.broadcast %34 : vector<1x128xf32> to vector<128x128xf32>
    %42 = arith.addf %40, %41 : vector<128x128xf32>
    %cst_30 = arith.constant 0.000000e+00 : f32
    %43 = vector.broadcast %cst_30 : f32 to vector<128x128xf32>
    %44 = arith.maximumf %42, %43 : vector<128x128xf32>
    %45 = arith.truncf %44 : vector<128x128xf32> to vector<128x128xbf16>
    %cst_31 = arith.constant dense<0.000000e+00> : vector<128x128xf32>
    %46 = tpu.matmul %1, %39, %cst_31 {dimension_numbers = #tpu.dot_dimension_numbers<[1], [0], [0], [1], [0, 0, 1, 1], [], []>} : vector<128x128xbf16>, vector<128x128xbf16>, vector<128x128xf32> -> vector<128x128xf32>
    %47 = vector.broadcast %35 : vector<1x128xf32> to vector<128x128xf32>
    %48 = arith.addf %46, %47 : vector<128x128xf32>
    %cst_32 = arith.constant 0.000000e+00 : f32
    %49 = vector.broadcast %cst_32 : f32 to vector<128x128xf32>
    %50 = arith.maximumf %48, %49 : vector<128x128xf32>
    %51 = arith.truncf %50 : vector<128x128xf32> to vector<128x128xbf16>
    %c4 = arith.constant 4 : index
    %c0_33 = arith.constant 0 : index
    %c0_34 = arith.constant 0 : index
    %52 = vector.load %arg6[%c4, %c0_33, %c0_34] : memref<6x128x128xbf16, #tpu.memory_space<vmem>>, vector<1x128x128xbf16>
    %53 = vector.shape_cast %52 : vector<1x128x128xbf16> to vector<128x128xbf16>
    %c5 = arith.constant 5 : index
    %c0_35 = arith.constant 0 : index
    %c0_36 = arith.constant 0 : index
    %54 = vector.load %arg6[%c5, %c0_35, %c0_36] : memref<6x128x128xbf16, #tpu.memory_space<vmem>>, vector<1x128x128xbf16>
    %55 = vector.shape_cast %54 : vector<1x128x128xbf16> to vector<128x128xbf16>
    %56 = vector.extract_strided_slice %7 {offsets = [4, 0], sizes = [1, 128], strides = [1, 1]} : vector<6x128xf32> to vector<1x128xf32>
    %57 = vector.extract_strided_slice %7 {offsets = [5, 0], sizes = [1, 128], strides = [1, 1]} : vector<6x128xf32> to vector<1x128xf32>
    %cst_37 = arith.constant dense<0.000000e+00> : vector<128x128xf32>
    %58 = tpu.matmul %45, %53, %cst_37 {dimension_numbers = #tpu.dot_dimension_numbers<[1], [0], [0], [1], [0, 0, 1, 1], [], []>} : vector<128x128xbf16>, vector<128x128xbf16>, vector<128x128xf32> -> vector<128x128xf32>
    %59 = arith.truncf %58 : vector<128x128xf32> to vector<128x128xbf16>
    %cst_38 = arith.constant dense<0.000000e+00> : vector<128x128xf32>
    %60 = tpu.matmul %51, %55, %cst_38 {dimension_numbers = #tpu.dot_dimension_numbers<[1], [0], [0], [1], [0, 0, 1, 1], [], []>} : vector<128x128xbf16>, vector<128x128xbf16>, vector<128x128xf32> -> vector<128x128xf32>
    %61 = arith.truncf %60 : vector<128x128xf32> to vector<128x128xbf16>
    %cst_39 = arith.constant dense<0.000000e+00> : vector<128x128xf32>
    %62 = tpu.matmul %0, %59, %cst_39 {dimension_numbers = #tpu.dot_dimension_numbers<[1], [0], [0], [1], [0, 0, 1, 1], [], []>} : vector<128x128xbf16>, vector<128x128xbf16>, vector<128x128xf32> -> vector<128x128xf32>
    %63 = vector.broadcast %56 : vector<1x128xf32> to vector<128x128xf32>
    %64 = arith.addf %62, %63 : vector<128x128xf32>
    %cst_40 = arith.constant 0.000000e+00 : f32
    %65 = vector.broadcast %cst_40 : f32 to vector<128x128xf32>
    %66 = arith.maximumf %64, %65 : vector<128x128xf32>
    %67 = arith.truncf %66 : vector<128x128xf32> to vector<128x128xbf16>
    %cst_41 = arith.constant dense<0.000000e+00> : vector<128x128xf32>
    %68 = tpu.matmul %1, %61, %cst_41 {dimension_numbers = #tpu.dot_dimension_numbers<[1], [0], [0], [1], [0, 0, 1, 1], [], []>} : vector<128x128xbf16>, vector<128x128xbf16>, vector<128x128xf32> -> vector<128x128xf32>
    %69 = vector.broadcast %57 : vector<1x128xf32> to vector<128x128xf32>
    %70 = arith.addf %68, %69 : vector<128x128xf32>
    %cst_42 = arith.constant 0.000000e+00 : f32
    %71 = vector.broadcast %cst_42 : f32 to vector<128x128xf32>
    %72 = arith.maximumf %70, %71 : vector<128x128xf32>
    %73 = arith.truncf %72 : vector<128x128xf32> to vector<128x128xbf16>
    %74 = tpu.concatenate %67, %73 in 1 : vector<128x128xbf16>, vector<128x128xbf16> -> vector<128x256xbf16>
    %75 = arith.extf %74 : vector<128x256xbf16> to vector<128x256xf32>
    %76 = vector.broadcast %2 : vector<128x1xf32> to vector<128x256xf32>
    %77 = arith.mulf %75, %76 : vector<128x256xf32>
    %cst_43 = arith.constant dense<0.000000e+00> : vector<256xf32>
    %78 = vector.multi_reduction <add>, %77, %cst_43 [0] : vector<128x256xf32> to vector<256xf32>
    %79 = vector.shape_cast %78 : vector<256xf32> to vector<1x256xf32>
    %80 = arith.truncf %79 : vector<1x256xf32> to vector<1x256xbf16>
    %c0_44 = arith.constant 0 : index
    %c0_45 = arith.constant 0 : index
    %c0_46 = arith.constant 0 : index
    %81 = vector.load %arg8[%c0_44, %c0_45, %c0_46] : memref<3x256x256xbf16, #tpu.memory_space<vmem>>, vector<1x256x256xbf16>
    %82 = vector.shape_cast %81 : vector<1x256x256xbf16> to vector<256x256xbf16>
    %c1_47 = arith.constant 1 : index
    %c0_48 = arith.constant 0 : index
    %c0_49 = arith.constant 0 : index
    %83 = vector.load %arg8[%c1_47, %c0_48, %c0_49] : memref<3x256x256xbf16, #tpu.memory_space<vmem>>, vector<1x256x256xbf16>
    %84 = vector.shape_cast %83 : vector<1x256x256xbf16> to vector<256x256xbf16>
    %c2_50 = arith.constant 2 : index
    %c0_51 = arith.constant 0 : index
    %c0_52 = arith.constant 0 : index
    %85 = vector.load %arg8[%c2_50, %c0_51, %c0_52] : memref<3x256x256xbf16, #tpu.memory_space<vmem>>, vector<1x256x256xbf16>
    %86 = vector.shape_cast %85 : vector<1x256x256xbf16> to vector<256x256xbf16>
    %c0_53 = arith.constant 0 : index
    %c0_54 = arith.constant 0 : index
    %c0_55 = arith.constant 0 : index
    %87 = vector.load %arg9[%c0_53, %c0_54, %c0_55] : memref<3x8x256xf32, #tpu.memory_space<vmem>>, vector<1x8x256xf32>
    %88 = vector.shape_cast %87 : vector<1x8x256xf32> to vector<8x256xf32>
    %c1_56 = arith.constant 1 : index
    %c0_57 = arith.constant 0 : index
    %c0_58 = arith.constant 0 : index
    %89 = vector.load %arg9[%c1_56, %c0_57, %c0_58] : memref<3x8x256xf32, #tpu.memory_space<vmem>>, vector<1x8x256xf32>
    %90 = vector.shape_cast %89 : vector<1x8x256xf32> to vector<8x256xf32>
    %c2_59 = arith.constant 2 : index
    %c0_60 = arith.constant 0 : index
    %c0_61 = arith.constant 0 : index
    %91 = vector.load %arg9[%c2_59, %c0_60, %c0_61] : memref<3x8x256xf32, #tpu.memory_space<vmem>>, vector<1x8x256xf32>
    %92 = vector.shape_cast %91 : vector<1x8x256xf32> to vector<8x256xf32>
    %93 = vector.extract_strided_slice %88 {offsets = [0, 0], sizes = [1, 256], strides = [1, 1]} : vector<8x256xf32> to vector<1x256xf32>
    %94 = vector.extract_strided_slice %88 {offsets = [1, 0], sizes = [1, 256], strides = [1, 1]} : vector<8x256xf32> to vector<1x256xf32>
    %95 = vector.extract_strided_slice %88 {offsets = [2, 0], sizes = [1, 1], strides = [1, 1]} : vector<8x256xf32> to vector<1x1xf32>
    %cst_62 = arith.constant dense<0.000000e+00> : vector<1x256xf32>
    %96 = tpu.matmul %80, %84, %cst_62 {dimension_numbers = #tpu.dot_dimension_numbers<[1], [0], [0], [1], [0, 0, 1, 1], [], []>} : vector<1x256xbf16>, vector<256x256xbf16>, vector<1x256xf32> -> vector<1x256xf32>
    %97 = arith.addf %96, %93 : vector<1x256xf32>
    %cst_63 = arith.constant dense<0.000000e+00> : vector<128x256xf32>
    %98 = tpu.matmul %74, %82, %cst_63 {dimension_numbers = #tpu.dot_dimension_numbers<[1], [0], [0], [1], [0, 0, 1, 1], [], []>} : vector<128x256xbf16>, vector<256x256xbf16>, vector<128x256xf32> -> vector<128x256xf32>
    %99 = vector.broadcast %97 : vector<1x256xf32> to vector<128x256xf32>
    %100 = arith.addf %98, %99 : vector<128x256xf32>
    %cst_64 = arith.constant 0.000000e+00 : f32
    %101 = vector.broadcast %cst_64 : f32 to vector<128x256xf32>
    %102 = arith.maximumf %100, %101 : vector<128x256xf32>
    "tpu.trace_start"() <{level = 10 : i32, message = "sh,nh->sn"}> : () -> ()
    %cst_65 = arith.constant dense<0.000000e+00> : vector<8x128xf32>
    %103 = tpu.matmul %90, %102, %cst_65 {dimension_numbers = #tpu.dot_dimension_numbers<[1], [1], [0], [0], [0, 0, 1, 0], [], []>} : vector<8x256xf32>, vector<128x256xf32>, vector<8x128xf32> -> vector<8x128xf32>
    %cst_66 = arith.constant 5.000000e-01 : f32
    "tpu.trace_stop"() : () -> ()
    %104 = vector.broadcast %cst_66 : f32 to vector<8x128xf32>
    %105 = arith.cmpf ogt, %6, %104 : vector<8x128xf32>
    %cst_67 = arith.constant -1.000000e+09 : f32
    %106 = vector.broadcast %cst_67 : f32 to vector<8x128xf32>
    %107 = arith.select %105, %103, %106 : vector<8x128xi1>, vector<8x128xf32>
    %cst_68 = arith.constant dense<0xFF800000> : vector<8xf32>
    %108 = vector.multi_reduction <maximumf>, %107, %cst_68 [1] : vector<8x128xf32> to vector<8xf32>
    %109 = vector.shape_cast %108 : vector<8xf32> to vector<8x1xf32>
    %110 = vector.broadcast %109 : vector<8x1xf32> to vector<8x128xf32>
    %111 = arith.subf %107, %110 : vector<8x128xf32>
    %112 = math.exp %111 : vector<8x128xf32>
    %cst_69 = arith.constant 0.000000e+00 : f32
    %113 = vector.broadcast %cst_69 : f32 to vector<8x128xf32>
    %114 = arith.select %105, %112, %113 : vector<8x128xi1>, vector<8x128xf32>
    %cst_70 = arith.constant dense<0.000000e+00> : vector<8xf32>
    %115 = vector.multi_reduction <add>, %114, %cst_70 [1] : vector<8x128xf32> to vector<8xf32>
    %116 = vector.shape_cast %115 : vector<8xf32> to vector<8x1xf32>
    %cst_71 = arith.constant 1.000000e-30 : f32
    %117 = vector.broadcast %cst_71 : f32 to vector<8x1xf32>
    %118 = arith.maximumf %116, %117 : vector<8x1xf32>
    %119 = vector.broadcast %109 : vector<8x1xf32> to vector<8x128xf32>
    %120 = arith.subf %107, %119 : vector<8x128xf32>
    %121 = math.log %118 : vector<8x1xf32>
    %122 = vector.broadcast %121 : vector<8x1xf32> to vector<8x128xf32>
    %123 = arith.subf %120, %122 : vector<8x128xf32>
    %cst_72 = arith.constant -1.000000e+09 : f32
    %124 = vector.broadcast %cst_72 : f32 to vector<8x128xf32>
    %125 = arith.select %105, %123, %124 : vector<8x128xi1>, vector<8x128xf32>
    %126 = tpu.reciprocal %118 {approx = true} : vector<8x1xf32> -> vector<8x1xf32>
    %127 = vector.broadcast %126 : vector<8x1xf32> to vector<8x128xf32>
    %128 = arith.mulf %114, %127 : vector<8x128xf32>
    %129 = arith.mulf %128, %125 : vector<8x128xf32>
    %cst_73 = arith.constant 0.000000e+00 : f32
    %130 = vector.broadcast %cst_73 : f32 to vector<8x128xf32>
    %131 = arith.select %105, %129, %130 : vector<8x128xi1>, vector<8x128xf32>
    %cst_74 = arith.constant dense<0.000000e+00> : vector<8xf32>
    %132 = vector.multi_reduction <add>, %131, %cst_74 [1] : vector<8x128xf32> to vector<8xf32>
    %133 = vector.shape_cast %132 : vector<8xf32> to vector<8x1xf32>
    %cst_75 = arith.constant 0.000000e+00 : f32
    %134 = vector.broadcast %cst_75 : f32 to vector<8x1xf32>
    %135 = arith.subf %134, %133 : vector<8x1xf32>
    %cst_76 = arith.constant dense<0.000000e+00> : vector<1x256xf32>
    %136 = tpu.matmul %80, %86, %cst_76 {dimension_numbers = #tpu.dot_dimension_numbers<[1], [0], [0], [1], [0, 0, 1, 1], [], []>} : vector<1x256xbf16>, vector<256x256xbf16>, vector<1x256xf32> -> vector<1x256xf32>
    %137 = arith.addf %136, %94 : vector<1x256xf32>
    %cst_77 = arith.constant 0.000000e+00 : f32
    %138 = vector.broadcast %cst_77 : f32 to vector<1x256xf32>
    %139 = arith.maximumf %137, %138 : vector<1x256xf32>
    %140 = vector.broadcast %139 : vector<1x256xf32> to vector<8x256xf32>
    %141 = arith.mulf %140, %92 : vector<8x256xf32>
    %cst_78 = arith.constant dense<0.000000e+00> : vector<8xf32>
    %142 = vector.multi_reduction <add>, %141, %cst_78 [1] : vector<8x256xf32> to vector<8xf32>
    %143 = vector.shape_cast %142 : vector<8xf32> to vector<8x1xf32>
    %144 = vector.broadcast %95 : vector<1x1xf32> to vector<8x1xf32>
    %145 = arith.addf %143, %144 : vector<8x1xf32>
    %146 = vector.shape_cast %135 : vector<8x1xf32> to vector<8x1xf32>
    %147 = vector.broadcast %146 : vector<8x1xf32> to vector<8x128xf32>
    %148 = vector.shape_cast %145 : vector<8x1xf32> to vector<8x1xf32>
    %149 = vector.broadcast %148 : vector<8x1xf32> to vector<8x128xf32>
    %150 = tpu.concatenate %125, %147, %149 in 0 : vector<8x128xf32>, vector<8x128xf32>, vector<8x128xf32> -> vector<24x128xf32>
    %c0_79 = arith.constant 0 : index
    %c0_80 = arith.constant 0 : index
    %c0_81 = arith.constant 0 : index
    %151 = vector.load %arg10[%c0_79, %c0_80, %c0_81] : memref<1x24x128xf32, #tpu.memory_space<vmem>>, vector<1x24x128xf32>
    %152 = vector.shape_cast %151 : vector<1x24x128xf32> to vector<24x128xf32>
    %153 = vector.shape_cast %150 : vector<24x128xf32> to vector<1x24x128xf32>
    tpu.vector_store %arg10[%c0_79, %c0_80, %c0_81], %153 {strides = array<i32>} : memref<1x24x128xf32, #tpu.memory_space<vmem>>, vector<1x24x128xf32>,
    return
  }
  func.func @transform_0(%arg0: i32) -> (i32, i32) {
    %c0_i32 = arith.constant 0 : i32
    %c0_i32_0 = arith.constant 0 : i32
    %c0_i32_1 = arith.constant 0 : i32
    return %c0_i32, %c0_i32_0 : i32, i32
  }
  func.func @transform_1(%arg0: i32) -> (i32, i32) {
    %c0_i32 = arith.constant 0 : i32
    %c0_i32_0 = arith.constant 0 : i32
    %c0_i32_1 = arith.constant 0 : i32
    return %c0_i32, %c0_i32_0 : i32, i32
  }
  func.func @transform_2(%arg0: i32) -> (i32, i32) {
    %c0_i32 = arith.constant 0 : i32
    %c0_i32_0 = arith.constant 0 : i32
    %c0_i32_1 = arith.constant 0 : i32
    return %c0_i32, %c0_i32_0 : i32, i32
  }
  func.func @transform_3(%arg0: i32) -> (i32, i32, i32) {
    %c0_i32 = arith.constant 0 : i32
    %c0_i32_0 = arith.constant 0 : i32
    %c0_i32_1 = arith.constant 0 : i32
    return %arg0, %c0_i32, %c0_i32_0 : i32, i32, i32
  }
  func.func @transform_4(%arg0: i32) -> (i32, i32, i32) {
    %c0_i32 = arith.constant 0 : i32
    %c0_i32_0 = arith.constant 0 : i32
    %c0_i32_1 = arith.constant 0 : i32
    return %arg0, %c0_i32, %c0_i32_0 : i32, i32, i32
  }
  func.func @transform_5(%arg0: i32) -> (i32, i32, i32) {
    %c0_i32 = arith.constant 0 : i32
    %c0_i32_0 = arith.constant 0 : i32
    %c0_i32_1 = arith.constant 0 : i32
    %c0_i32_2 = arith.constant 0 : i32
    return %c0_i32, %c0_i32_0, %c0_i32_1 : i32, i32, i32
  }
  func.func @transform_6(%arg0: i32) -> (i32, i32) {
    %c0_i32 = arith.constant 0 : i32
    %c0_i32_0 = arith.constant 0 : i32
    %c0_i32_1 = arith.constant 0 : i32
    return %c0_i32, %c0_i32_0 : i32, i32
  }
  func.func @transform_7(%arg0: i32) -> (i32, i32, i32) {
    %c0_i32 = arith.constant 0 : i32
    %c0_i32_0 = arith.constant 0 : i32
    %c0_i32_1 = arith.constant 0 : i32
    %c0_i32_2 = arith.constant 0 : i32
    return %c0_i32, %c0_i32_0, %c0_i32_1 : i32, i32, i32
  }
  func.func @transform_8(%arg0: i32) -> (i32, i32, i32) {
    %c0_i32 = arith.constant 0 : i32
    %c0_i32_0 = arith.constant 0 : i32
    %c0_i32_1 = arith.constant 0 : i32
    %c0_i32_2 = arith.constant 0 : i32
    return %c0_i32, %c0_i32_0, %c0_i32_1 : i32, i32, i32
  }
  func.func @transform_9(%arg0: i32) -> (i32, i32, i32) {
    %c0_i32 = arith.constant 0 : i32
    %c0_i32_0 = arith.constant 0 : i32
    %c0_i32_1 = arith.constant 0 : i32
    return %arg0, %c0_i32, %c0_i32_0 : i32, i32, i32
  }
}

</mosaic_0001>

<llo_original>
// kernel: tile.41
$region0: #{tile.41}
  #allocation0 [shape = 's32[1]{0}', space=sflag, size = 0x4, scoped, tag = 'scoped memory for tile.41']
  %s0 = inlined_call_operand.vmem [shape: f32[16], index: 0, kind: input, shape index: {}]
  %s1 = inlined_call_operand.vmem [shape: f32[8,16], index: 1, kind: output, shape index: {}]
  // Predicated region
  $region2: #{tile.41} parent=0 // pred_check
    _
  $region3: #{tile.41} parent=0 // pred_check_branch
    %3 = sbr.rel (0) target = $region5
  $region4: #{tile.41} parent=0 // pred_region
    _
  $region5: #{tile.41} parent=0 // pred_fallthru
    _
  %v4 = vld [vmem:[%s0] ss:$0 sm:$0xff]
  %5 = vst [vmem:[%s1] sm:$0xff] %v4

// kernel: tile.62
$region0: #{tile.62}
  %s0 = inlined_call_operand.vmem [shape: f32[8,16], index: 0, kind: input, shape index: {}]
  %s1 = inlined_call_operand.vmem [shape: f32[1,128], index: 1, kind: output, shape index: {}]
  $region1: #{tile.62} parent=0
    #allocation0 [shape = 'u8[4096]{0}', space=vmem, size = 0x1000, scoped, tag = 'scoped mem for output reshape']
    %v2 = vld [vmem:[%s0] sm:$0x1]
    %vm3 = vcmask 130048
    %4 = vst.msk [vmem:[#allocation0] sm:$0x1] %vm3, %v2
    %s5 = scalar_lea.vmem %s0, 7
    %v6 = vld [vmem:[%s5] sm:$0x1]
    %7 = vrot.lane.b32.xlu0 %v6, 112
    %v8 = vpop.permute.xlu0 %7
    %vm9 = vcmask 1048448
    %10 = vst.msk [vmem:[#allocation0] sm:$0x1] %vm9, %v8
    %s11 = scalar_lea.vmem %s0, 6
    %v12 = vld [vmem:[%s11] sm:$0x1]
    %13 = vrot.lane.b32.xlu0 %v12, 96
    %v14 = vpop.permute.xlu0 %13
    %vm15 = vcmask 917248
    %16 = vst.msk [vmem:[#allocation0] sm:$0x1] %vm15, %v14
    %s17 = scalar_lea.vmem %s0, 5
    %v18 = vld [vmem:[%s17] sm:$0x1]
    %19 = vrot.lane.b32.xlu0 %v18, 80
    %v20 = vpop.permute.xlu0 %19
    %vm21 = vcmask 786048
    %22 = vst.msk [vmem:[#allocation0] sm:$0x1] %vm21, %v20
    %s23 = scalar_lea.vmem %s0, 4
    %v24 = vld [vmem:[%s23] sm:$0x1]
    %25 = vrot.lane.b32.xlu0 %v24, 64
    %v26 = vpop.permute.xlu0 %25
    %vm27 = vcmask 654848
    %28 = vst.msk [vmem:[#allocation0] sm:$0x1] %vm27, %v26
    %s29 = scalar_lea.vmem %s0, 3
    %v30 = vld [vmem:[%s29] sm:$0x1]
    %31 = vrot.lane.b32.xlu0 %v30, 48
    %v32 = vpop.permute.xlu0 %31
    %vm33 = vcmask 523648
    %34 = vst.msk [vmem:[#allocation0] sm:$0x1] %vm33, %v32
    %s35 = scalar_lea.vmem %s0, 2
    %v36 = vld [vmem:[%s35] sm:$0x1]
    %37 = vrot.lane.b32.xlu0 %v36, 32
    %v38 = vpop.permute.xlu0 %37
    %vm39 = vcmask 392448
    %40 = vst.msk [vmem:[#allocation0] sm:$0x1] %vm39, %v38
    %s41 = scalar_lea.vmem %s0, 1
    %v42 = vld [vmem:[%s41] sm:$0x1]
    %43 = vrot.lane.b32.xlu0 %v42, 16
    %v44 = vpop.permute.xlu0 %43
    %vm45 = vcmask 261248
    %46 = vst.msk [vmem:[#allocation0] sm:$0x1] %vm45, %v44
    %s48 = sshllo.u32 0, 1
    %v50 = vld [vmem:[#allocation0] sm:%s48]
    %s51 = sshllo.u32 0, 1
    %52 = vst [vmem:[%s1] sm:%s51] %v50

// kernel: _forward_impl.1
$region0: #{_forward_impl.1}
  #allocation0 [shape = 'u32[]', space=smem, size = 0x4, offset = 0x4, fixed_abs, tag = 'smem constant byte address 0x4 - core index']
  #allocation1 [shape = 'u32[144,128]{1,0:T(1,128)}', space=vmem, size = 0x12000, scoped, tag = 'internal scratch']
  %s0 = inlined_call_operand.vmem [shape: bf16[128,128], index: 0, kind: input, shape index: {}]
  %s1 = inlined_call_operand.vmem [shape: bf16[128,128], index: 1, kind: input, shape index: {}]
  %s2 = inlined_call_operand.vmem [shape: f32[128,1], index: 2, kind: input, shape index: {}]
  %s3 = inlined_call_operand.vmem [shape: bf16[1,128,128], index: 3, kind: input, shape index: {}]
  %s4 = inlined_call_operand.vmem [shape: f32[1,8,128], index: 4, kind: input, shape index: {}]
  %s5 = inlined_call_operand.vmem [shape: bf16[6,128,128], index: 5, kind: input, shape index: {}]
  %s6 = inlined_call_operand.vmem [shape: f32[6,128], index: 6, kind: input, shape index: {}]
  %s7 = inlined_call_operand.vmem [shape: bf16[3,256,256], index: 7, kind: input, shape index: {}]
  %s8 = inlined_call_operand.vmem [shape: f32[3,8,256], index: 8, kind: input, shape index: {}]
  %s9 = inlined_call_operand.vmem [shape: f32[1,24,128], index: 9, kind: output, shape index: {}]
  %s10 = sld [smem:[#allocation0]]
  $region46: #{_forward_impl.1} parent=0
    _
  %s12 = ssub.s32 1, %s10
  %s13 = scalar_select 0, %s12, %s10
  // Predicated region
  $region2: #{_forward_impl.1} parent=0 // pred_check
    _
  $region3: #{_forward_impl.1} parent=0 // pred_check_branch
    %15 = sbr.rel (0) target = $region5
  $region4: #{_forward_impl.1} parent=0 // pred_region
    _
  $region5: #{_forward_impl.1} parent=0 // pred_fallthru
    _
  // Predicated region
  $region6: #{_forward_impl.1} parent=0 // pred_check
    _
  $region7: #{_forward_impl.1} parent=0 // pred_check_branch
    %17 = sbr.rel (0) target = $region9
  $region8: #{_forward_impl.1} parent=0 // pred_region
    _
  $region9: #{_forward_impl.1} parent=0 // pred_fallthru
    _
  // Predicated region
  $region10: #{_forward_impl.1} parent=0 // pred_check
    _
  $region11: #{_forward_impl.1} parent=0 // pred_check_branch
    %19 = sbr.rel (0) target = $region13
  $region12: #{_forward_impl.1} parent=0 // pred_region
    _
  $region13: #{_forward_impl.1} parent=0 // pred_fallthru
    _
  // Predicated region
  $region14: #{_forward_impl.1} parent=0 // pred_check
    _
  $region15: #{_forward_impl.1} parent=0 // pred_check_branch
    %21 = sbr.rel (0) target = $region17
  $region16: #{_forward_impl.1} parent=0 // pred_region
    _
  $region17: #{_forward_impl.1} parent=0 // pred_fallthru
    _
  // Predicated region
  $region18: #{_forward_impl.1} parent=0 // pred_check
    _
  $region19: #{_forward_impl.1} parent=0 // pred_check_branch
    %23 = sbr.rel (0) target = $region21
  $region20: #{_forward_impl.1} parent=0 // pred_region
    _
  $region21: #{_forward_impl.1} parent=0 // pred_fallthru
    _
  // Predicated region
  $region22: #{_forward_impl.1} parent=0 // pred_check
    _
  $region23: #{_forward_impl.1} parent=0 // pred_check_branch
    %25 = sbr.rel (0) target = $region25
  $region24: #{_forward_impl.1} parent=0 // pred_region
    _
  $region25: #{_forward_impl.1} parent=0 // pred_fallthru
    _
  // Predicated region
  $region26: #{_forward_impl.1} parent=0 // pred_check
    _
  $region27: #{_forward_impl.1} parent=0 // pred_check_branch
    %27 = sbr.rel (0) target = $region29
  $region28: #{_forward_impl.1} parent=0 // pred_region
    _
  $region29: #{_forward_impl.1} parent=0 // pred_fallthru
    _
  // Predicated region
  $region30: #{_forward_impl.1} parent=0 // pred_check
    _
  $region31: #{_forward_impl.1} parent=0 // pred_check_branch
    %29 = sbr.rel (0) target = $region33
  $region32: #{_forward_impl.1} parent=0 // pred_region
    _
  $region33: #{_forward_impl.1} parent=0 // pred_fallthru
    _
  // Predicated region
  $region34: #{_forward_impl.1} parent=0 // pred_check
    _
  $region35: #{_forward_impl.1} parent=0 // pred_check_branch
    %31 = sbr.rel (0) target = $region37
  $region36: #{_forward_impl.1} parent=0 // pred_region
    _
  $region37: #{_forward_impl.1} parent=0 // pred_fallthru
    _
  %v33 = vld [vmem:[%s0] sm:$0xf]
  %v34 = vld [vmem:[%s0 + $0x4] sm:$0xf]
  %v35 = vld [vmem:[%s0 + $0x8] sm:$0xf]
  %v36 = vld [vmem:[%s0 + $0xc] sm:$0xf]
  %v37 = vld [vmem:[%s0 + $0x10] sm:$0xf]
  %v38 = vld [vmem:[%s0 + $0x14] sm:$0xf]
  %v39 = vld [vmem:[%s0 + $0x18] sm:$0xf]
  %v40 = vld [vmem:[%s0 + $0x1c] sm:$0xf]
  %v41 = vld [vmem:[%s0 + $0x20] sm:$0xf]
  %v42 = vld [vmem:[%s0 + $0x24] sm:$0xf]
  %v43 = vld [vmem:[%s0 + $0x28] sm:$0xf]
  %v44 = vld [vmem:[%s0 + $0x2c] sm:$0xf]
  %v45 = vld [vmem:[%s0 + $0x30] sm:$0xf]
  %v46 = vld [vmem:[%s0 + $0x34] sm:$0xf]
  %v47 = vld [vmem:[%s0 + $0x38] sm:$0xf]
  %v48 = vld [vmem:[%s0 + $0x3c] sm:$0xf]
  %v49 = vld [vmem:[%s1] sm:$0xf]
  %v50 = vld [vmem:[%s1 + $0x4] sm:$0xf]
  %v51 = vld [vmem:[%s1 + $0x8] sm:$0xf]
  %v52 = vld [vmem:[%s1 + $0xc] sm:$0xf]
  %v53 = vld [vmem:[%s1 + $0x10] sm:$0xf]
  %v54 = vld [vmem:[%s1 + $0x14] sm:$0xf]
  %v55 = vld [vmem:[%s1 + $0x18] sm:$0xf]
  %v56 = vld [vmem:[%s1 + $0x1c] sm:$0xf]
  %v57 = vld [vmem:[%s1 + $0x20] sm:$0xf]
  %v58 = vld [vmem:[%s1 + $0x24] sm:$0xf]
  %v59 = vld [vmem:[%s1 + $0x28] sm:$0xf]
  %v60 = vld [vmem:[%s1 + $0x2c] sm:$0xf]
  %v61 = vld [vmem:[%s1 + $0x30] sm:$0xf]
  %v62 = vld [vmem:[%s1 + $0x34] sm:$0xf]
  %v63 = vld [vmem:[%s1 + $0x38] sm:$0xf]
  %v64 = vld [vmem:[%s1 + $0x3c] sm:$0xf]
  %v65 = vld [vmem:[%s2] sm:$0xff]
  %v66 = vld [vmem:[%s2 + $0x8] sm:$0xff]
  %v67 = vld [vmem:[%s2 + $0x10] sm:$0xff]
  %v68 = vld [vmem:[%s2 + $0x18] sm:$0xff]
  %v69 = vld [vmem:[%s2 + $0x20] sm:$0xff]
  %v70 = vld [vmem:[%s2 + $0x28] sm:$0xff]
  %v71 = vld [vmem:[%s2 + $0x30] sm:$0xff]
  %v72 = vld [vmem:[%s2 + $0x38] sm:$0xff]
  %v73 = vld [vmem:[%s2 + $0x40] sm:$0xff]
  %v74 = vld [vmem:[%s2 + $0x48] sm:$0xff]
  %v75 = vld [vmem:[%s2 + $0x50] sm:$0xff]
  %v76 = vld [vmem:[%s2 + $0x58] sm:$0xff]
  %v77 = vld [vmem:[%s2 + $0x60] sm:$0xff]
  %v78 = vld [vmem:[%s2 + $0x68] sm:$0xff]
  %v79 = vld [vmem:[%s2 + $0x70] sm:$0xff]
  %v80 = vld [vmem:[%s2 + $0x78] sm:$0xff]
  %v81 = vld [vmem:[%s3] sm:$0xf]
  %v82 = vld [vmem:[%s3 + $0x4] sm:$0xf]
  %v83 = vld [vmem:[%s3 + $0x8] sm:$0xf]
  %v84 = vld [vmem:[%s3 + $0xc] sm:$0xf]
  %v85 = vld [vmem:[%s3 + $0x10] sm:$0xf]
  %v86 = vld [vmem:[%s3 + $0x14] sm:$0xf]
  %v87 = vld [vmem:[%s3 + $0x18] sm:$0xf]
  %v88 = vld [vmem:[%s3 + $0x1c] sm:$0xf]
  %v89 = vld [vmem:[%s3 + $0x20] sm:$0xf]
  %v90 = vld [vmem:[%s3 + $0x24] sm:$0xf]
  %v91 = vld [vmem:[%s3 + $0x28] sm:$0xf]
  %v92 = vld [vmem:[%s3 + $0x2c] sm:$0xf]
  %v93 = vld [vmem:[%s3 + $0x30] sm:$0xf]
  %v94 = vld [vmem:[%s3 + $0x34] sm:$0xf]
  %v95 = vld [vmem:[%s3 + $0x38] sm:$0xf]
  %v96 = vld [vmem:[%s3 + $0x3c] sm:$0xf]
  %v97 = vld [vmem:[%s4] sm:$0xff]
  %v98 = vld [vmem:[%s6] sm:$0x3f]
  %v99 = vld [vmem:[%s5] sm:$0xf]
  %v100 = vld [vmem:[%s5 + $0x4] sm:$0xf]
  %v101 = vld [vmem:[%s5 + $0x8] sm:$0xf]
  %v102 = vld [vmem:[%s5 + $0xc] sm:$0xf]
  %v103 = vld [vmem:[%s5 + $0x10] sm:$0xf]
  %v104 = vld [vmem:[%s5 + $0x14] sm:$0xf]
  %v105 = vld [vmem:[%s5 + $0x18] sm:$0xf]
  %v106 = vld [vmem:[%s5 + $0x1c] sm:$0xf]
  %v107 = vld [vmem:[%s5 + $0x20] sm:$0xf]
  %v108 = vld [vmem:[%s5 + $0x24] sm:$0xf]
  %v109 = vld [vmem:[%s5 + $0x28] sm:$0xf]
  %v110 = vld [vmem:[%s5 + $0x2c] sm:$0xf]
  %v111 = vld [vmem:[%s5 + $0x30] sm:$0xf]
  %v112 = vld [vmem:[%s5 + $0x34] sm:$0xf]
  %v113 = vld [vmem:[%s5 + $0x38] sm:$0xf]
  %v114 = vld [vmem:[%s5 + $0x3c] sm:$0xf]
  %s115 = scalar_lea.vmem %s5, 64
  %v116 = vld [vmem:[%s115] sm:$0xf]
  %v117 = vld [vmem:[%s115 + $0x4] sm:$0xf]
  %v118 = vld [vmem:[%s115 + $0x8] sm:$0xf]
  %v119 = vld [vmem:[%s115 + $0xc] sm:$0xf]
  %v120 = vld [vmem:[%s115 + $0x10] sm:$0xf]
  %v121 = vld [vmem:[%s115 + $0x14] sm:$0xf]
  %v122 = vld [vmem:[%s115 + $0x18] sm:$0xf]
  %v123 = vld [vmem:[%s115 + $0x1c] sm:$0xf]
  %v124 = vld [vmem:[%s115 + $0x20] sm:$0xf]
  %v125 = vld [vmem:[%s115 + $0x24] sm:$0xf]
  %v126 = vld [vmem:[%s115 + $0x28] sm:$0xf]
  %v127 = vld [vmem:[%s115 + $0x2c] sm:$0xf]
  %v128 = vld [vmem:[%s115 + $0x30] sm:$0xf]
  %v129 = vld [vmem:[%s115 + $0x34] sm:$0xf]
  %v130 = vld [vmem:[%s115 + $0x38] sm:$0xf]
  %v131 = vld [vmem:[%s115 + $0x3c] sm:$0xf]
  %v148 = vunpack.c.l.b16 %v81
  %v149 = vunpack.c.l.b16 %v82
  %v150 = vunpack.c.l.b16 %v83
  %v151 = vunpack.c.l.b16 %v84
  %v152 = vunpack.c.l.b16 %v85
  %v153 = vunpack.c.l.b16 %v86
  %v154 = vunpack.c.l.b16 %v87
  %v155 = vunpack.c.l.b16 %v88
  %v156 = vunpack.c.l.b16 %v89
  %v157 = vunpack.c.l.b16 %v90
  %v158 = vunpack.c.l.b16 %v91
  %v159 = vunpack.c.l.b16 %v92
  %v160 = vunpack.c.l.b16 %v93
  %v161 = vunpack.c.l.b16 %v94
  %v162 = vunpack.c.l.b16 %v95
  %v163 = vunpack.c.l.b16 %v96
  %v164 = vpack.c.b16 %v149, %v148
  %v165 = vpack.c.b16 %v151, %v150
  %v166 = vpack.c.b16 %v153, %v152
  %v167 = vpack.c.b16 %v155, %v154
  %v168 = vpack.c.b16 %v157, %v156
  %v169 = vpack.c.b16 %v159, %v158
  %v170 = vpack.c.b16 %v161, %v160
  %v171 = vpack.c.b16 %v163, %v162
  %v196 = vunpack.c.l.b16 %v99
  %v197 = vunpack.c.l.b16 %v100
  %v198 = vunpack.c.l.b16 %v101
  %v199 = vunpack.c.l.b16 %v102
  %v200 = vunpack.c.l.b16 %v103
  %v201 = vunpack.c.l.b16 %v104
  %v202 = vunpack.c.l.b16 %v105
  %v203 = vunpack.c.l.b16 %v106
  %v204 = vunpack.c.l.b16 %v107
  %v205 = vunpack.c.l.b16 %v108
  %v206 = vunpack.c.l.b16 %v109
  %v207 = vunpack.c.l.b16 %v110
  %v208 = vunpack.c.l.b16 %v111
  %v209 = vunpack.c.l.b16 %v112
  %v210 = vunpack.c.l.b16 %v113
  %v211 = vunpack.c.l.b16 %v114
  %v212 = vpack.c.b16 %v197, %v196
  %v213 = vpack.c.b16 %v199, %v198
  %v214 = vpack.c.b16 %v201, %v200
  %v215 = vpack.c.b16 %v203, %v202
  %v216 = vpack.c.b16 %v205, %v204
  %v217 = vpack.c.b16 %v207, %v206
  %v218 = vpack.c.b16 %v209, %v208
  %v219 = vpack.c.b16 %v211, %v210
  %228 = vmatprep.subr.bf16.mxu0 0
  %229 = vmatpush1.bf16.msra.mxu0 %v212
  %230 = vmatprep.subr.bf16.mxu0 0
  %231 = vmatpush1.bf16.msra.mxu0 %v213
  %232 = vmatprep.subr.bf16.mxu0 0
  %233 = vmatpush1.bf16.msra.mxu0 %v214
  %234 = vmatprep.subr.bf16.mxu0 0
  %235 = vmatpush1.bf16.msra.mxu0 %v215
  %236 = vmatprep.subr.bf16.mxu0 0
  %237 = vmatpush1.bf16.msra.mxu0 %v216
  %238 = vmatprep.subr.bf16.mxu0 0
  %239 = vmatpush1.bf16.msra.mxu0 %v217
  %240 = vmatprep.subr.bf16.mxu0 0
  %241 = vmatpush1.bf16.msra.mxu0 %v218
  %242 = vmatprep.subr.bf16.mxu0 0
  %243 = vmatpush1.bf16.msra.mxu0 %v219
  %244 = vmatprep.subr.bf16.mxu0 0
  %245 = vmatpush1.bf16.msra.mxu0 0
  %246 = vmatprep.subr.bf16.mxu0 0
  %247 = vmatpush1.bf16.msra.mxu0 0
  %248 = vmatprep.subr.bf16.mxu0 0
  %249 = vmatpush1.bf16.msra.mxu0 0
  %250 = vmatprep.subr.bf16.mxu0 0
  %251 = vmatpush1.bf16.msra.mxu0 0
  %252 = vmatprep.subr.bf16.mxu0 0
  %253 = vmatpush1.bf16.msra.mxu0 0
  %254 = vmatprep.subr.bf16.mxu0 0
  %255 = vmatpush1.bf16.msra.mxu0 0
  %256 = vmatprep.subr.bf16.mxu0 0
  %257 = vmatpush1.bf16.msra.mxu0 0
  %258 = vmatprep.subr.bf16.mxu0 0
  %259 = vmatpush1.bf16.msra.mxu0 0
  %260 = vmatprep.mubr.bf16.mxu0 0
  %261 = vmatmul.mubr.bf16.gmra.mrb[0].mxu0 %v164
  %v262 = vpop.f32.mrb[0].mxu0
  %v263 = vadd.f32 0.0, %v262
  %v264 = vpop.f32.mrb[0].mxu0
  %v265 = vpop.f32.mrb[0].mxu0
  %v266 = vadd.f32 0.0, %v265
  %v267 = vpop.f32.mrb[0].mxu0
  %268 = vmatprep.mubr.bf16.mxu0 0
  %269 = vmatmul.mubr.bf16.gmra.mrb[0].mxu0 %v165
  %v270 = vpop.f32.mrb[0].mxu0
  %v271 = vadd.f32 0.0, %v270
  %v272 = vpop.f32.mrb[0].mxu0
  %v273 = vpop.f32.mrb[0].mxu0
  %v274 = vadd.f32 0.0, %v273
  %v275 = vpop.f32.mrb[0].mxu0
  %276 = vmatprep.mubr.bf16.mxu0 0
  %277 = vmatmul.mubr.bf16.gmra.mrb[0].mxu0 %v166
  %v278 = vpop.f32.mrb[0].mxu0
  %v279 = vadd.f32 0.0, %v278
  %v280 = vpop.f32.mrb[0].mxu0
  %v281 = vpop.f32.mrb[0].mxu0
  %v282 = vadd.f32 0.0, %v281
  %v283 = vpop.f32.mrb[0].mxu0
  %284 = vmatprep.mubr.bf16.mxu0 0
  %285 = vmatmul.mubr.bf16.gmra.mrb[0].mxu0 %v167
  %v286 = vpop.f32.mrb[0].mxu0
  %v287 = vadd.f32 0.0, %v286
  %v288 = vpop.f32.mrb[0].mxu0
  %v289 = vpop.f32.mrb[0].mxu0
  %v290 = vadd.f32 0.0, %v289
  %v291 = vpop.f32.mrb[0].mxu0
  %292 = vmatprep.mubr.bf16.mxu0 0
  %293 = vmatmul.mubr.bf16.gmra.mrb[0].mxu0 %v168
  %v294 = vpop.f32.mrb[0].mxu0
  %v295 = vadd.f32 0.0, %v294
  %v296 = vpop.f32.mrb[0].mxu0
  %v297 = vpop.f32.mrb[0].mxu0
  %v298 = vadd.f32 0.0, %v297
  %v299 = vpop.f32.mrb[0].mxu0
  %300 = vmatprep.mubr.bf16.mxu0 0
  %301 = vmatmul.mubr.bf16.gmra.mrb[0].mxu0 %v169
  %v302 = vpop.f32.mrb[0].mxu0
  %v303 = vadd.f32 0.0, %v302
  %v304 = vpop.f32.mrb[0].mxu0
  %v305 = vpop.f32.mrb[0].mxu0
  %v306 = vadd.f32 0.0, %v305
  %v307 = vpop.f32.mrb[0].mxu0
  %308 = vmatprep.mubr.bf16.mxu0 0
  %309 = vmatmul.mubr.bf16.gmra.mrb[0].mxu0 %v170
  %v310 = vpop.f32.mrb[0].mxu0
  %v311 = vadd.f32 0.0, %v310
  %v312 = vpop.f32.mrb[0].mxu0
  %v313 = vpop.f32.mrb[0].mxu0
  %v314 = vadd.f32 0.0, %v313
  %v315 = vpop.f32.mrb[0].mxu0
  %316 = vmatprep.mubr.bf16.mxu0 0
  %317 = vmatmul.mubr.bf16.gmra.mrb[0].mxu0 %v171
  %v318 = vpop.f32.mrb[0].mxu0
  %v319 = vadd.f32 0.0, %v318
  %v320 = vpop.f32.mrb[0].mxu0
  %v321 = vpop.f32.mrb[0].mxu0
  %v322 = vadd.f32 0.0, %v321
  %v323 = vpop.f32.mrb[0].mxu0
  %324 = vdwg.mxu0
  %v325 = vpack.c.bf16 %v266, %v263
  %v326 = vpack.c.bf16 %v274, %v271
  %v327 = vpack.c.bf16 %v282, %v279
  %v328 = vpack.c.bf16 %v290, %v287
  %v329 = vpack.c.bf16 %v298, %v295
  %v330 = vpack.c.bf16 %v306, %v303
  %v331 = vpack.c.bf16 %v314, %v311
  %v332 = vpack.c.bf16 %v322, %v319
  %v349 = vunpack.c.l.b16 %v116
  %v350 = vunpack.c.l.b16 %v117
  %v351 = vunpack.c.l.b16 %v118
  %v352 = vunpack.c.l.b16 %v119
  %v353 = vunpack.c.l.b16 %v120
  %v354 = vunpack.c.l.b16 %v121
  %v355 = vunpack.c.l.b16 %v122
  %v356 = vunpack.c.l.b16 %v123
  %v357 = vunpack.c.l.b16 %v124
  %v358 = vunpack.c.l.b16 %v125
  %v359 = vunpack.c.l.b16 %v126
  %v360 = vunpack.c.l.b16 %v127
  %v361 = vunpack.c.l.b16 %v128
  %v362 = vunpack.c.l.b16 %v129
  %v363 = vunpack.c.l.b16 %v130
  %v364 = vunpack.c.l.b16 %v131
  %v365 = vpack.c.b16 %v350, %v349
  %v366 = vpack.c.b16 %v352, %v351
  %v367 = vpack.c.b16 %v354, %v353
  %v368 = vpack.c.b16 %v356, %v355
  %v369 = vpack.c.b16 %v358, %v357
  %v370 = vpack.c.b16 %v360, %v359
  %v371 = vpack.c.b16 %v362, %v361
  %v372 = vpack.c.b16 %v364, %v363
  %381 = vmatprep.subr.bf16.mxu0 0
  %382 = vmatpush1.bf16.msra.mxu0 %v365
  %383 = vmatprep.subr.bf16.mxu0 0
  %384 = vmatpush1.bf16.msra.mxu0 %v366
  %385 = vmatprep.subr.bf16.mxu0 0
  %386 = vmatpush1.bf16.msra.mxu0 %v367
  %387 = vmatprep.subr.bf16.mxu0 0
  %388 = vmatpush1.bf16.msra.mxu0 %v368
  %389 = vmatprep.subr.bf16.mxu0 0
  %390 = vmatpush1.bf16.msra.mxu0 %v369
  %391 = vmatprep.subr.bf16.mxu0 0
  %392 = vmatpush1.bf16.msra.mxu0 %v370
  %393 = vmatprep.subr.bf16.mxu0 0
  %394 = vmatpush1.bf16.msra.mxu0 %v371
  %395 = vmatprep.subr.bf16.mxu0 0
  %396 = vmatpush1.bf16.msra.mxu0 %v372
  %397 = vmatprep.subr.bf16.mxu0 0
  %398 = vmatpush1.bf16.msra.mxu0 0
  %399 = vmatprep.subr.bf16.mxu0 0
  %400 = vmatpush1.bf16.msra.mxu0 0
  %401 = vmatprep.subr.bf16.mxu0 0
  %402 = vmatpush1.bf16.msra.mxu0 0
  %403 = vmatprep.subr.bf16.mxu0 0
  %404 = vmatpush1.bf16.msra.mxu0 0
  %405 = vmatprep.subr.bf16.mxu0 0
  %406 = vmatpush1.bf16.msra.mxu0 0
  %407 = vmatprep.subr.bf16.mxu0 0
  %408 = vmatpush1.bf16.msra.mxu0 0
  %409 = vmatprep.subr.bf16.mxu0 0
  %410 = vmatpush1.bf16.msra.mxu0 0
  %411 = vmatprep.subr.bf16.mxu0 0
  %412 = vmatpush1.bf16.msra.mxu0 0
  %413 = vmatprep.mubr.bf16.mxu0 0
  %414 = vmatmul.mubr.bf16.gmra.mrb[0].mxu0 %v164
  %v415 = vpop.f32.mrb[0].mxu0
  %v416 = vadd.f32 0.0, %v415
  %v417 = vpop.f32.mrb[0].mxu0
  %v418 = vpop.f32.mrb[0].mxu0
  %v419 = vadd.f32 0.0, %v418
  %v420 = vpop.f32.mrb[0].mxu0
  %421 = vmatprep.mubr.bf16.mxu0 0
  %422 = vmatmul.mubr.bf16.gmra.mrb[0].mxu0 %v165
  %v423 = vpop.f32.mrb[0].mxu0
  %v424 = vadd.f32 0.0, %v423
  %v425 = vpop.f32.mrb[0].mxu0
  %v426 = vpop.f32.mrb[0].mxu0
  %v427 = vadd.f32 0.0, %v426
  %v428 = vpop.f32.mrb[0].mxu0
  %429 = vmatprep.mubr.bf16.mxu0 0
  %430 = vmatmul.mubr.bf16.gmra.mrb[0].mxu0 %v166
  %v431 = vpop.f32.mrb[0].mxu0
  %v432 = vadd.f32 0.0, %v431
  %v433 = vpop.f32.mrb[0].mxu0
  %v434 = vpop.f32.mrb[0].mxu0
  %v435 = vadd.f32 0.0, %v434
  %v436 = vpop.f32.mrb[0].mxu0
  %437 = vmatprep.mubr.bf16.mxu0 0
  %438 = vmatmul.mubr.bf16.gmra.mrb[0].mxu0 %v167
  %v439 = vpop.f32.mrb[0].mxu0
  %v440 = vadd.f32 0.0, %v439
  %v441 = vpop.f32.mrb[0].mxu0
  %v442 = vpop.f32.mrb[0].mxu0
  %v443 = vadd.f32 0.0, %v442
  %v444 = vpop.f32.mrb[0].mxu0
  %445 = vmatprep.mubr.bf16.mxu0 0
  %446 = vmatmul.mubr.bf16.gmra.mrb[0].mxu0 %v168
  %v447 = vpop.f32.mrb[0].mxu0
  %v448 = vadd.f32 0.0, %v447
  %v449 = vpop.f32.mrb[0].mxu0
  %v450 = vpop.f32.mrb[0].mxu0
  %v451 = vadd.f32 0.0, %v450
  %v452 = vpop.f32.mrb[0].mxu0
  %453 = vmatprep.mubr.bf16.mxu0 0
  %454 = vmatmul.mubr.bf16.gmra.mrb[0].mxu0 %v169
  %v455 = vpop.f32.mrb[0].mxu0
  %v456 = vadd.f32 0.0, %v455
  %v457 = vpop.f32.mrb[0].mxu0
  %v458 = vpop.f32.mrb[0].mxu0
  %v459 = vadd.f32 0.0, %v458
  %v460 = vpop.f32.mrb[0].mxu0
  %461 = vmatprep.mubr.bf16.mxu0 0
  %462 = vmatmul.mubr.bf16.gmra.mrb[0].mxu0 %v170
  %v463 = vpop.f32.mrb[0].mxu0
  %v464 = vadd.f32 0.0, %v463
  %v465 = vpop.f32.mrb[0].mxu0
  %v466 = vpop.f32.mrb[0].mxu0
  %v467 = vadd.f32 0.0, %v466
  %v468 = vpop.f32.mrb[0].mxu0
  %469 = vmatprep.mubr.bf16.mxu0 0
  %470 = vmatmul.mubr.bf16.gmra.mrb[0].mxu0 %v171
  %v471 = vpop.f32.mrb[0].mxu0
  %v472 = vadd.f32 0.0, %v471
  %v473 = vpop.f32.mrb[0].mxu0
  %v474 = vpop.f32.mrb[0].mxu0
  %v475 = vadd.f32 0.0, %v474
  %v476 = vpop.f32.mrb[0].mxu0
  %477 = vdwg.mxu0
  %v478 = vpack.c.bf16 %v419, %v416
  %v479 = vpack.c.bf16 %v427, %v424
  %v480 = vpack.c.bf16 %v435, %v432
  %v481 = vpack.c.bf16 %v443, %v440
  %v482 = vpack.c.bf16 %v451, %v448
  %v483 = vpack.c.bf16 %v459, %v456
  %v484 = vpack.c.bf16 %v467, %v464
  %v485 = vpack.c.bf16 %v475, %v472
  %v486 = vlaneseq
  %v487 = vshrl.u32 %v486, 7
  %v488 = vsub.s32 0, %v487
  %v489 = vrot.slane %v98, %v488
  %v506 = vunpack.c.l.b16 %v33
  %v507 = vunpack.c.l.b16 %v34
  %v508 = vunpack.c.l.b16 %v35
  %v509 = vunpack.c.l.b16 %v36
  %v510 = vunpack.c.l.b16 %v37
  %v511 = vunpack.c.l.b16 %v38
  %v512 = vunpack.c.l.b16 %v39
  %v513 = vunpack.c.l.b16 %v40
  %v514 = vunpack.c.l.b16 %v41
  %v515 = vunpack.c.l.b16 %v42
  %v516 = vunpack.c.l.b16 %v43
  %v517 = vunpack.c.l.b16 %v44
  %v518 = vunpack.c.l.b16 %v45
  %v519 = vunpack.c.l.b16 %v46
  %v520 = vunpack.c.l.b16 %v47
  %v521 = vunpack.c.l.b16 %v48
  %v522 = vpack.c.b16 %v507, %v506
  %v523 = vpack.c.b16 %v509, %v508
  %v524 = vpack.c.b16 %v511, %v510
  %v525 = vpack.c.b16 %v513, %v512
  %v526 = vpack.c.b16 %v515, %v514
  %v527 = vpack.c.b16 %v517, %v516
  %v528 = vpack.c.b16 %v519, %v518
  %v529 = vpack.c.b16 %v521, %v520
  %538 = vmatprep.subr.bf16.mxu0 0
  %539 = vmatpush1.bf16.msra.mxu0 %v325
  %540 = vmatprep.subr.bf16.mxu0 0
  %541 = vmatpush1.bf16.msra.mxu0 %v326
  %542 = vmatprep.subr.bf16.mxu0 0
  %543 = vmatpush1.bf16.msra.mxu0 %v327
  %544 = vmatprep.subr.bf16.mxu0 0
  %545 = vmatpush1.bf16.msra.mxu0 %v328
  %546 = vmatprep.subr.bf16.mxu0 0
  %547 = vmatpush1.bf16.msra.mxu0 %v329
  %548 = vmatprep.subr.bf16.mxu0 0
  %549 = vmatpush1.bf16.msra.mxu0 %v330
  %550 = vmatprep.subr.bf16.mxu0 0
  %551 = vmatpush1.bf16.msra.mxu0 %v331
  %552 = vmatprep.subr.bf16.mxu0 0
  %553 = vmatpush1.bf16.msra.mxu0 %v332
  %554 = vmatprep.subr.bf16.mxu0 0
  %555 = vmatpush1.bf16.msra.mxu0 0
  %556 = vmatprep.subr.bf16.mxu0 0
  %557 = vmatpush1.bf16.msra.mxu0 0
  %558 = vmatprep.subr.bf16.mxu0 0
  %559 = vmatpush1.bf16.msra.mxu0 0
  %560 = vmatprep.subr.bf16.mxu0 0
  %561 = vmatpush1.bf16.msra.mxu0 0
  %562 = vmatprep.subr.bf16.mxu0 0
  %563 = vmatpush1.bf16.msra.mxu0 0
  %564 = vmatprep.subr.bf16.mxu0 0
  %565 = vmatpush1.bf16.msra.mxu0 0
  %566 = vmatprep.subr.bf16.mxu0 0
  %567 = vmatpush1.bf16.msra.mxu0 0
  %568 = vmatprep.subr.bf16.mxu0 0
  %569 = vmatpush1.bf16.msra.mxu0 0
  %570 = vmatprep.mubr.bf16.mxu0 0
  %571 = vmatmul.mubr.bf16.gmra.mrb[0].mxu0 %v522
  %v572 = vpop.f32.mrb[0].mxu0
  %v573 = vadd.f32 %v489, %v572
  %v574 = vpop.f32.mrb[0].mxu0
  %v575 = vpop.f32.mrb[0].mxu0
  %v576 = vadd.f32 %v489, %v575
  %v577 = vpop.f32.mrb[0].mxu0
  %578 = vmatprep.mubr.bf16.mxu0 0
  %579 = vmatmul.mubr.bf16.gmra.mrb[0].mxu0 %v523
  %v580 = vpop.f32.mrb[0].mxu0
  %v581 = vadd.f32 %v489, %v580
  %v582 = vpop.f32.mrb[0].mxu0
  %v583 = vpop.f32.mrb[0].mxu0
  %v584 = vadd.f32 %v489, %v583
  %v585 = vpop.f32.mrb[0].mxu0
  %586 = vmatprep.mubr.bf16.mxu0 0
  %587 = vmatmul.mubr.bf16.gmra.mrb[0].mxu0 %v524
  %v588 = vpop.f32.mrb[0].mxu0
  %v589 = vadd.f32 %v489, %v588
  %v590 = vpop.f32.mrb[0].mxu0
  %v591 = vpop.f32.mrb[0].mxu0
  %v592 = vadd.f32 %v489, %v591
  %v593 = vpop.f32.mrb[0].mxu0
  %594 = vmatprep.mubr.bf16.mxu0 0
  %595 = vmatmul.mubr.bf16.gmra.mrb[0].mxu0 %v525
  %v596 = vpop.f32.mrb[0].mxu0
  %v597 = vadd.f32 %v489, %v596
  %v598 = vpop.f32.mrb[0].mxu0
  %v599 = vpop.f32.mrb[0].mxu0
  %v600 = vadd.f32 %v489, %v599
  %v601 = vpop.f32.mrb[0].mxu0
  %602 = vmatprep.mubr.bf16.mxu0 0
  %603 = vmatmul.mubr.bf16.gmra.mrb[0].mxu0 %v526
  %v604 = vpop.f32.mrb[0].mxu0
  %v605 = vadd.f32 %v489, %v604
  %v606 = vpop.f32.mrb[0].mxu0
  %v607 = vpop.f32.mrb[0].mxu0
  %v608 = vadd.f32 %v489, %v607
  %v609 = vpop.f32.mrb[0].mxu0
  %610 = vmatprep.mubr.bf16.mxu0 0
  %611 = vmatmul.mubr.bf16.gmra.mrb[0].mxu0 %v527
  %v612 = vpop.f32.mrb[0].mxu0
  %v613 = vadd.f32 %v489, %v612
  %v614 = vpop.f32.mrb[0].mxu0
  %v615 = vpop.f32.mrb[0].mxu0
  %v616 = vadd.f32 %v489, %v615
  %v617 = vpop.f32.mrb[0].mxu0
  %618 = vmatprep.mubr.bf16.mxu0 0
  %619 = vmatmul.mubr.bf16.gmra.mrb[0].mxu0 %v528
  %v620 = vpop.f32.mrb[0].mxu0
  %v621 = vadd.f32 %v489, %v620
  %v622 = vpop.f32.mrb[0].mxu0
  %v623 = vpop.f32.mrb[0].mxu0
  %v624 = vadd.f32 %v489, %v623
  %v625 = vpop.f32.mrb[0].mxu0
  %626 = vmatprep.mubr.bf16.mxu0 0
  %627 = vmatmul.mubr.bf16.gmra.mrb[0].mxu0 %v529
  %v628 = vpop.f32.mrb[0].mxu0
  %v629 = vadd.f32 %v489, %v628
  %v630 = vpop.f32.mrb[0].mxu0
  %v631 = vpop.f32.mrb[0].mxu0
  %v632 = vadd.f32 %v489, %v631
  %v633 = vpop.f32.mrb[0].mxu0
  %634 = vdwg.mxu0
  %v635 = vmax.f32 %v573, 0.0
  %v636 = vmax.f32 %v576, 0.0
  %v637 = vmax.f32 %v581, 0.0
  %v638 = vmax.f32 %v584, 0.0
  %v639 = vmax.f32 %v589, 0.0
  %v640 = vmax.f32 %v592, 0.0
  %v641 = vmax.f32 %v597, 0.0
  %v642 = vmax.f32 %v600, 0.0
  %v643 = vmax.f32 %v605, 0.0
  %v644 = vmax.f32 %v608, 0.0
  %v645 = vmax.f32 %v613, 0.0
  %v646 = vmax.f32 %v616, 0.0
  %v647 = vmax.f32 %v621, 0.0
  %v648 = vmax.f32 %v624, 0.0
  %v649 = vmax.f32 %v629, 0.0
  %v650 = vmax.f32 %v632, 0.0
  %v651 = vpack.c.bf16 %v636, %v635
  %v652 = vpack.c.bf16 %v638, %v637
  %v653 = vpack.c.bf16 %v640, %v639
  %v654 = vpack.c.bf16 %v642, %v641
  %v655 = vpack.c.bf16 %v644, %v643
  %v656 = vpack.c.bf16 %v646, %v645
  %v657 = vpack.c.bf16 %v648, %v647
  %v658 = vpack.c.bf16 %v650, %v649
  %v659 = vlaneseq
  %v660 = vshrl.u32 %v659, 7
  %v661 = vsub.s32 1, %v660
  %v662 = vrot.slane %v98, %v661
  %v679 = vunpack.c.l.b16 %v49
  %v680 = vunpack.c.l.b16 %v50
  %v681 = vunpack.c.l.b16 %v51
  %v682 = vunpack.c.l.b16 %v52
  %v683 = vunpack.c.l.b16 %v53
  %v684 = vunpack.c.l.b16 %v54
  %v685 = vunpack.c.l.b16 %v55
  %v686 = vunpack.c.l.b16 %v56
  %v687 = vunpack.c.l.b16 %v57
  %v688 = vunpack.c.l.b16 %v58
  %v689 = vunpack.c.l.b16 %v59
  %v690 = vunpack.c.l.b16 %v60
  %v691 = vunpack.c.l.b16 %v61
  %v692 = vunpack.c.l.b16 %v62
  %v693 = vunpack.c.l.b16 %v63
  %v694 = vunpack.c.l.b16 %v64
  %v695 = vpack.c.b16 %v680, %v679
  %v696 = vpack.c.b16 %v682, %v681
  %v697 = vpack.c.b16 %v684, %v683
  %v698 = vpack.c.b16 %v686, %v685
  %v699 = vpack.c.b16 %v688, %v687
  %v700 = vpack.c.b16 %v690, %v689
  %v701 = vpack.c.b16 %v692, %v691
  %v702 = vpack.c.b16 %v694, %v693
  %711 = vmatprep.subr.bf16.mxu0 0
  %712 = vmatpush1.bf16.msra.mxu0 %v478
  %713 = vmatprep.subr.bf16.mxu0 0
  %714 = vmatpush1.bf16.msra.mxu0 %v479
  %715 = vmatprep.subr.bf16.mxu0 0
  %716 = vmatpush1.bf16.msra.mxu0 %v480
  %717 = vmatprep.subr.bf16.mxu0 0
  %718 = vmatpush1.bf16.msra.mxu0 %v481
  %719 = vmatprep.subr.bf16.mxu0 0
  %720 = vmatpush1.bf16.msra.mxu0 %v482
  %721 = vmatprep.subr.bf16.mxu0 0
  %722 = vmatpush1.bf16.msra.mxu0 %v483
  %723 = vmatprep.subr.bf16.mxu0 0
  %724 = vmatpush1.bf16.msra.mxu0 %v484
  %725 = vmatprep.subr.bf16.mxu0 0
  %726 = vmatpush1.bf16.msra.mxu0 %v485
  %727 = vmatprep.subr.bf16.mxu0 0
  %728 = vmatpush1.bf16.msra.mxu0 0
  %729 = vmatprep.subr.bf16.mxu0 0
  %730 = vmatpush1.bf16.msra.mxu0 0
  %731 = vmatprep.subr.bf16.mxu0 0
  %732 = vmatpush1.bf16.msra.mxu0 0
  %733 = vmatprep.subr.bf16.mxu0 0
  %734 = vmatpush1.bf16.msra.mxu0 0
  %735 = vmatprep.subr.bf16.mxu0 0
  %736 = vmatpush1.bf16.msra.mxu0 0
  %737 = vmatprep.subr.bf16.mxu0 0
  %738 = vmatpush1.bf16.msra.mxu0 0
  %739 = vmatprep.subr.bf16.mxu0 0
  %740 = vmatpush1.bf16.msra.mxu0 0
  %741 = vmatprep.subr.bf16.mxu0 0
  %742 = vmatpush1.bf16.msra.mxu0 0
  %743 = vmatprep.mubr.bf16.mxu0 0
  %744 = vmatmul.mubr.bf16.gmra.mrb[0].mxu0 %v695
  %v745 = vpop.f32.mrb[0].mxu0
  %v746 = vadd.f32 %v662, %v745
  %v747 = vpop.f32.mrb[0].mxu0
  %v748 = vpop.f32.mrb[0].mxu0
  %v749 = vadd.f32 %v662, %v748
  %v750 = vpop.f32.mrb[0].mxu0
  %751 = vmatprep.mubr.bf16.mxu0 0
  %752 = vmatmul.mubr.bf16.gmra.mrb[0].mxu0 %v696
  %v753 = vpop.f32.mrb[0].mxu0
  %v754 = vadd.f32 %v662, %v753
  %v755 = vpop.f32.mrb[0].mxu0
  %v756 = vpop.f32.mrb[0].mxu0
  %v757 = vadd.f32 %v662, %v756
  %v758 = vpop.f32.mrb[0].mxu0
  %759 = vmatprep.mubr.bf16.mxu0 0
  %760 = vmatmul.mubr.bf16.gmra.mrb[0].mxu0 %v697
  %v761 = vpop.f32.mrb[0].mxu0
  %v762 = vadd.f32 %v662, %v761
  %v763 = vpop.f32.mrb[0].mxu0
  %v764 = vpop.f32.mrb[0].mxu0
  %v765 = vadd.f32 %v662, %v764
  %v766 = vpop.f32.mrb[0].mxu0
  %767 = vmatprep.mubr.bf16.mxu0 0
  %768 = vmatmul.mubr.bf16.gmra.mrb[0].mxu0 %v698
  %v769 = vpop.f32.mrb[0].mxu0
  %v770 = vadd.f32 %v662, %v769
  %v771 = vpop.f32.mrb[0].mxu0
  %v772 = vpop.f32.mrb[0].mxu0
  %v773 = vadd.f32 %v662, %v772
  %v774 = vpop.f32.mrb[0].mxu0
  %775 = vmatprep.mubr.bf16.mxu0 0
  %776 = vmatmul.mubr.bf16.gmra.mrb[0].mxu0 %v699
  %v777 = vpop.f32.mrb[0].mxu0
  %v778 = vadd.f32 %v662, %v777
  %v779 = vpop.f32.mrb[0].mxu0
  %v780 = vpop.f32.mrb[0].mxu0
  %v781 = vadd.f32 %v662, %v780
  %v782 = vpop.f32.mrb[0].mxu0
  %783 = vmatprep.mubr.bf16.mxu0 0
  %784 = vmatmul.mubr.bf16.gmra.mrb[0].mxu0 %v700
  %v785 = vpop.f32.mrb[0].mxu0
  %v786 = vadd.f32 %v662, %v785
  %v787 = vpop.f32.mrb[0].mxu0
  %v788 = vpop.f32.mrb[0].mxu0
  %v789 = vadd.f32 %v662, %v788
  %v790 = vpop.f32.mrb[0].mxu0
  %791 = vmatprep.mubr.bf16.mxu0 0
  %792 = vmatmul.mubr.bf16.gmra.mrb[0].mxu0 %v701
  %v793 = vpop.f32.mrb[0].mxu0
  %v794 = vadd.f32 %v662, %v793
  %v795 = vpop.f32.mrb[0].mxu0
  %v796 = vpop.f32.mrb[0].mxu0
  %v797 = vadd.f32 %v662, %v796
  %v798 = vpop.f32.mrb[0].mxu0
  %799 = vmatprep.mubr.bf16.mxu0 0
  %800 = vmatmul.mubr.bf16.gmra.mrb[0].mxu0 %v702
  %v801 = vpop.f32.mrb[0].mxu0
  %v802 = vadd.f32 %v662, %v801
  %v803 = vpop.f32.mrb[0].mxu0
  %v804 = vpop.f32.mrb[0].mxu0
  %v805 = vadd.f32 %v662, %v804
  %v806 = vpop.f32.mrb[0].mxu0
  %807 = vdwg.mxu0
  %v808 = vmax.f32 %v746, 0.0
  %v809 = vmax.f32 %v749, 0.0
  %v810 = vmax.f32 %v754, 0.0
  %v811 = vmax.f32 %v757, 0.0
  %v812 = vmax.f32 %v762, 0.0
  %v813 = vmax.f32 %v765, 0.0
  %v814 = vmax.f32 %v770, 0.0
  %v815 = vmax.f32 %v773, 0.0
  %v816 = vmax.f32 %v778, 0.0
  %v817 = vmax.f32 %v781, 0.0
  %v818 = vmax.f32 %v786, 0.0
  %v819 = vmax.f32 %v789, 0.0
  %v820 = vmax.f32 %v794, 0.0
  %v821 = vmax.f32 %v797, 0.0
  %v822 = vmax.f32 %v802, 0.0
  %v823 = vmax.f32 %v805, 0.0
  %v824 = vpack.c.bf16 %v809, %v808
  %v825 = vpack.c.bf16 %v811, %v810
  %v826 = vpack.c.bf16 %v813, %v812
  %v827 = vpack.c.bf16 %v815, %v814
  %v828 = vpack.c.bf16 %v817, %v816
  %v829 = vpack.c.bf16 %v819, %v818
  %v830 = vpack.c.bf16 %v821, %v820
  %v831 = vpack.c.bf16 %v823, %v822
  %s832 = scalar_lea.vmem %s5, 128
  %v833 = vld [vmem:[%s832] sm:$0xf]
  %v834 = vld [vmem:[%s832 + $0x4] sm:$0xf]
  %v835 = vld [vmem:[%s832 + $0x8] sm:$0xf]
  %v836 = vld [vmem:[%s832 + $0xc] sm:$0xf]
  %v837 = vld [vmem:[%s832 + $0x10] sm:$0xf]
  %v838 = vld [vmem:[%s832 + $0x14] sm:$0xf]
  %v839 = vld [vmem:[%s832 + $0x18] sm:$0xf]
  %v840 = vld [vmem:[%s832 + $0x1c] sm:$0xf]
  %v841 = vld [vmem:[%s832 + $0x20] sm:$0xf]
  %v842 = vld [vmem:[%s832 + $0x24] sm:$0xf]
  %v843 = vld [vmem:[%s832 + $0x28] sm:$0xf]
  %v844 = vld [vmem:[%s832 + $0x2c] sm:$0xf]
  %v845 = vld [vmem:[%s832 + $0x30] sm:$0xf]
  %v846 = vld [vmem:[%s832 + $0x34] sm:$0xf]
  %v847 = vld [vmem:[%s832 + $0x38] sm:$0xf]
  %v848 = vld [vmem:[%s832 + $0x3c] sm:$0xf]
  %s849 = scalar_lea.vmem %s5, 192
  %v850 = vld [vmem:[%s849] sm:$0xf]
  %v851 = vld [vmem:[%s849 + $0x4] sm:$0xf]
  %v852 = vld [vmem:[%s849 + $0x8] sm:$0xf]
  %v853 = vld [vmem:[%s849 + $0xc] sm:$0xf]
  %v854 = vld [vmem:[%s849 + $0x10] sm:$0xf]
  %v855 = vld [vmem:[%s849 + $0x14] sm:$0xf]
  %v856 = vld [vmem:[%s849 + $0x18] sm:$0xf]
  %v857 = vld [vmem:[%s849 + $0x1c] sm:$0xf]
  %v858 = vld [vmem:[%s849 + $0x20] sm:$0xf]
  %v859 = vld [vmem:[%s849 + $0x24] sm:$0xf]
  %v860 = vld [vmem:[%s849 + $0x28] sm:$0xf]
  %v861 = vld [vmem:[%s849 + $0x2c] sm:$0xf]
  %v862 = vld [vmem:[%s849 + $0x30] sm:$0xf]
  %v863 = vld [vmem:[%s849 + $0x34] sm:$0xf]
  %v864 = vld [vmem:[%s849 + $0x38] sm:$0xf]
  %v865 = vld [vmem:[%s849 + $0x3c] sm:$0xf]
  %v882 = vunpack.c.l.b16 %v833
  %v883 = vunpack.c.l.b16 %v834
  %v884 = vunpack.c.l.b16 %v835
  %v885 = vunpack.c.l.b16 %v836
  %v886 = vunpack.c.l.b16 %v837
  %v887 = vunpack.c.l.b16 %v838
  %v888 = vunpack.c.l.b16 %v839
  %v889 = vunpack.c.l.b16 %v840
  %v890 = vunpack.c.l.b16 %v841
  %v891 = vunpack.c.l.b16 %v842
  %v892 = vunpack.c.l.b16 %v843
  %v893 = vunpack.c.l.b16 %v844
  %v894 = vunpack.c.l.b16 %v845
  %v895 = vunpack.c.l.b16 %v846
  %v896 = vunpack.c.l.b16 %v847
  %v897 = vunpack.c.l.b16 %v848
  %v898 = vpack.c.b16 %v883, %v882
  %v899 = vpack.c.b16 %v885, %v884
  %v900 = vpack.c.b16 %v887, %v886
  %v901 = vpack.c.b16 %v889, %v888
  %v902 = vpack.c.b16 %v891, %v890
  %v903 = vpack.c.b16 %v893, %v892
  %v904 = vpack.c.b16 %v895, %v894
  %v905 = vpack.c.b16 %v897, %v896
  %914 = vmatprep.subr.bf16.mxu0 0
  %915 = vmatpush1.bf16.msra.mxu0 %v898
  %916 = vmatprep.subr.bf16.mxu0 0
  %917 = vmatpush1.bf16.msra.mxu0 %v899
  %918 = vmatprep.subr.bf16.mxu0 0
  %919 = vmatpush1.bf16.msra.mxu0 %v900
  %920 = vmatprep.subr.bf16.mxu0 0
  %921 = vmatpush1.bf16.msra.mxu0 %v901
  %922 = vmatprep.subr.bf16.mxu0 0
  %923 = vmatpush1.bf16.msra.mxu0 %v902
  %924 = vmatprep.subr.bf16.mxu0 0
  %925 = vmatpush1.bf16.msra.mxu0 %v903
  %926 = vmatprep.subr.bf16.mxu0 0
  %927 = vmatpush1.bf16.msra.mxu0 %v904
  %928 = vmatprep.subr.bf16.mxu0 0
  %929 = vmatpush1.bf16.msra.mxu0 %v905
  %930 = vmatprep.subr.bf16.mxu0 0
  %931 = vmatpush1.bf16.msra.mxu0 0
  %932 = vmatprep.subr.bf16.mxu0 0
  %933 = vmatpush1.bf16.msra.mxu0 0
  %934 = vmatprep.subr.bf16.mxu0 0
  %935 = vmatpush1.bf16.msra.mxu0 0
  %936 = vmatprep.subr.bf16.mxu0 0
  %937 = vmatpush1.bf16.msra.mxu0 0
  %938 = vmatprep.subr.bf16.mxu0 0
  %939 = vmatpush1.bf16.msra.mxu0 0
  %940 = vmatprep.subr.bf16.mxu0 0
  %941 = vmatpush1.bf16.msra.mxu0 0
  %942 = vmatprep.subr.bf16.mxu0 0
  %943 = vmatpush1.bf16.msra.mxu0 0
  %944 = vmatprep.subr.bf16.mxu0 0
  %945 = vmatpush1.bf16.msra.mxu0 0
  %946 = vmatprep.mubr.bf16.mxu0 0
  %947 = vmatmul.mubr.bf16.gmra.mrb[0].mxu0 %v651
  %v948 = vpop.f32.mrb[0].mxu0
  %v949 = vadd.f32 0.0, %v948
  %v950 = vpop.f32.mrb[0].mxu0
  %v951 = vpop.f32.mrb[0].mxu0
  %v952 = vadd.f32 0.0, %v951
  %v953 = vpop.f32.mrb[0].mxu0
  %954 = vmatprep.mubr.bf16.mxu0 0
  %955 = vmatmul.mubr.bf16.gmra.mrb[0].mxu0 %v652
  %v956 = vpop.f32.mrb[0].mxu0
  %v957 = vadd.f32 0.0, %v956
  %v958 = vpop.f32.mrb[0].mxu0
  %v959 = vpop.f32.mrb[0].mxu0
  %v960 = vadd.f32 0.0, %v959
  %v961 = vpop.f32.mrb[0].mxu0
  %962 = vmatprep.mubr.bf16.mxu0 0
  %963 = vmatmul.mubr.bf16.gmra.mrb[0].mxu0 %v653
  %v964 = vpop.f32.mrb[0].mxu0
  %v965 = vadd.f32 0.0, %v964
  %v966 = vpop.f32.mrb[0].mxu0
  %v967 = vpop.f32.mrb[0].mxu0
  %v968 = vadd.f32 0.0, %v967
  %v969 = vpop.f32.mrb[0].mxu0
  %970 = vmatprep.mubr.bf16.mxu0 0
  %971 = vmatmul.mubr.bf16.gmra.mrb[0].mxu0 %v654
  %v972 = vpop.f32.mrb[0].mxu0
  %v973 = vadd.f32 0.0, %v972
  %v974 = vpop.f32.mrb[0].mxu0
  %v975 = vpop.f32.mrb[0].mxu0
  %v976 = vadd.f32 0.0, %v975
  %v977 = vpop.f32.mrb[0].mxu0
  %978 = vmatprep.mubr.bf16.mxu0 0
  %979 = vmatmul.mubr.bf16.gmra.mrb[0].mxu0 %v655
  %v980 = vpop.f32.mrb[0].mxu0
  %v981 = vadd.f32 0.0, %v980
  %v982 = vpop.f32.mrb[0].mxu0
  %v983 = vpop.f32.mrb[0].mxu0
  %v984 = vadd.f32 0.0, %v983
  %v985 = vpop.f32.mrb[0].mxu0
  %986 = vmatprep.mubr.bf16.mxu0 0
  %987 = vmatmul.mubr.bf16.gmra.mrb[0].mxu0 %v656
  %v988 = vpop.f32.mrb[0].mxu0
  %v989 = vadd.f32 0.0, %v988
  %v990 = vpop.f32.mrb[0].mxu0
  %v991 = vpop.f32.mrb[0].mxu0
  %v992 = vadd.f32 0.0, %v991
  %v993 = vpop.f32.mrb[0].mxu0
  %994 = vmatprep.mubr.bf16.mxu0 0
  %995 = vmatmul.mubr.bf16.gmra.mrb[0].mxu0 %v657
  %v996 = vpop.f32.mrb[0].mxu0
  %v997 = vadd.f32 0.0, %v996
  %v998 = vpop.f32.mrb[0].mxu0
  %v999 = vpop.f32.mrb[0].mxu0
  %v1000 = vadd.f32 0.0, %v999
  %v1001 = vpop.f32.mrb[0].mxu0
  %1002 = vmatprep.mubr.bf16.mxu0 0
  %1003 = vmatmul.mubr.bf16.gmra.mrb[0].mxu0 %v658
  %v1004 = vpop.f32.mrb[0].mxu0
  %v1005 = vadd.f32 0.0, %v1004
  %v1006 = vpop.f32.mrb[0].mxu0
  %v1007 = vpop.f32.mrb[0].mxu0
  %v1008 = vadd.f32 0.0, %v1007
  %v1009 = vpop.f32.mrb[0].mxu0
  %1010 = vdwg.mxu0
  %v1011 = vpack.c.bf16 %v952, %v949
  %v1012 = vpack.c.bf16 %v960, %v957
  %v1013 = vpack.c.bf16 %v968, %v965
  %v1014 = vpack.c.bf16 %v976, %v973
  %v1015 = vpack.c.bf16 %v984, %v981
  %v1016 = vpack.c.bf16 %v992, %v989
  %v1017 = vpack.c.bf16 %v1000, %v997
  %v1018 = vpack.c.bf16 %v1008, %v1005
  %v1035 = vunpack.c.l.b16 %v850
  %v1036 = vunpack.c.l.b16 %v851
  %v1037 = vunpack.c.l.b16 %v852
  %v1038 = vunpack.c.l.b16 %v853
  %v1039 = vunpack.c.l.b16 %v854
  %v1040 = vunpack.c.l.b16 %v855
  %v1041 = vunpack.c.l.b16 %v856
  %v1042 = vunpack.c.l.b16 %v857
  %v1043 = vunpack.c.l.b16 %v858
  %v1044 = vunpack.c.l.b16 %v859
  %v1045 = vunpack.c.l.b16 %v860
  %v1046 = vunpack.c.l.b16 %v861
  %v1047 = vunpack.c.l.b16 %v862
  %v1048 = vunpack.c.l.b16 %v863
  %v1049 = vunpack.c.l.b16 %v864
  %v1050 = vunpack.c.l.b16 %v865
  %v1051 = vpack.c.b16 %v1036, %v1035
  %v1052 = vpack.c.b16 %v1038, %v1037
  %v1053 = vpack.c.b16 %v1040, %v1039
  %v1054 = vpack.c.b16 %v1042, %v1041
  %v1055 = vpack.c.b16 %v1044, %v1043
  %v1056 = vpack.c.b16 %v1046, %v1045
  %v1057 = vpack.c.b16 %v1048, %v1047
  %v1058 = vpack.c.b16 %v1050, %v1049
  %1067 = vmatprep.subr.bf16.mxu0 0
  %1068 = vmatpush1.bf16.msra.mxu0 %v1051
  %1069 = vmatprep.subr.bf16.mxu0 0
  %1070 = vmatpush1.bf16.msra.mxu0 %v1052
  %1071 = vmatprep.subr.bf16.mxu0 0
  %1072 = vmatpush1.bf16.msra.mxu0 %v1053
  %1073 = vmatprep.subr.bf16.mxu0 0
  %1074 = vmatpush1.bf16.msra.mxu0 %v1054
  %1075 = vmatprep.subr.bf16.mxu0 0
  %1076 = vmatpush1.bf16.msra.mxu0 %v1055
  %1077 = vmatprep.subr.bf16.mxu0 0
  %1078 = vmatpush1.bf16.msra.mxu0 %v1056
  %1079 = vmatprep.subr.bf16.mxu0 0
  %1080 = vmatpush1.bf16.msra.mxu0 %v1057
  %1081 = vmatprep.subr.bf16.mxu0 0
  %1082 = vmatpush1.bf16.msra.mxu0 %v1058
  %1083 = vmatprep.subr.bf16.mxu0 0
  %1084 = vmatpush1.bf16.msra.mxu0 0
  %1085 = vmatprep.subr.bf16.mxu0 0
  %1086 = vmatpush1.bf16.msra.mxu0 0
  %1087 = vmatprep.subr.bf16.mxu0 0
  %1088 = vmatpush1.bf16.msra.mxu0 0
  %1089 = vmatprep.subr.bf16.mxu0 0
  %1090 = vmatpush1.bf16.msra.mxu0 0
  %1091 = vmatprep.subr.bf16.mxu0 0
  %1092 = vmatpush1.bf16.msra.mxu0 0
  %1093 = vmatprep.subr.bf16.mxu0 0
  %1094 = vmatpush1.bf16.msra.mxu0 0
  %1095 = vmatprep.subr.bf16.mxu0 0
  %1096 = vmatpush1.bf16.msra.mxu0 0
  %1097 = vmatprep.subr.bf16.mxu0 0
  %1098 = vmatpush1.bf16.msra.mxu0 0
  %1099 = vmatprep.mubr.bf16.mxu0 0
  %1100 = vmatmul.mubr.bf16.gmra.mrb[0].mxu0 %v824
  %v1101 = vpop.f32.mrb[0].mxu0
  %v1102 = vadd.f32 0.0, %v1101
  %v1103 = vpop.f32.mrb[0].mxu0
  %v1104 = vpop.f32.mrb[0].mxu0
  %v1105 = vadd.f32 0.0, %v1104
  %v1106 = vpop.f32.mrb[0].mxu0
  %1107 = vmatprep.mubr.bf16.mxu0 0
  %1108 = vmatmul.mubr.bf16.gmra.mrb[0].mxu0 %v825
  %v1109 = vpop.f32.mrb[0].mxu0
  %v1110 = vadd.f32 0.0, %v1109
  %v1111 = vpop.f32.mrb[0].mxu0
  %v1112 = vpop.f32.mrb[0].mxu0
  %v1113 = vadd.f32 0.0, %v1112
  %v1114 = vpop.f32.mrb[0].mxu0
  %1115 = vmatprep.mubr.bf16.mxu0 0
  %1116 = vmatmul.mubr.bf16.gmra.mrb[0].mxu0 %v826
  %v1117 = vpop.f32.mrb[0].mxu0
  %v1118 = vadd.f32 0.0, %v1117
  %v1119 = vpop.f32.mrb[0].mxu0
  %v1120 = vpop.f32.mrb[0].mxu0
  %v1121 = vadd.f32 0.0, %v1120
  %v1122 = vpop.f32.mrb[0].mxu0
  %1123 = vmatprep.mubr.bf16.mxu0 0
  %1124 = vmatmul.mubr.bf16.gmra.mrb[0].mxu0 %v827
  %v1125 = vpop.f32.mrb[0].mxu0
  %v1126 = vadd.f32 0.0, %v1125
  %v1127 = vpop.f32.mrb[0].mxu0
  %v1128 = vpop.f32.mrb[0].mxu0
  %v1129 = vadd.f32 0.0, %v1128
  %v1130 = vpop.f32.mrb[0].mxu0
  %1131 = vmatprep.mubr.bf16.mxu0 0
  %1132 = vmatmul.mubr.bf16.gmra.mrb[0].mxu0 %v828
  %v1133 = vpop.f32.mrb[0].mxu0
  %v1134 = vadd.f32 0.0, %v1133
  %v1135 = vpop.f32.mrb[0].mxu0
  %v1136 = vpop.f32.mrb[0].mxu0
  %v1137 = vadd.f32 0.0, %v1136
  %v1138 = vpop.f32.mrb[0].mxu0
  %1139 = vmatprep.mubr.bf16.mxu0 0
  %1140 = vmatmul.mubr.bf16.gmra.mrb[0].mxu0 %v829
  %v1141 = vpop.f32.mrb[0].mxu0
  %v1142 = vadd.f32 0.0, %v1141
  %v1143 = vpop.f32.mrb[0].mxu0
  %v1144 = vpop.f32.mrb[0].mxu0
  %v1145 = vadd.f32 0.0, %v1144
  %v1146 = vpop.f32.mrb[0].mxu0
  %1147 = vmatprep.mubr.bf16.mxu0 0
  %1148 = vmatmul.mubr.bf16.gmra.mrb[0].mxu0 %v830
  %v1149 = vpop.f32.mrb[0].mxu0
  %v1150 = vadd.f32 0.0, %v1149
  %v1151 = vpop.f32.mrb[0].mxu0
  %v1152 = vpop.f32.mrb[0].mxu0
  %v1153 = vadd.f32 0.0, %v1152
  %v1154 = vpop.f32.mrb[0].mxu0
  %1155 = vmatprep.mubr.bf16.mxu0 0
  %1156 = vmatmul.mubr.bf16.gmra.mrb[0].mxu0 %v831
  %v1157 = vpop.f32.mrb[0].mxu0
  %v1158 = vadd.f32 0.0, %v1157
  %v1159 = vpop.f32.mrb[0].mxu0
  %v1160 = vpop.f32.mrb[0].mxu0
  %v1161 = vadd.f32 0.0, %v1160
  %v1162 = vpop.f32.mrb[0].mxu0
  %1163 = vdwg.mxu0
  %v1164 = vpack.c.bf16 %v1105, %v1102
  %v1165 = vpack.c.bf16 %v1113, %v1110
  %v1166 = vpack.c.bf16 %v1121, %v1118
  %v1167 = vpack.c.bf16 %v1129, %v1126
  %v1168 = vpack.c.bf16 %v1137, %v1134
  %v1169 = vpack.c.bf16 %v1145, %v1142
  %v1170 = vpack.c.bf16 %v1153, %v1150
  %v1171 = vpack.c.bf16 %v1161, %v1158
  %v1172 = vlaneseq
  %v1173 = vshrl.u32 %v1172, 7
  %v1174 = vsub.s32 2, %v1173
  %v1175 = vrot.slane %v98, %v1174
  %1176 = vmatprep.subr.bf16.mxu0 0
  %1177 = vmatpush1.bf16.msra.mxu0 %v1011
  %1178 = vmatprep.subr.bf16.mxu0 0
  %1179 = vmatpush1.bf16.msra.mxu0 %v1012
  %1180 = vmatprep.subr.bf16.mxu0 0
  %1181 = vmatpush1.bf16.msra.mxu0 %v1013
  %1182 = vmatprep.subr.bf16.mxu0 0
  %1183 = vmatpush1.bf16.msra.mxu0 %v1014
  %1184 = vmatprep.subr.bf16.mxu0 0
  %1185 = vmatpush1.bf16.msra.mxu0 %v1015
  %1186 = vmatprep.subr.bf16.mxu0 0
  %1187 = vmatpush1.bf16.msra.mxu0 %v1016
  %1188 = vmatprep.subr.bf16.mxu0 0
  %1189 = vmatpush1.bf16.msra.mxu0 %v1017
  %1190 = vmatprep.subr.bf16.mxu0 0
  %1191 = vmatpush1.bf16.msra.mxu0 %v1018
  %1192 = vmatprep.subr.bf16.mxu0 0
  %1193 = vmatpush1.bf16.msra.mxu0 0
  %1194 = vmatprep.subr.bf16.mxu0 0
  %1195 = vmatpush1.bf16.msra.mxu0 0
  %1196 = vmatprep.subr.bf16.mxu0 0
  %1197 = vmatpush1.bf16.msra.mxu0 0
  %1198 = vmatprep.subr.bf16.mxu0 0
  %1199 = vmatpush1.bf16.msra.mxu0 0
  %1200 = vmatprep.subr.bf16.mxu0 0
  %1201 = vmatpush1.bf16.msra.mxu0 0
  %1202 = vmatprep.subr.bf16.mxu0 0
  %1203 = vmatpush1.bf16.msra.mxu0 0
  %1204 = vmatprep.subr.bf16.mxu0 0
  %1205 = vmatpush1.bf16.msra.mxu0 0
  %1206 = vmatprep.subr.bf16.mxu0 0
  %1207 = vmatpush1.bf16.msra.mxu0 0
  %1208 = vmatprep.mubr.bf16.mxu0 0
  %1209 = vmatmul.mubr.bf16.gmra.mrb[0].mxu0 %v522
  %v1210 = vpop.f32.mrb[0].mxu0
  %v1211 = vadd.f32 %v1175, %v1210
  %v1212 = vpop.f32.mrb[0].mxu0
  %v1213 = vpop.f32.mrb[0].mxu0
  %v1214 = vadd.f32 %v1175, %v1213
  %v1215 = vpop.f32.mrb[0].mxu0
  %1216 = vmatprep.mubr.bf16.mxu0 0
  %1217 = vmatmul.mubr.bf16.gmra.mrb[0].mxu0 %v523
  %v1218 = vpop.f32.mrb[0].mxu0
  %v1219 = vadd.f32 %v1175, %v1218
  %v1220 = vpop.f32.mrb[0].mxu0
  %v1221 = vpop.f32.mrb[0].mxu0
  %v1222 = vadd.f32 %v1175, %v1221
  %v1223 = vpop.f32.mrb[0].mxu0
  %1224 = vmatprep.mubr.bf16.mxu0 0
  %1225 = vmatmul.mubr.bf16.gmra.mrb[0].mxu0 %v524
  %v1226 = vpop.f32.mrb[0].mxu0
  %v1227 = vadd.f32 %v1175, %v1226
  %v1228 = vpop.f32.mrb[0].mxu0
  %v1229 = vpop.f32.mrb[0].mxu0
  %v1230 = vadd.f32 %v1175, %v1229
  %v1231 = vpop.f32.mrb[0].mxu0
  %1232 = vmatprep.mubr.bf16.mxu0 0
  %1233 = vmatmul.mubr.bf16.gmra.mrb[0].mxu0 %v525
  %v1234 = vpop.f32.mrb[0].mxu0
  %v1235 = vadd.f32 %v1175, %v1234
  %v1236 = vpop.f32.mrb[0].mxu0
  %v1237 = vpop.f32.mrb[0].mxu0
  %v1238 = vadd.f32 %v1175, %v1237
  %v1239 = vpop.f32.mrb[0].mxu0
  %1240 = vmatprep.mubr.bf16.mxu0 0
  %1241 = vmatmul.mubr.bf16.gmra.mrb[0].mxu0 %v526
  %v1242 = vpop.f32.mrb[0].mxu0
  %v1243 = vadd.f32 %v1175, %v1242
  %v1244 = vpop.f32.mrb[0].mxu0
  %v1245 = vpop.f32.mrb[0].mxu0
  %v1246 = vadd.f32 %v1175, %v1245
  %v1247 = vpop.f32.mrb[0].mxu0
  %1248 = vmatprep.mubr.bf16.mxu0 0
  %1249 = vmatmul.mubr.bf16.gmra.mrb[0].mxu0 %v527
  %v1250 = vpop.f32.mrb[0].mxu0
  %v1251 = vadd.f32 %v1175, %v1250
  %v1252 = vpop.f32.mrb[0].mxu0
  %v1253 = vpop.f32.mrb[0].mxu0
  %v1254 = vadd.f32 %v1175, %v1253
  %v1255 = vpop.f32.mrb[0].mxu0
  %1256 = vmatprep.mubr.bf16.mxu0 0
  %1257 = vmatmul.mubr.bf16.gmra.mrb[0].mxu0 %v528
  %v1258 = vpop.f32.mrb[0].mxu0
  %v1259 = vadd.f32 %v1175, %v1258
  %v1260 = vpop.f32.mrb[0].mxu0
  %v1261 = vpop.f32.mrb[0].mxu0
  %v1262 = vadd.f32 %v1175, %v1261
  %v1263 = vpop.f32.mrb[0].mxu0
  %1264 = vmatprep.mubr.bf16.mxu0 0
  %1265 = vmatmul.mubr.bf16.gmra.mrb[0].mxu0 %v529
  %v1266 = vpop.f32.mrb[0].mxu0
  %v1267 = vadd.f32 %v1175, %v1266
  %v1268 = vpop.f32.mrb[0].mxu0
  %v1269 = vpop.f32.mrb[0].mxu0
  %v1270 = vadd.f32 %v1175, %v1269
  %v1271 = vpop.f32.mrb[0].mxu0
  %1272 = vdwg.mxu0
  %v1273 = vmax.f32 %v1211, 0.0
  %v1274 = vmax.f32 %v1214, 0.0
  %v1275 = vmax.f32 %v1219, 0.0
  %v1276 = vmax.f32 %v1222, 0.0
  %v1277 = vmax.f32 %v1227, 0.0
  %v1278 = vmax.f32 %v1230, 0.0
  %v1279 = vmax.f32 %v1235, 0.0
  %v1280 = vmax.f32 %v1238, 0.0
  %v1281 = vmax.f32 %v1243, 0.0
  %v1282 = vmax.f32 %v1246, 0.0
  %v1283 = vmax.f32 %v1251, 0.0
  %v1284 = vmax.f32 %v1254, 0.0
  %v1285 = vmax.f32 %v1259, 0.0
  %v1286 = vmax.f32 %v1262, 0.0
  %v1287 = vmax.f32 %v1267, 0.0
  %v1288 = vmax.f32 %v1270, 0.0
  %v1289 = vpack.c.bf16 %v1274, %v1273
  %v1290 = vpack.c.bf16 %v1276, %v1275
  %v1291 = vpack.c.bf16 %v1278, %v1277
  %v1292 = vpack.c.bf16 %v1280, %v1279
  %v1293 = vpack.c.bf16 %v1282, %v1281
  %v1294 = vpack.c.bf16 %v1284, %v1283
  %v1295 = vpack.c.bf16 %v1286, %v1285
  %v1296 = vpack.c.bf16 %v1288, %v1287
  %v1297 = vlaneseq
  %v1298 = vshrl.u32 %v1297, 7
  %v1299 = vsub.s32 3, %v1298
  %v1300 = vrot.slane %v98, %v1299
  %1301 = vmatprep.subr.bf16.mxu0 0
  %1302 = vmatpush1.bf16.msra.mxu0 %v1164
  %1303 = vmatprep.subr.bf16.mxu0 0
  %1304 = vmatpush1.bf16.msra.mxu0 %v1165
  %1305 = vmatprep.subr.bf16.mxu0 0
  %1306 = vmatpush1.bf16.msra.mxu0 %v1166
  %1307 = vmatprep.subr.bf16.mxu0 0
  %1308 = vmatpush1.bf16.msra.mxu0 %v1167
  %1309 = vmatprep.subr.bf16.mxu0 0
  %1310 = vmatpush1.bf16.msra.mxu0 %v1168
  %1311 = vmatprep.subr.bf16.mxu0 0
  %1312 = vmatpush1.bf16.msra.mxu0 %v1169
  %1313 = vmatprep.subr.bf16.mxu0 0
  %1314 = vmatpush1.bf16.msra.mxu0 %v1170
  %1315 = vmatprep.subr.bf16.mxu0 0
  %1316 = vmatpush1.bf16.msra.mxu0 %v1171
  %1317 = vmatprep.subr.bf16.mxu0 0
  %1318 = vmatpush1.bf16.msra.mxu0 0
  %1319 = vmatprep.subr.bf16.mxu0 0
  %1320 = vmatpush1.bf16.msra.mxu0 0
  %1321 = vmatprep.subr.bf16.mxu0 0
  %1322 = vmatpush1.bf16.msra.mxu0 0
  %1323 = vmatprep.subr.bf16.mxu0 0
  %1324 = vmatpush1.bf16.msra.mxu0 0
  %1325 = vmatprep.subr.bf16.mxu0 0
  %1326 = vmatpush1.bf16.msra.mxu0 0
  %1327 = vmatprep.subr.bf16.mxu0 0
  %1328 = vmatpush1.bf16.msra.mxu0 0
  %1329 = vmatprep.subr.bf16.mxu0 0
  %1330 = vmatpush1.bf16.msra.mxu0 0
  %1331 = vmatprep.subr.bf16.mxu0 0
  %1332 = vmatpush1.bf16.msra.mxu0 0
  %1333 = vmatprep.mubr.bf16.mxu0 0
  %1334 = vmatmul.mubr.bf16.gmra.mrb[0].mxu0 %v695
  %v1335 = vpop.f32.mrb[0].mxu0
  %v1336 = vadd.f32 %v1300, %v1335
  %v1337 = vpop.f32.mrb[0].mxu0
  %v1338 = vpop.f32.mrb[0].mxu0
  %v1339 = vadd.f32 %v1300, %v1338
  %v1340 = vpop.f32.mrb[0].mxu0
  %1341 = vmatprep.mubr.bf16.mxu0 0
  %1342 = vmatmul.mubr.bf16.gmra.mrb[0].mxu0 %v696
  %v1343 = vpop.f32.mrb[0].mxu0
  %v1344 = vadd.f32 %v1300, %v1343
  %v1345 = vpop.f32.mrb[0].mxu0
  %v1346 = vpop.f32.mrb[0].mxu0
  %v1347 = vadd.f32 %v1300, %v1346
  %v1348 = vpop.f32.mrb[0].mxu0
  %1349 = vmatprep.mubr.bf16.mxu0 0
  %1350 = vmatmul.mubr.bf16.gmra.mrb[0].mxu0 %v697
  %v1351 = vpop.f32.mrb[0].mxu0
  %v1352 = vadd.f32 %v1300, %v1351
  %v1353 = vpop.f32.mrb[0].mxu0
  %v1354 = vpop.f32.mrb[0].mxu0
  %v1355 = vadd.f32 %v1300, %v1354
  %v1356 = vpop.f32.mrb[0].mxu0
  %1357 = vmatprep.mubr.bf16.mxu0 0
  %1358 = vmatmul.mubr.bf16.gmra.mrb[0].mxu0 %v698
  %v1359 = vpop.f32.mrb[0].mxu0
  %v1360 = vadd.f32 %v1300, %v1359
  %v1361 = vpop.f32.mrb[0].mxu0
  %v1362 = vpop.f32.mrb[0].mxu0
  %v1363 = vadd.f32 %v1300, %v1362
  %v1364 = vpop.f32.mrb[0].mxu0
  %1365 = vmatprep.mubr.bf16.mxu0 0
  %1366 = vmatmul.mubr.bf16.gmra.mrb[0].mxu0 %v699
  %v1367 = vpop.f32.mrb[0].mxu0
  %v1368 = vadd.f32 %v1300, %v1367
  %v1369 = vpop.f32.mrb[0].mxu0
  %v1370 = vpop.f32.mrb[0].mxu0
  %v1371 = vadd.f32 %v1300, %v1370
  %v1372 = vpop.f32.mrb[0].mxu0
  %1373 = vmatprep.mubr.bf16.mxu0 0
  %1374 = vmatmul.mubr.bf16.gmra.mrb[0].mxu0 %v700
  %v1375 = vpop.f32.mrb[0].mxu0
  %v1376 = vadd.f32 %v1300, %v1375
  %v1377 = vpop.f32.mrb[0].mxu0
  %v1378 = vpop.f32.mrb[0].mxu0
  %v1379 = vadd.f32 %v1300, %v1378
  %v1380 = vpop.f32.mrb[0].mxu0
  %1381 = vmatprep.mubr.bf16.mxu0 0
  %1382 = vmatmul.mubr.bf16.gmra.mrb[0].mxu0 %v701
  %v1383 = vpop.f32.mrb[0].mxu0
  %v1384 = vadd.f32 %v1300, %v1383
  %v1385 = vpop.f32.mrb[0].mxu0
  %v1386 = vpop.f32.mrb[0].mxu0
  %v1387 = vadd.f32 %v1300, %v1386
  %v1388 = vpop.f32.mrb[0].mxu0
  %1389 = vmatprep.mubr.bf16.mxu0 0
  %1390 = vmatmul.mubr.bf16.gmra.mrb[0].mxu0 %v702
  %v1391 = vpop.f32.mrb[0].mxu0
  %v1392 = vadd.f32 %v1300, %v1391
  %v1393 = vpop.f32.mrb[0].mxu0
  %v1394 = vpop.f32.mrb[0].mxu0
  %v1395 = vadd.f32 %v1300, %v1394
  %v1396 = vpop.f32.mrb[0].mxu0
  %1397 = vdwg.mxu0
  %v1398 = vmax.f32 %v1336, 0.0
  %v1399 = vmax.f32 %v1339, 0.0
  %v1400 = vmax.f32 %v1344, 0.0
  %v1401 = vmax.f32 %v1347, 0.0
  %v1402 = vmax.f32 %v1352, 0.0
  %v1403 = vmax.f32 %v1355, 0.0
  %v1404 = vmax.f32 %v1360, 0.0
  %v1405 = vmax.f32 %v1363, 0.0
  %v1406 = vmax.f32 %v1368, 0.0
  %v1407 = vmax.f32 %v1371, 0.0
  %v1408 = vmax.f32 %v1376, 0.0
  %v1409 = vmax.f32 %v1379, 0.0
  %v1410 = vmax.f32 %v1384, 0.0
  %v1411 = vmax.f32 %v1387, 0.0
  %v1412 = vmax.f32 %v1392, 0.0
  %v1413 = vmax.f32 %v1395, 0.0
  %v1414 = vpack.c.bf16 %v1399, %v1398
  %v1415 = vpack.c.bf16 %v1401, %v1400
  %v1416 = vpack.c.bf16 %v1403, %v1402
  %v1417 = vpack.c.bf16 %v1405, %v1404
  %v1418 = vpack.c.bf16 %v1407, %v1406
  %v1419 = vpack.c.bf16 %v1409, %v1408
  %v1420 = vpack.c.bf16 %v1411, %v1410
  %v1421 = vpack.c.bf16 %v1413, %v1412
  %s1422 = scalar_lea.vmem %s5, 256
  %v1423 = vld [vmem:[%s1422] sm:$0xf]
  %v1424 = vld [vmem:[%s1422 + $0x4] sm:$0xf]
  %v1425 = vld [vmem:[%s1422 + $0x8] sm:$0xf]
  %v1426 = vld [vmem:[%s1422 + $0xc] sm:$0xf]
  %v1427 = vld [vmem:[%s1422 + $0x10] sm:$0xf]
  %v1428 = vld [vmem:[%s1422 + $0x14] sm:$0xf]
  %v1429 = vld [vmem:[%s1422 + $0x18] sm:$0xf]
  %v1430 = vld [vmem:[%s1422 + $0x1c] sm:$0xf]
  %v1431 = vld [vmem:[%s1422 + $0x20] sm:$0xf]
  %v1432 = vld [vmem:[%s1422 + $0x24] sm:$0xf]
  %v1433 = vld [vmem:[%s1422 + $0x28] sm:$0xf]
  %v1434 = vld [vmem:[%s1422 + $0x2c] sm:$0xf]
  %v1435 = vld [vmem:[%s1422 + $0x30] sm:$0xf]
  %v1436 = vld [vmem:[%s1422 + $0x34] sm:$0xf]
  %v1437 = vld [vmem:[%s1422 + $0x38] sm:$0xf]
  %v1438 = vld [vmem:[%s1422 + $0x3c] sm:$0xf]
  %s1439 = scalar_lea.vmem %s5, 320
  %v1440 = vld [vmem:[%s1439] sm:$0xf]
  %v1441 = vld [vmem:[%s1439 + $0x4] sm:$0xf]
  %v1442 = vld [vmem:[%s1439 + $0x8] sm:$0xf]
  %v1443 = vld [vmem:[%s1439 + $0xc] sm:$0xf]
  %v1444 = vld [vmem:[%s1439 + $0x10] sm:$0xf]
  %v1445 = vld [vmem:[%s1439 + $0x14] sm:$0xf]
  %v1446 = vld [vmem:[%s1439 + $0x18] sm:$0xf]
  %v1447 = vld [vmem:[%s1439 + $0x1c] sm:$0xf]
  %v1448 = vld [vmem:[%s1439 + $0x20] sm:$0xf]
  %v1449 = vld [vmem:[%s1439 + $0x24] sm:$0xf]
  %v1450 = vld [vmem:[%s1439 + $0x28] sm:$0xf]
  %v1451 = vld [vmem:[%s1439 + $0x2c] sm:$0xf]
  %v1452 = vld [vmem:[%s1439 + $0x30] sm:$0xf]
  %v1453 = vld [vmem:[%s1439 + $0x34] sm:$0xf]
  %v1454 = vld [vmem:[%s1439 + $0x38] sm:$0xf]
  %v1455 = vld [vmem:[%s1439 + $0x3c] sm:$0xf]
  %v1472 = vunpack.c.l.b16 %v1423
  %v1473 = vunpack.c.l.b16 %v1424
  %v1474 = vunpack.c.l.b16 %v1425
  %v1475 = vunpack.c.l.b16 %v1426
  %v1476 = vunpack.c.l.b16 %v1427
  %v1477 = vunpack.c.l.b16 %v1428
  %v1478 = vunpack.c.l.b16 %v1429
  %v1479 = vunpack.c.l.b16 %v1430
  %v1480 = vunpack.c.l.b16 %v1431
  %v1481 = vunpack.c.l.b16 %v1432
  %v1482 = vunpack.c.l.b16 %v1433
  %v1483 = vunpack.c.l.b16 %v1434
  %v1484 = vunpack.c.l.b16 %v1435
  %v1485 = vunpack.c.l.b16 %v1436
  %v1486 = vunpack.c.l.b16 %v1437
  %v1487 = vunpack.c.l.b16 %v1438
  %v1488 = vpack.c.b16 %v1473, %v1472
  %v1489 = vpack.c.b16 %v1475, %v1474
  %v1490 = vpack.c.b16 %v1477, %v1476
  %v1491 = vpack.c.b16 %v1479, %v1478
  %v1492 = vpack.c.b16 %v1481, %v1480
  %v1493 = vpack.c.b16 %v1483, %v1482
  %v1494 = vpack.c.b16 %v1485, %v1484
  %v1495 = vpack.c.b16 %v1487, %v1486
  %1504 = vmatprep.subr.bf16.mxu0 0
  %1505 = vmatpush1.bf16.msra.mxu0 %v1488
  %1506 = vmatprep.subr.bf16.mxu0 0
  %1507 = vmatpush1.bf16.msra.mxu0 %v1489
  %1508 = vmatprep.subr.bf16.mxu0 0
  %1509 = vmatpush1.bf16.msra.mxu0 %v1490
  %1510 = vmatprep.subr.bf16.mxu0 0
  %1511 = vmatpush1.bf16.msra.mxu0 %v1491
  %1512 = vmatprep.subr.bf16.mxu0 0
  %1513 = vmatpush1.bf16.msra.mxu0 %v1492
  %1514 = vmatprep.subr.bf16.mxu0 0
  %1515 = vmatpush1.bf16.msra.mxu0 %v1493
  %1516 = vmatprep.subr.bf16.mxu0 0
  %1517 = vmatpush1.bf16.msra.mxu0 %v1494
  %1518 = vmatprep.subr.bf16.mxu0 0
  %1519 = vmatpush1.bf16.msra.mxu0 %v1495
  %1520 = vmatprep.subr.bf16.mxu0 0
  %1521 = vmatpush1.bf16.msra.mxu0 0
  %1522 = vmatprep.subr.bf16.mxu0 0
  %1523 = vmatpush1.bf16.msra.mxu0 0
  %1524 = vmatprep.subr.bf16.mxu0 0
  %1525 = vmatpush1.bf16.msra.mxu0 0
  %1526 = vmatprep.subr.bf16.mxu0 0
  %1527 = vmatpush1.bf16.msra.mxu0 0
  %1528 = vmatprep.subr.bf16.mxu0 0
  %1529 = vmatpush1.bf16.msra.mxu0 0
  %1530 = vmatprep.subr.bf16.mxu0 0
  %1531 = vmatpush1.bf16.msra.mxu0 0
  %1532 = vmatprep.subr.bf16.mxu0 0
  %1533 = vmatpush1.bf16.msra.mxu0 0
  %1534 = vmatprep.subr.bf16.mxu0 0
  %1535 = vmatpush1.bf16.msra.mxu0 0
  %1536 = vmatprep.mubr.bf16.mxu0 0
  %1537 = vmatmul.mubr.bf16.gmra.mrb[0].mxu0 %v1289
  %v1538 = vpop.f32.mrb[0].mxu0
  %v1539 = vadd.f32 0.0, %v1538
  %v1540 = vpop.f32.mrb[0].mxu0
  %v1541 = vpop.f32.mrb[0].mxu0
  %v1542 = vadd.f32 0.0, %v1541
  %v1543 = vpop.f32.mrb[0].mxu0
  %1544 = vmatprep.mubr.bf16.mxu0 0
  %1545 = vmatmul.mubr.bf16.gmra.mrb[0].mxu0 %v1290
  %v1546 = vpop.f32.mrb[0].mxu0
  %v1547 = vadd.f32 0.0, %v1546
  %v1548 = vpop.f32.mrb[0].mxu0
  %v1549 = vpop.f32.mrb[0].mxu0
  %v1550 = vadd.f32 0.0, %v1549
  %v1551 = vpop.f32.mrb[0].mxu0
  %1552 = vmatprep.mubr.bf16.mxu0 0
  %1553 = vmatmul.mubr.bf16.gmra.mrb[0].mxu0 %v1291
  %v1554 = vpop.f32.mrb[0].mxu0
  %v1555 = vadd.f32 0.0, %v1554
  %v1556 = vpop.f32.mrb[0].mxu0
  %v1557 = vpop.f32.mrb[0].mxu0
  %v1558 = vadd.f32 0.0, %v1557
  %v1559 = vpop.f32.mrb[0].mxu0
  %1560 = vmatprep.mubr.bf16.mxu0 0
  %1561 = vmatmul.mubr.bf16.gmra.mrb[0].mxu0 %v1292
  %v1562 = vpop.f32.mrb[0].mxu0
  %v1563 = vadd.f32 0.0, %v1562
  %v1564 = vpop.f32.mrb[0].mxu0
  %v1565 = vpop.f32.mrb[0].mxu0
  %v1566 = vadd.f32 0.0, %v1565
  %v1567 = vpop.f32.mrb[0].mxu0
  %1568 = vmatprep.mubr.bf16.mxu0 0
  %1569 = vmatmul.mubr.bf16.gmra.mrb[0].mxu0 %v1293
  %v1570 = vpop.f32.mrb[0].mxu0
  %v1571 = vadd.f32 0.0, %v1570
  %v1572 = vpop.f32.mrb[0].mxu0
  %v1573 = vpop.f32.mrb[0].mxu0
  %v1574 = vadd.f32 0.0, %v1573
  %v1575 = vpop.f32.mrb[0].mxu0
  %1576 = vmatprep.mubr.bf16.mxu0 0
  %1577 = vmatmul.mubr.bf16.gmra.mrb[0].mxu0 %v1294
  %v1578 = vpop.f32.mrb[0].mxu0
  %v1579 = vadd.f32 0.0, %v1578
  %v1580 = vpop.f32.mrb[0].mxu0
  %v1581 = vpop.f32.mrb[0].mxu0
  %v1582 = vadd.f32 0.0, %v1581
  %v1583 = vpop.f32.mrb[0].mxu0
  %1584 = vmatprep.mubr.bf16.mxu0 0
  %1585 = vmatmul.mubr.bf16.gmra.mrb[0].mxu0 %v1295
  %v1586 = vpop.f32.mrb[0].mxu0
  %v1587 = vadd.f32 0.0, %v1586
  %v1588 = vpop.f32.mrb[0].mxu0
  %v1589 = vpop.f32.mrb[0].mxu0
  %v1590 = vadd.f32 0.0, %v1589
  %v1591 = vpop.f32.mrb[0].mxu0
  %1592 = vmatprep.mubr.bf16.mxu0 0
  %1593 = vmatmul.mubr.bf16.gmra.mrb[0].mxu0 %v1296
  %v1594 = vpop.f32.mrb[0].mxu0
  %v1595 = vadd.f32 0.0, %v1594
  %v1596 = vpop.f32.mrb[0].mxu0
  %v1597 = vpop.f32.mrb[0].mxu0
  %v1598 = vadd.f32 0.0, %v1597
  %v1599 = vpop.f32.mrb[0].mxu0
  %1600 = vdwg.mxu0
  %v1601 = vpack.c.bf16 %v1542, %v1539
  %v1602 = vpack.c.bf16 %v1550, %v1547
  %v1603 = vpack.c.bf16 %v1558, %v1555
  %v1604 = vpack.c.bf16 %v1566, %v1563
  %v1605 = vpack.c.bf16 %v1574, %v1571
  %v1606 = vpack.c.bf16 %v1582, %v1579
  %v1607 = vpack.c.bf16 %v1590, %v1587
  %v1608 = vpack.c.bf16 %v1598, %v1595
  %v1625 = vunpack.c.l.b16 %v1440
  %v1626 = vunpack.c.l.b16 %v1441
  %v1627 = vunpack.c.l.b16 %v1442
  %v1628 = vunpack.c.l.b16 %v1443
  %v1629 = vunpack.c.l.b16 %v1444
  %v1630 = vunpack.c.l.b16 %v1445
  %v1631 = vunpack.c.l.b16 %v1446
  %v1632 = vunpack.c.l.b16 %v1447
  %v1633 = vunpack.c.l.b16 %v1448
  %v1634 = vunpack.c.l.b16 %v1449
  %v1635 = vunpack.c.l.b16 %v1450
  %v1636 = vunpack.c.l.b16 %v1451
  %v1637 = vunpack.c.l.b16 %v1452
  %v1638 = vunpack.c.l.b16 %v1453
  %v1639 = vunpack.c.l.b16 %v1454
  %v1640 = vunpack.c.l.b16 %v1455
  %v1641 = vpack.c.b16 %v1626, %v1625
  %v1642 = vpack.c.b16 %v1628, %v1627
  %v1643 = vpack.c.b16 %v1630, %v1629
  %v1644 = vpack.c.b16 %v1632, %v1631
  %v1645 = vpack.c.b16 %v1634, %v1633
  %v1646 = vpack.c.b16 %v1636, %v1635
  %v1647 = vpack.c.b16 %v1638, %v1637
  %v1648 = vpack.c.b16 %v1640, %v1639
  %1657 = vmatprep.subr.bf16.mxu0 0
  %1658 = vmatpush1.bf16.msra.mxu0 %v1641
  %1659 = vmatprep.subr.bf16.mxu0 0
  %1660 = vmatpush1.bf16.msra.mxu0 %v1642
  %1661 = vmatprep.subr.bf16.mxu0 0
  %1662 = vmatpush1.bf16.msra.mxu0 %v1643
  %1663 = vmatprep.subr.bf16.mxu0 0
  %1664 = vmatpush1.bf16.msra.mxu0 %v1644
  %1665 = vmatprep.subr.bf16.mxu0 0
  %1666 = vmatpush1.bf16.msra.mxu0 %v1645
  %1667 = vmatprep.subr.bf16.mxu0 0
  %1668 = vmatpush1.bf16.msra.mxu0 %v1646
  %1669 = vmatprep.subr.bf16.mxu0 0
  %1670 = vmatpush1.bf16.msra.mxu0 %v1647
  %1671 = vmatprep.subr.bf16.mxu0 0
  %1672 = vmatpush1.bf16.msra.mxu0 %v1648
  %1673 = vmatprep.subr.bf16.mxu0 0
  %1674 = vmatpush1.bf16.msra.mxu0 0
  %1675 = vmatprep.subr.bf16.mxu0 0
  %1676 = vmatpush1.bf16.msra.mxu0 0
  %1677 = vmatprep.subr.bf16.mxu0 0
  %1678 = vmatpush1.bf16.msra.mxu0 0
  %1679 = vmatprep.subr.bf16.mxu0 0
  %1680 = vmatpush1.bf16.msra.mxu0 0
  %1681 = vmatprep.subr.bf16.mxu0 0
  %1682 = vmatpush1.bf16.msra.mxu0 0
  %1683 = vmatprep.subr.bf16.mxu0 0
  %1684 = vmatpush1.bf16.msra.mxu0 0
  %1685 = vmatprep.subr.bf16.mxu0 0
  %1686 = vmatpush1.bf16.msra.mxu0 0
  %1687 = vmatprep.subr.bf16.mxu0 0
  %1688 = vmatpush1.bf16.msra.mxu0 0
  %1689 = vmatprep.mubr.bf16.mxu0 0
  %1690 = vmatmul.mubr.bf16.gmra.mrb[0].mxu0 %v1414
  %v1691 = vpop.f32.mrb[0].mxu0
  %v1692 = vadd.f32 0.0, %v1691
  %v1693 = vpop.f32.mrb[0].mxu0
  %v1694 = vpop.f32.mrb[0].mxu0
  %v1695 = vadd.f32 0.0, %v1694
  %v1696 = vpop.f32.mrb[0].mxu0
  %1697 = vmatprep.mubr.bf16.mxu0 0
  %1698 = vmatmul.mubr.bf16.gmra.mrb[0].mxu0 %v1415
  %v1699 = vpop.f32.mrb[0].mxu0
  %v1700 = vadd.f32 0.0, %v1699
  %v1701 = vpop.f32.mrb[0].mxu0
  %v1702 = vpop.f32.mrb[0].mxu0
  %v1703 = vadd.f32 0.0, %v1702
  %v1704 = vpop.f32.mrb[0].mxu0
  %1705 = vmatprep.mubr.bf16.mxu0 0
  %1706 = vmatmul.mubr.bf16.gmra.mrb[0].mxu0 %v1416
  %v1707 = vpop.f32.mrb[0].mxu0
  %v1708 = vadd.f32 0.0, %v1707
  %v1709 = vpop.f32.mrb[0].mxu0
  %v1710 = vpop.f32.mrb[0].mxu0
  %v1711 = vadd.f32 0.0, %v1710
  %v1712 = vpop.f32.mrb[0].mxu0
  %1713 = vmatprep.mubr.bf16.mxu0 0
  %1714 = vmatmul.mubr.bf16.gmra.mrb[0].mxu0 %v1417
  %v1715 = vpop.f32.mrb[0].mxu0
  %v1716 = vadd.f32 0.0, %v1715
  %v1717 = vpop.f32.mrb[0].mxu0
  %v1718 = vpop.f32.mrb[0].mxu0
  %v1719 = vadd.f32 0.0, %v1718
  %v1720 = vpop.f32.mrb[0].mxu0
  %1721 = vmatprep.mubr.bf16.mxu0 0
  %1722 = vmatmul.mubr.bf16.gmra.mrb[0].mxu0 %v1418
  %v1723 = vpop.f32.mrb[0].mxu0
  %v1724 = vadd.f32 0.0, %v1723
  %v1725 = vpop.f32.mrb[0].mxu0
  %v1726 = vpop.f32.mrb[0].mxu0
  %v1727 = vadd.f32 0.0, %v1726
  %v1728 = vpop.f32.mrb[0].mxu0
  %1729 = vmatprep.mubr.bf16.mxu0 0
  %1730 = vmatmul.mubr.bf16.gmra.mrb[0].mxu0 %v1419
  %v1731 = vpop.f32.mrb[0].mxu0
  %v1732 = vadd.f32 0.0, %v1731
  %v1733 = vpop.f32.mrb[0].mxu0
  %v1734 = vpop.f32.mrb[0].mxu0
  %v1735 = vadd.f32 0.0, %v1734
  %v1736 = vpop.f32.mrb[0].mxu0
  %1737 = vmatprep.mubr.bf16.mxu0 0
  %1738 = vmatmul.mubr.bf16.gmra.mrb[0].mxu0 %v1420
  %v1739 = vpop.f32.mrb[0].mxu0
  %v1740 = vadd.f32 0.0, %v1739
  %v1741 = vpop.f32.mrb[0].mxu0
  %v1742 = vpop.f32.mrb[0].mxu0
  %v1743 = vadd.f32 0.0, %v1742
  %v1744 = vpop.f32.mrb[0].mxu0
  %1745 = vmatprep.mubr.bf16.mxu0 0
  %1746 = vmatmul.mubr.bf16.gmra.mrb[0].mxu0 %v1421
  %v1747 = vpop.f32.mrb[0].mxu0
  %v1748 = vadd.f32 0.0, %v1747
  %v1749 = vpop.f32.mrb[0].mxu0
  %v1750 = vpop.f32.mrb[0].mxu0
  %v1751 = vadd.f32 0.0, %v1750
  %v1752 = vpop.f32.mrb[0].mxu0
  %1753 = vdwg.mxu0
  %v1754 = vpack.c.bf16 %v1695, %v1692
  %v1755 = vpack.c.bf16 %v1703, %v1700
  %v1756 = vpack.c.bf16 %v1711, %v1708
  %v1757 = vpack.c.bf16 %v1719, %v1716
  %v1758 = vpack.c.bf16 %v1727, %v1724
  %v1759 = vpack.c.bf16 %v1735, %v1732
  %v1760 = vpack.c.bf16 %v1743, %v1740
  %v1761 = vpack.c.bf16 %v1751, %v1748
  %v1762 = vlaneseq
  %v1763 = vshrl.u32 %v1762, 7
  %v1764 = vsub.s32 4, %v1763
  %v1765 = vrot.slane %v98, %v1764
  %1766 = vmatprep.subr.bf16.mxu0 0
  %1767 = vmatpush1.bf16.msra.mxu0 %v1601
  %1768 = vmatprep.subr.bf16.mxu0 0
  %1769 = vmatpush1.bf16.msra.mxu0 %v1602
  %1770 = vmatprep.subr.bf16.mxu0 0
  %1771 = vmatpush1.bf16.msra.mxu0 %v1603
  %1772 = vmatprep.subr.bf16.mxu0 0
  %1773 = vmatpush1.bf16.msra.mxu0 %v1604
  %1774 = vmatprep.subr.bf16.mxu0 0
  %1775 = vmatpush1.bf16.msra.mxu0 %v1605
  %1776 = vmatprep.subr.bf16.mxu0 0
  %1777 = vmatpush1.bf16.msra.mxu0 %v1606
  %1778 = vmatprep.subr.bf16.mxu0 0
  %1779 = vmatpush1.bf16.msra.mxu0 %v1607
  %1780 = vmatprep.subr.bf16.mxu0 0
  %1781 = vmatpush1.bf16.msra.mxu0 %v1608
  %1782 = vmatprep.subr.bf16.mxu0 0
  %1783 = vmatpush1.bf16.msra.mxu0 0
  %1784 = vmatprep.subr.bf16.mxu0 0
  %1785 = vmatpush1.bf16.msra.mxu0 0
  %1786 = vmatprep.subr.bf16.mxu0 0
  %1787 = vmatpush1.bf16.msra.mxu0 0
  %1788 = vmatprep.subr.bf16.mxu0 0
  %1789 = vmatpush1.bf16.msra.mxu0 0
  %1790 = vmatprep.subr.bf16.mxu0 0
  %1791 = vmatpush1.bf16.msra.mxu0 0
  %1792 = vmatprep.subr.bf16.mxu0 0
  %1793 = vmatpush1.bf16.msra.mxu0 0
  %1794 = vmatprep.subr.bf16.mxu0 0
  %1795 = vmatpush1.bf16.msra.mxu0 0
  %1796 = vmatprep.subr.bf16.mxu0 0
  %1797 = vmatpush1.bf16.msra.mxu0 0
  %1798 = vmatprep.mubr.bf16.mxu0 0
  %1799 = vmatmul.mubr.bf16.gmra.mrb[0].mxu0 %v522
  %v1800 = vpop.f32.mrb[0].mxu0
  %v1801 = vadd.f32 %v1765, %v1800
  %v1802 = vpop.f32.mrb[0].mxu0
  %v1803 = vpop.f32.mrb[0].mxu0
  %v1804 = vadd.f32 %v1765, %v1803
  %v1805 = vpop.f32.mrb[0].mxu0
  %1806 = vmatprep.mubr.bf16.mxu0 0
  %1807 = vmatmul.mubr.bf16.gmra.mrb[0].mxu0 %v523
  %v1808 = vpop.f32.mrb[0].mxu0
  %v1809 = vadd.f32 %v1765, %v1808
  %v1810 = vpop.f32.mrb[0].mxu0
  %v1811 = vpop.f32.mrb[0].mxu0
  %v1812 = vadd.f32 %v1765, %v1811
  %v1813 = vpop.f32.mrb[0].mxu0
  %1814 = vmatprep.mubr.bf16.mxu0 0
  %1815 = vmatmul.mubr.bf16.gmra.mrb[0].mxu0 %v524
  %v1816 = vpop.f32.mrb[0].mxu0
  %v1817 = vadd.f32 %v1765, %v1816
  %v1818 = vpop.f32.mrb[0].mxu0
  %v1819 = vpop.f32.mrb[0].mxu0
  %v1820 = vadd.f32 %v1765, %v1819
  %v1821 = vpop.f32.mrb[0].mxu0
  %1822 = vmatprep.mubr.bf16.mxu0 0
  %1823 = vmatmul.mubr.bf16.gmra.mrb[0].mxu0 %v525
  %v1824 = vpop.f32.mrb[0].mxu0
  %v1825 = vadd.f32 %v1765, %v1824
  %v1826 = vpop.f32.mrb[0].mxu0
  %v1827 = vpop.f32.mrb[0].mxu0
  %v1828 = vadd.f32 %v1765, %v1827
  %v1829 = vpop.f32.mrb[0].mxu0
  %1830 = vmatprep.mubr.bf16.mxu0 0
  %1831 = vmatmul.mubr.bf16.gmra.mrb[0].mxu0 %v526
  %v1832 = vpop.f32.mrb[0].mxu0
  %v1833 = vadd.f32 %v1765, %v1832
  %v1834 = vpop.f32.mrb[0].mxu0
  %v1835 = vpop.f32.mrb[0].mxu0
  %v1836 = vadd.f32 %v1765, %v1835
  %v1837 = vpop.f32.mrb[0].mxu0
  %1838 = vmatprep.mubr.bf16.mxu0 0
  %1839 = vmatmul.mubr.bf16.gmra.mrb[0].mxu0 %v527
  %v1840 = vpop.f32.mrb[0].mxu0
  %v1841 = vadd.f32 %v1765, %v1840
  %v1842 = vpop.f32.mrb[0].mxu0
  %v1843 = vpop.f32.mrb[0].mxu0
  %v1844 = vadd.f32 %v1765, %v1843
  %v1845 = vpop.f32.mrb[0].mxu0
  %1846 = vmatprep.mubr.bf16.mxu0 0
  %1847 = vmatmul.mubr.bf16.gmra.mrb[0].mxu0 %v528
  %v1848 = vpop.f32.mrb[0].mxu0
  %v1849 = vadd.f32 %v1765, %v1848
  %v1850 = vpop.f32.mrb[0].mxu0
  %v1851 = vpop.f32.mrb[0].mxu0
  %v1852 = vadd.f32 %v1765, %v1851
  %v1853 = vpop.f32.mrb[0].mxu0
  %1854 = vmatprep.mubr.bf16.mxu0 0
  %1855 = vmatmul.mubr.bf16.gmra.mrb[0].mxu0 %v529
  %v1856 = vpop.f32.mrb[0].mxu0
  %v1857 = vadd.f32 %v1765, %v1856
  %v1858 = vpop.f32.mrb[0].mxu0
  %v1859 = vpop.f32.mrb[0].mxu0
  %v1860 = vadd.f32 %v1765, %v1859
  %v1861 = vpop.f32.mrb[0].mxu0
  %1862 = vdwg.mxu0
  %v1863 = vmax.f32 %v1801, 0.0
  %v1864 = vmax.f32 %v1804, 0.0
  %v1865 = vmax.f32 %v1809, 0.0
  %v1866 = vmax.f32 %v1812, 0.0
  %v1867 = vmax.f32 %v1817, 0.0
  %v1868 = vmax.f32 %v1820, 0.0
  %v1869 = vmax.f32 %v1825, 0.0
  %v1870 = vmax.f32 %v1828, 0.0
  %v1871 = vmax.f32 %v1833, 0.0
  %v1872 = vmax.f32 %v1836, 0.0
  %v1873 = vmax.f32 %v1841, 0.0
  %v1874 = vmax.f32 %v1844, 0.0
  %v1875 = vmax.f32 %v1849, 0.0
  %v1876 = vmax.f32 %v1852, 0.0
  %v1877 = vmax.f32 %v1857, 0.0
  %v1878 = vmax.f32 %v1860, 0.0
  %v1879 = vpack.c.bf16 %v1864, %v1863
  %v1880 = vpack.c.bf16 %v1866, %v1865
  %v1881 = vpack.c.bf16 %v1868, %v1867
  %v1882 = vpack.c.bf16 %v1870, %v1869
  %v1883 = vpack.c.bf16 %v1872, %v1871
  %v1884 = vpack.c.bf16 %v1874, %v1873
  %v1885 = vpack.c.bf16 %v1876, %v1875
  %v1886 = vpack.c.bf16 %v1878, %v1877
  %v1887 = vlaneseq
  %v1888 = vshrl.u32 %v1887, 7
  %v1889 = vsub.s32 5, %v1888
  %v1890 = vrot.slane %v98, %v1889
  %1891 = vmatprep.subr.bf16.mxu0 0
  %1892 = vmatpush1.bf16.msra.mxu0 %v1754
  %1893 = vmatprep.subr.bf16.mxu0 0
  %1894 = vmatpush1.bf16.msra.mxu0 %v1755
  %1895 = vmatprep.subr.bf16.mxu0 0
  %1896 = vmatpush1.bf16.msra.mxu0 %v1756
  %1897 = vmatprep.subr.bf16.mxu0 0
  %1898 = vmatpush1.bf16.msra.mxu0 %v1757
  %1899 = vmatprep.subr.bf16.mxu0 0
  %1900 = vmatpush1.bf16.msra.mxu0 %v1758
  %1901 = vmatprep.subr.bf16.mxu0 0
  %1902 = vmatpush1.bf16.msra.mxu0 %v1759
  %1903 = vmatprep.subr.bf16.mxu0 0
  %1904 = vmatpush1.bf16.msra.mxu0 %v1760
  %1905 = vmatprep.subr.bf16.mxu0 0
  %1906 = vmatpush1.bf16.msra.mxu0 %v1761
  %1907 = vmatprep.subr.bf16.mxu0 0
  %1908 = vmatpush1.bf16.msra.mxu0 0
  %1909 = vmatprep.subr.bf16.mxu0 0
  %1910 = vmatpush1.bf16.msra.mxu0 0
  %1911 = vmatprep.subr.bf16.mxu0 0
  %1912 = vmatpush1.bf16.msra.mxu0 0
  %1913 = vmatprep.subr.bf16.mxu0 0
  %1914 = vmatpush1.bf16.msra.mxu0 0
  %1915 = vmatprep.subr.bf16.mxu0 0
  %1916 = vmatpush1.bf16.msra.mxu0 0
  %1917 = vmatprep.subr.bf16.mxu0 0
  %1918 = vmatpush1.bf16.msra.mxu0 0
  %1919 = vmatprep.subr.bf16.mxu0 0
  %1920 = vmatpush1.bf16.msra.mxu0 0
  %1921 = vmatprep.subr.bf16.mxu0 0
  %1922 = vmatpush1.bf16.msra.mxu0 0
  %1923 = vmatprep.mubr.bf16.mxu0 0
  %1924 = vmatmul.mubr.bf16.gmra.mrb[0].mxu0 %v695
  %v1925 = vpop.f32.mrb[0].mxu0
  %v1926 = vadd.f32 %v1890, %v1925
  %v1927 = vpop.f32.mrb[0].mxu0
  %v1928 = vpop.f32.mrb[0].mxu0
  %v1929 = vadd.f32 %v1890, %v1928
  %v1930 = vpop.f32.mrb[0].mxu0
  %1931 = vmatprep.mubr.bf16.mxu0 0
  %1932 = vmatmul.mubr.bf16.gmra.mrb[0].mxu0 %v696
  %v1933 = vpop.f32.mrb[0].mxu0
  %v1934 = vadd.f32 %v1890, %v1933
  %v1935 = vpop.f32.mrb[0].mxu0
  %v1936 = vpop.f32.mrb[0].mxu0
  %v1937 = vadd.f32 %v1890, %v1936
  %v1938 = vpop.f32.mrb[0].mxu0
  %1939 = vmatprep.mubr.bf16.mxu0 0
  %1940 = vmatmul.mubr.bf16.gmra.mrb[0].mxu0 %v697
  %v1941 = vpop.f32.mrb[0].mxu0
  %v1942 = vadd.f32 %v1890, %v1941
  %v1943 = vpop.f32.mrb[0].mxu0
  %v1944 = vpop.f32.mrb[0].mxu0
  %v1945 = vadd.f32 %v1890, %v1944
  %v1946 = vpop.f32.mrb[0].mxu0
  %1947 = vmatprep.mubr.bf16.mxu0 0
  %1948 = vmatmul.mubr.bf16.gmra.mrb[0].mxu0 %v698
  %v1949 = vpop.f32.mrb[0].mxu0
  %v1950 = vadd.f32 %v1890, %v1949
  %v1951 = vpop.f32.mrb[0].mxu0
  %v1952 = vpop.f32.mrb[0].mxu0
  %v1953 = vadd.f32 %v1890, %v1952
  %v1954 = vpop.f32.mrb[0].mxu0
  %1955 = vmatprep.mubr.bf16.mxu0 0
  %1956 = vmatmul.mubr.bf16.gmra.mrb[0].mxu0 %v699
  %v1957 = vpop.f32.mrb[0].mxu0
  %v1958 = vadd.f32 %v1890, %v1957
  %v1959 = vpop.f32.mrb[0].mxu0
  %v1960 = vpop.f32.mrb[0].mxu0
  %v1961 = vadd.f32 %v1890, %v1960
  %v1962 = vpop.f32.mrb[0].mxu0
  %1963 = vmatprep.mubr.bf16.mxu0 0
  %1964 = vmatmul.mubr.bf16.gmra.mrb[0].mxu0 %v700
  %v1965 = vpop.f32.mrb[0].mxu0
  %v1966 = vadd.f32 %v1890, %v1965
  %v1967 = vpop.f32.mrb[0].mxu0
  %v1968 = vpop.f32.mrb[0].mxu0
  %v1969 = vadd.f32 %v1890, %v1968
  %v1970 = vpop.f32.mrb[0].mxu0
  %1971 = vmatprep.mubr.bf16.mxu0 0
  %1972 = vmatmul.mubr.bf16.gmra.mrb[0].mxu0 %v701
  %v1973 = vpop.f32.mrb[0].mxu0
  %v1974 = vadd.f32 %v1890, %v1973
  %v1975 = vpop.f32.mrb[0].mxu0
  %v1976 = vpop.f32.mrb[0].mxu0
  %v1977 = vadd.f32 %v1890, %v1976
  %v1978 = vpop.f32.mrb[0].mxu0
  %1979 = vmatprep.mubr.bf16.mxu0 0
  %1980 = vmatmul.mubr.bf16.gmra.mrb[0].mxu0 %v702
  %v1981 = vpop.f32.mrb[0].mxu0
  %v1982 = vadd.f32 %v1890, %v1981
  %v1983 = vpop.f32.mrb[0].mxu0
  %v1984 = vpop.f32.mrb[0].mxu0
  %v1985 = vadd.f32 %v1890, %v1984
  %v1986 = vpop.f32.mrb[0].mxu0
  %1987 = vdwg.mxu0
  %v1988 = vmax.f32 %v1926, 0.0
  %v1989 = vmax.f32 %v1929, 0.0
  %v1990 = vmax.f32 %v1934, 0.0
  %v1991 = vmax.f32 %v1937, 0.0
  %v1992 = vmax.f32 %v1942, 0.0
  %v1993 = vmax.f32 %v1945, 0.0
  %v1994 = vmax.f32 %v1950, 0.0
  %v1995 = vmax.f32 %v1953, 0.0
  %v1996 = vmax.f32 %v1958, 0.0
  %v1997 = vmax.f32 %v1961, 0.0
  %v1998 = vmax.f32 %v1966, 0.0
  %v1999 = vmax.f32 %v1969, 0.0
  %v2000 = vmax.f32 %v1974, 0.0
  %v2001 = vmax.f32 %v1977, 0.0
  %v2002 = vmax.f32 %v1982, 0.0
  %v2003 = vmax.f32 %v1985, 0.0
  %v2004 = vpack.c.bf16 %v1989, %v1988
  %v2005 = vpack.c.bf16 %v1991, %v1990
  %v2006 = vpack.c.bf16 %v1993, %v1992
  %v2007 = vpack.c.bf16 %v1995, %v1994
  %v2008 = vpack.c.bf16 %v1997, %v1996
  %v2009 = vpack.c.bf16 %v1999, %v1998
  %v2010 = vpack.c.bf16 %v2001, %v2000
  %v2011 = vpack.c.bf16 %v2003, %v2002
  %v2012 = vunpack.c.l.bf16 %v1879
  %v2013 = vunpack.c.l.bf16 %v2004
  %v2014 = vunpack.c.h.bf16 %v1879
  %v2015 = vunpack.c.h.bf16 %v2004
  %v2016 = vunpack.c.l.bf16 %v1880
  %v2017 = vunpack.c.l.bf16 %v2005
  %v2018 = vunpack.c.h.bf16 %v1880
  %v2019 = vunpack.c.h.bf16 %v2005
  %v2020 = vunpack.c.l.bf16 %v1881
  %v2021 = vunpack.c.l.bf16 %v2006
  %v2022 = vunpack.c.h.bf16 %v1881
  %v2023 = vunpack.c.h.bf16 %v2006
  %v2024 = vunpack.c.l.bf16 %v1882
  %v2025 = vunpack.c.l.bf16 %v2007
  %v2026 = vunpack.c.h.bf16 %v1882
  %v2027 = vunpack.c.h.bf16 %v2007
  %v2028 = vunpack.c.l.bf16 %v1883
  %v2029 = vunpack.c.l.bf16 %v2008
  %v2030 = vunpack.c.h.bf16 %v1883
  %v2031 = vunpack.c.h.bf16 %v2008
  %v2032 = vunpack.c.l.bf16 %v1884
  %v2033 = vunpack.c.l.bf16 %v2009
  %v2034 = vunpack.c.h.bf16 %v1884
  %v2035 = vunpack.c.h.bf16 %v2009
  %v2036 = vunpack.c.l.bf16 %v1885
  %v2037 = vunpack.c.l.bf16 %v2010
  %v2038 = vunpack.c.h.bf16 %v1885
  %v2039 = vunpack.c.h.bf16 %v2010
  %v2040 = vunpack.c.l.bf16 %v1886
  %v2041 = vunpack.c.l.bf16 %v2011
  %v2042 = vunpack.c.h.bf16 %v1886
  %v2043 = vunpack.c.h.bf16 %v2011
  %2045 = vset.pattern.permute.xlu0 0
  %2046 = vperm.xlu0 %2045, %v65
  %v2047 = vpop.permute.xlu0 %2046
  %2050 = vset.pattern.permute.xlu0 0
  %2051 = vperm.xlu0 %2050, %v66
  %v2052 = vpop.permute.xlu0 %2051
  %2055 = vset.pattern.permute.xlu0 0
  %2056 = vperm.xlu0 %2055, %v67
  %v2057 = vpop.permute.xlu0 %2056
  %2060 = vset.pattern.permute.xlu0 0
  %2061 = vperm.xlu0 %2060, %v68
  %v2062 = vpop.permute.xlu0 %2061
  %2065 = vset.pattern.permute.xlu0 0
  %2066 = vperm.xlu0 %2065, %v69
  %v2067 = vpop.permute.xlu0 %2066
  %2070 = vset.pattern.permute.xlu0 0
  %2071 = vperm.xlu0 %2070, %v70
  %v2072 = vpop.permute.xlu0 %2071
  %2075 = vset.pattern.permute.xlu0 0
  %2076 = vperm.xlu0 %2075, %v71
  %v2077 = vpop.permute.xlu0 %2076
  %2080 = vset.pattern.permute.xlu0 0
  %2081 = vperm.xlu0 %2080, %v72
  %v2082 = vpop.permute.xlu0 %2081
  %2085 = vset.pattern.permute.xlu0 0
  %2086 = vperm.xlu0 %2085, %v73
  %v2087 = vpop.permute.xlu0 %2086
  %2090 = vset.pattern.permute.xlu0 0
  %2091 = vperm.xlu0 %2090, %v74
  %v2092 = vpop.permute.xlu0 %2091
  %2095 = vset.pattern.permute.xlu0 0
  %2096 = vperm.xlu0 %2095, %v75
  %v2097 = vpop.permute.xlu0 %2096
  %2100 = vset.pattern.permute.xlu0 0
  %2101 = vperm.xlu0 %2100, %v76
  %v2102 = vpop.permute.xlu0 %2101
  %2105 = vset.pattern.permute.xlu0 0
  %2106 = vperm.xlu0 %2105, %v77
  %v2107 = vpop.permute.xlu0 %2106
  %2110 = vset.pattern.permute.xlu0 0
  %2111 = vperm.xlu0 %2110, %v78
  %v2112 = vpop.permute.xlu0 %2111
  %2115 = vset.pattern.permute.xlu0 0
  %2116 = vperm.xlu0 %2115, %v79
  %v2117 = vpop.permute.xlu0 %2116
  %2120 = vset.pattern.permute.xlu0 0
  %2121 = vperm.xlu0 %2120, %v80
  %v2122 = vpop.permute.xlu0 %2121
  %v2124 = vmul.f32 %v2012, %v2047
  %v2125 = vmul.f32 %v2013, %v2047
  %v2126 = vmul.f32 %v2014, %v2052
  %v2127 = vmul.f32 %v2015, %v2052
  %v2128 = vmul.f32 %v2016, %v2057
  %v2129 = vmul.f32 %v2017, %v2057
  %v2130 = vmul.f32 %v2018, %v2062
  %v2131 = vmul.f32 %v2019, %v2062
  %v2132 = vmul.f32 %v2020, %v2067
  %v2133 = vmul.f32 %v2021, %v2067
  %v2134 = vmul.f32 %v2022, %v2072
  %v2135 = vmul.f32 %v2023, %v2072
  %v2136 = vmul.f32 %v2024, %v2077
  %v2137 = vmul.f32 %v2025, %v2077
  %v2138 = vmul.f32 %v2026, %v2082
  %v2139 = vmul.f32 %v2027, %v2082
  %v2140 = vmul.f32 %v2028, %v2087
  %v2141 = vmul.f32 %v2029, %v2087
  %v2142 = vmul.f32 %v2030, %v2092
  %v2143 = vmul.f32 %v2031, %v2092
  %v2144 = vmul.f32 %v2032, %v2097
  %v2145 = vmul.f32 %v2033, %v2097
  %v2146 = vmul.f32 %v2034, %v2102
  %v2147 = vmul.f32 %v2035, %v2102
  %v2148 = vmul.f32 %v2036, %v2107
  %v2149 = vmul.f32 %v2037, %v2107
  %v2150 = vmul.f32 %v2038, %v2112
  %v2151 = vmul.f32 %v2039, %v2112
  %v2152 = vmul.f32 %v2040, %v2117
  %v2153 = vmul.f32 %v2041, %v2117
  %v2154 = vmul.f32 %v2042, %v2122
  %v2155 = vmul.f32 %v2043, %v2122
  %v2156 = vadd.f32 %v2124, %v2126
  %v2157 = vadd.f32 %v2156, %v2128
  %v2158 = vadd.f32 %v2157, %v2130
  %v2159 = vadd.f32 %v2158, %v2132
  %v2160 = vadd.f32 %v2159, %v2134
  %v2161 = vadd.f32 %v2160, %v2136
  %v2162 = vadd.f32 %v2161, %v2138
  %v2163 = vadd.f32 %v2162, %v2140
  %v2164 = vadd.f32 %v2163, %v2142
  %v2165 = vadd.f32 %v2164, %v2144
  %v2166 = vadd.f32 %v2165, %v2146
  %v2167 = vadd.f32 %v2166, %v2148
  %v2168 = vadd.f32 %v2167, %v2150
  %v2169 = vadd.f32 %v2168, %v2152
  %v2170 = vadd.f32 %v2169, %v2154
  %v2171 = vrot.slane %v2170, 4
  %v2172 = vadd.f32 %v2170, %v2171
  %v2173 = vrot.slane %v2172, 2
  %v2174 = vadd.f32 %v2172, %v2173
  %v2175 = vrot.slane %v2174, 1
  %v2176 = vadd.f32 %v2174, %v2175
  %v2177 = vadd.f32 %v2125, %v2127
  %v2178 = vadd.f32 %v2177, %v2129
  %v2179 = vadd.f32 %v2178, %v2131
  %v2180 = vadd.f32 %v2179, %v2133
  %v2181 = vadd.f32 %v2180, %v2135
  %v2182 = vadd.f32 %v2181, %v2137
  %v2183 = vadd.f32 %v2182, %v2139
  %v2184 = vadd.f32 %v2183, %v2141
  %v2185 = vadd.f32 %v2184, %v2143
  %v2186 = vadd.f32 %v2185, %v2145
  %v2187 = vadd.f32 %v2186, %v2147
  %v2188 = vadd.f32 %v2187, %v2149
  %v2189 = vadd.f32 %v2188, %v2151
  %v2190 = vadd.f32 %v2189, %v2153
  %v2191 = vadd.f32 %v2190, %v2155
  %v2192 = vrot.slane %v2191, 4
  %v2193 = vadd.f32 %v2191, %v2192
  %v2194 = vrot.slane %v2193, 2
  %v2195 = vadd.f32 %v2193, %v2194
  %v2196 = vrot.slane %v2195, 1
  %v2197 = vadd.f32 %v2195, %v2196
  %v2198 = vpack.c.bf16 %v2176, %v2176
  %v2199 = vpack.c.bf16 %v2197, %v2197
  %v2200 = vld [vmem:[%s7] sm:$0xff]
  %v2201 = vld [vmem:[%s7 + $0x8] sm:$0xff]
  %v2202 = vld [vmem:[%s7 + $0x10] sm:$0xff]
  %v2203 = vld [vmem:[%s7 + $0x18] sm:$0xff]
  %v2204 = vld [vmem:[%s7 + $0x20] sm:$0xff]
  %v2205 = vld [vmem:[%s7 + $0x28] sm:$0xff]
  %v2206 = vld [vmem:[%s7 + $0x30] sm:$0xff]
  %v2207 = vld [vmem:[%s7 + $0x38] sm:$0xff]
  %v2208 = vld [vmem:[%s7 + $0x40] sm:$0xff]
  %v2209 = vld [vmem:[%s7 + $0x48] sm:$0xff]
  %v2210 = vld [vmem:[%s7 + $0x50] sm:$0xff]
  %v2211 = vld [vmem:[%s7 + $0x58] sm:$0xff]
  %v2212 = vld [vmem:[%s7 + $0x60] sm:$0xff]
  %v2213 = vld [vmem:[%s7 + $0x68] sm:$0xff]
  %v2214 = vld [vmem:[%s7 + $0x70] sm:$0xff]
  %v2215 = vld [vmem:[%s7 + $0x78] sm:$0xff]
  %v2216 = vld [vmem:[%s7 + $0x80] sm:$0xff]
  %v2217 = vld [vmem:[%s7 + $0x88] sm:$0xff]
  %v2218 = vld [vmem:[%s7 + $0x90] sm:$0xff]
  %v2219 = vld [vmem:[%s7 + $0x98] sm:$0xff]
  %v2220 = vld [vmem:[%s7 + $0xa0] sm:$0xff]
  %v2221 = vld [vmem:[%s7 + $0xa8] sm:$0xff]
  %v2222 = vld [vmem:[%s7 + $0xb0] sm:$0xff]
  %v2223 = vld [vmem:[%s7 + $0xb8] sm:$0xff]
  %v2224 = vld [vmem:[%s7 + $0xc0] sm:$0xff]
  %v2225 = vld [vmem:[%s7 + $0xc8] sm:$0xff]
  %v2226 = vld [vmem:[%s7 + $0xd0] sm:$0xff]
  %v2227 = vld [vmem:[%s7 + $0xd8] sm:$0xff]
  %v2228 = vld [vmem:[%s7 + $0xe0] sm:$0xff]
  %v2229 = vld [vmem:[%s7 + $0xe8] sm:$0xff]
  %v2230 = vld [vmem:[%s7 + $0xf0] sm:$0xff]
  %v2231 = vld [vmem:[%s7 + $0xf8] sm:$0xff]
  %s2232 = scalar_lea.vmem %s7, 256
  %v2233 = vld [vmem:[%s2232] sm:$0xff]
  %v2234 = vld [vmem:[%s2232 + $0x8] sm:$0xff]
  %v2235 = vld [vmem:[%s2232 + $0x10] sm:$0xff]
  %v2236 = vld [vmem:[%s2232 + $0x18] sm:$0xff]
  %v2237 = vld [vmem:[%s2232 + $0x20] sm:$0xff]
  %v2238 = vld [vmem:[%s2232 + $0x28] sm:$0xff]
  %v2239 = vld [vmem:[%s2232 + $0x30] sm:$0xff]
  %v2240 = vld [vmem:[%s2232 + $0x38] sm:$0xff]
  %v2241 = vld [vmem:[%s2232 + $0x40] sm:$0xff]
  %v2242 = vld [vmem:[%s2232 + $0x48] sm:$0xff]
  %v2243 = vld [vmem:[%s2232 + $0x50] sm:$0xff]
  %v2244 = vld [vmem:[%s2232 + $0x58] sm:$0xff]
  %v2245 = vld [vmem:[%s2232 + $0x60] sm:$0xff]
  %v2246 = vld [vmem:[%s2232 + $0x68] sm:$0xff]
  %v2247 = vld [vmem:[%s2232 + $0x70] sm:$0xff]
  %v2248 = vld [vmem:[%s2232 + $0x78] sm:$0xff]
  %v2249 = vld [vmem:[%s2232 + $0x80] sm:$0xff]
  %v2250 = vld [vmem:[%s2232 + $0x88] sm:$0xff]
  %v2251 = vld [vmem:[%s2232 + $0x90] sm:$0xff]
  %v2252 = vld [vmem:[%s2232 + $0x98] sm:$0xff]
  %v2253 = vld [vmem:[%s2232 + $0xa0] sm:$0xff]
  %v2254 = vld [vmem:[%s2232 + $0xa8] sm:$0xff]
  %v2255 = vld [vmem:[%s2232 + $0xb0] sm:$0xff]
  %v2256 = vld [vmem:[%s2232 + $0xb8] sm:$0xff]
  %v2257 = vld [vmem:[%s2232 + $0xc0] sm:$0xff]
  %v2258 = vld [vmem:[%s2232 + $0xc8] sm:$0xff]
  %v2259 = vld [vmem:[%s2232 + $0xd0] sm:$0xff]
  %v2260 = vld [vmem:[%s2232 + $0xd8] sm:$0xff]
  %v2261 = vld [vmem:[%s2232 + $0xe0] sm:$0xff]
  %v2262 = vld [vmem:[%s2232 + $0xe8] sm:$0xff]
  %v2263 = vld [vmem:[%s2232 + $0xf0] sm:$0xff]
  %v2264 = vld [vmem:[%s2232 + $0xf8] sm:$0xff]
  %s2265 = scalar_lea.vmem %s7, 512
  %v2266 = vld [vmem:[%s2265] sm:$0xff]
  %v2267 = vld [vmem:[%s2265 + $0x8] sm:$0xff]
  %v2268 = vld [vmem:[%s2265 + $0x10] sm:$0xff]
  %v2269 = vld [vmem:[%s2265 + $0x18] sm:$0xff]
  %v2270 = vld [vmem:[%s2265 + $0x20] sm:$0xff]
  %v2271 = vld [vmem:[%s2265 + $0x28] sm:$0xff]
  %v2272 = vld [vmem:[%s2265 + $0x30] sm:$0xff]
  %v2273 = vld [vmem:[%s2265 + $0x38] sm:$0xff]
  %v2274 = vld [vmem:[%s2265 + $0x40] sm:$0xff]
  %v2275 = vld [vmem:[%s2265 + $0x48] sm:$0xff]
  %v2276 = vld [vmem:[%s2265 + $0x50] sm:$0xff]
  %v2277 = vld [vmem:[%s2265 + $0x58] sm:$0xff]
  %v2278 = vld [vmem:[%s2265 + $0x60] sm:$0xff]
  %v2279 = vld [vmem:[%s2265 + $0x68] sm:$0xff]
  %v2280 = vld [vmem:[%s2265 + $0x70] sm:$0xff]
  %v2281 = vld [vmem:[%s2265 + $0x78] sm:$0xff]
  %v2282 = vld [vmem:[%s2265 + $0x80] sm:$0xff]
  %v2283 = vld [vmem:[%s2265 + $0x88] sm:$0xff]
  %v2284 = vld [vmem:[%s2265 + $0x90] sm:$0xff]
  %v2285 = vld [vmem:[%s2265 + $0x98] sm:$0xff]
  %v2286 = vld [vmem:[%s2265 + $0xa0] sm:$0xff]
  %v2287 = vld [vmem:[%s2265 + $0xa8] sm:$0xff]
  %v2288 = vld [vmem:[%s2265 + $0xb0] sm:$0xff]
  %v2289 = vld [vmem:[%s2265 + $0xb8] sm:$0xff]
  %v2290 = vld [vmem:[%s2265 + $0xc0] sm:$0xff]
  %v2291 = vld [vmem:[%s2265 + $0xc8] sm:$0xff]
  %v2292 = vld [vmem:[%s2265 + $0xd0] sm:$0xff]
  %v2293 = vld [vmem:[%s2265 + $0xd8] sm:$0xff]
  %v2294 = vld [vmem:[%s2265 + $0xe0] sm:$0xff]
  %v2295 = vld [vmem:[%s2265 + $0xe8] sm:$0xff]
  %v2296 = vld [vmem:[%s2265 + $0xf0] sm:$0xff]
  %v2297 = vld [vmem:[%s2265 + $0xf8] sm:$0xff]
  %v2298 = vld [vmem:[%s8] sm:$0xff]
  %v2299 = vld [vmem:[%s8 + $0x8] sm:$0xff]
  %s2300 = scalar_lea.vmem %s8, 16
  %v2301 = vld [vmem:[%s2300] sm:$0xff]
  %v2302 = vld [vmem:[%s2300 + $0x8] sm:$0xff]
  %s2303 = scalar_lea.vmem %s8, 32
  %v2304 = vld [vmem:[%s2303] sm:$0xff]
  %v2305 = vld [vmem:[%s2303 + $0x8] sm:$0xff]
  %v2338 = vunpack.c.l.b16 %v2233
  %v2339 = vunpack.c.h.b16 %v2233
  %v2340 = vunpack.c.l.b16 %v2234
  %v2341 = vunpack.c.h.b16 %v2234
  %v2342 = vunpack.c.l.b16 %v2235
  %v2343 = vunpack.c.h.b16 %v2235
  %v2344 = vunpack.c.l.b16 %v2236
  %v2345 = vunpack.c.h.b16 %v2236
  %v2346 = vunpack.c.l.b16 %v2237
  %v2347 = vunpack.c.h.b16 %v2237
  %v2348 = vunpack.c.l.b16 %v2238
  %v2349 = vunpack.c.h.b16 %v2238
  %v2350 = vunpack.c.l.b16 %v2239
  %v2351 = vunpack.c.h.b16 %v2239
  %v2352 = vunpack.c.l.b16 %v2240
  %v2353 = vunpack.c.h.b16 %v2240
  %v2354 = vunpack.c.l.b16 %v2241
  %v2355 = vunpack.c.h.b16 %v2241
  %v2356 = vunpack.c.l.b16 %v2242
  %v2357 = vunpack.c.h.b16 %v2242
  %v2358 = vunpack.c.l.b16 %v2243
  %v2359 = vunpack.c.h.b16 %v2243
  %v2360 = vunpack.c.l.b16 %v2244
  %v2361 = vunpack.c.h.b16 %v2244
  %v2362 = vunpack.c.l.b16 %v2245
  %v2363 = vunpack.c.h.b16 %v2245
  %v2364 = vunpack.c.l.b16 %v2246
  %v2365 = vunpack.c.h.b16 %v2246
  %v2366 = vunpack.c.l.b16 %v2247
  %v2367 = vunpack.c.h.b16 %v2247
  %v2368 = vunpack.c.l.b16 %v2248
  %v2369 = vunpack.c.h.b16 %v2248
  %v2370 = vunpack.c.l.b16 %v2249
  %v2371 = vunpack.c.h.b16 %v2249
  %v2372 = vunpack.c.l.b16 %v2250
  %v2373 = vunpack.c.h.b16 %v2250
  %v2374 = vunpack.c.l.b16 %v2251
  %v2375 = vunpack.c.h.b16 %v2251
  %v2376 = vunpack.c.l.b16 %v2252
  %v2377 = vunpack.c.h.b16 %v2252
  %v2378 = vunpack.c.l.b16 %v2253
  %v2379 = vunpack.c.h.b16 %v2253
  %v2380 = vunpack.c.l.b16 %v2254
  %v2381 = vunpack.c.h.b16 %v2254
  %v2382 = vunpack.c.l.b16 %v2255
  %v2383 = vunpack.c.h.b16 %v2255
  %v2384 = vunpack.c.l.b16 %v2256
  %v2385 = vunpack.c.h.b16 %v2256
  %v2386 = vunpack.c.l.b16 %v2257
  %v2387 = vunpack.c.h.b16 %v2257
  %v2388 = vunpack.c.l.b16 %v2258
  %v2389 = vunpack.c.h.b16 %v2258
  %v2390 = vunpack.c.l.b16 %v2259
  %v2391 = vunpack.c.h.b16 %v2259
  %v2392 = vunpack.c.l.b16 %v2260
  %v2393 = vunpack.c.h.b16 %v2260
  %v2394 = vunpack.c.l.b16 %v2261
  %v2395 = vunpack.c.h.b16 %v2261
  %v2396 = vunpack.c.l.b16 %v2262
  %v2397 = vunpack.c.h.b16 %v2262
  %v2398 = vunpack.c.l.b16 %v2263
  %v2399 = vunpack.c.h.b16 %v2263
  %v2400 = vunpack.c.l.b16 %v2264
  %v2401 = vunpack.c.h.b16 %v2264
  %v2402 = vpack.c.b16 %v2340, %v2338
  %v2403 = vpack.c.b16 %v2341, %v2339
  %v2404 = vpack.c.b16 %v2344, %v2342
  %v2405 = vpack.c.b16 %v2345, %v2343
  %v2406 = vpack.c.b16 %v2348, %v2346
  %v2407 = vpack.c.b16 %v2349, %v2347
  %v2408 = vpack.c.b16 %v2352, %v2350
  %v2409 = vpack.c.b16 %v2353, %v2351
  %v2410 = vpack.c.b16 %v2356, %v2354
  %v2411 = vpack.c.b16 %v2357, %v2355
  %v2412 = vpack.c.b16 %v2360, %v2358
  %v2413 = vpack.c.b16 %v2361, %v2359
  %v2414 = vpack.c.b16 %v2364, %v2362
  %v2415 = vpack.c.b16 %v2365, %v2363
  %v2416 = vpack.c.b16 %v2368, %v2366
  %v2417 = vpack.c.b16 %v2369, %v2367
  %v2418 = vpack.c.b16 %v2372, %v2370
  %v2419 = vpack.c.b16 %v2373, %v2371
  %v2420 = vpack.c.b16 %v2376, %v2374
  %v2421 = vpack.c.b16 %v2377, %v2375
  %v2422 = vpack.c.b16 %v2380, %v2378
  %v2423 = vpack.c.b16 %v2381, %v2379
  %v2424 = vpack.c.b16 %v2384, %v2382
  %v2425 = vpack.c.b16 %v2385, %v2383
  %v2426 = vpack.c.b16 %v2388, %v2386
  %v2427 = vpack.c.b16 %v2389, %v2387
  %v2428 = vpack.c.b16 %v2392, %v2390
  %v2429 = vpack.c.b16 %v2393, %v2391
  %v2430 = vpack.c.b16 %v2396, %v2394
  %v2431 = vpack.c.b16 %v2397, %v2395
  %v2432 = vpack.c.b16 %v2400, %v2398
  %v2433 = vpack.c.b16 %v2401, %v2399
  %2466 = vmatprep.subr.bf16.mxu0 %v2403
  %2467 = vmatpush1.bf16.msra.mxu0 %v2402
  %2468 = vmatprep.subr.bf16.mxu0 %v2405
  %2469 = vmatpush1.bf16.msra.mxu0 %v2404
  %2470 = vmatprep.subr.bf16.mxu0 %v2407
  %2471 = vmatpush1.bf16.msra.mxu0 %v2406
  %2472 = vmatprep.subr.bf16.mxu0 %v2409
  %2473 = vmatpush1.bf16.msra.mxu0 %v2408
  %2474 = vmatprep.subr.bf16.mxu0 %v2411
  %2475 = vmatpush1.bf16.msra.mxu0 %v2410
  %2476 = vmatprep.subr.bf16.mxu0 %v2413
  %2477 = vmatpush1.bf16.msra.mxu0 %v2412
  %2478 = vmatprep.subr.bf16.mxu0 %v2415
  %2479 = vmatpush1.bf16.msra.mxu0 %v2414
  %2480 = vmatprep.subr.bf16.mxu0 %v2417
  %2481 = vmatpush1.bf16.msra.mxu0 %v2416
  %2482 = vmatprep.subr.bf16.mxu0 %v2419
  %2483 = vmatpush1.bf16.msra.mxu0 %v2418
  %2484 = vmatprep.subr.bf16.mxu0 %v2421
  %2485 = vmatpush1.bf16.msra.mxu0 %v2420
  %2486 = vmatprep.subr.bf16.mxu0 %v2423
  %2487 = vmatpush1.bf16.msra.mxu0 %v2422
  %2488 = vmatprep.subr.bf16.mxu0 %v2425
  %2489 = vmatpush1.bf16.msra.mxu0 %v2424
  %2490 = vmatprep.subr.bf16.mxu0 %v2427
  %2491 = vmatpush1.bf16.msra.mxu0 %v2426
  %2492 = vmatprep.subr.bf16.mxu0 %v2429
  %2493 = vmatpush1.bf16.msra.mxu0 %v2428
  %2494 = vmatprep.subr.bf16.mxu0 %v2431
  %2495 = vmatpush1.bf16.msra.mxu0 %v2430
  %2496 = vmatprep.subr.bf16.mxu0 %v2433
  %2497 = vmatpush1.bf16.msra.mxu0 %v2432
  %2498 = vmatprep.mubr.bf16.mxu0 %v2199
  %2499 = vmatmul.mubr.bf16.gmra.mrb[0].mxu0 %v2198
  %v2500 = vpop.f32.mrb[0].mxu0
  %v2501 = vadd.f32 %v2298, %v2500
  %v2502 = vpop.f32.mrb[0].mxu0
  %v2503 = vadd.f32 %v2299, %v2502
  %v2504 = vpop.f32.mrb[0].mxu0
  %v2505 = vpop.f32.mrb[0].mxu0
  %2506 = vdwg.mxu0
  %v2507 = vlaneseq
  %v2508 = vshrl.u32 %v2507, 7
  %v2509 = vsub.s32 0, %v2508
  %v2510 = vrot.slane %v2501, %v2509
  %v2511 = vlaneseq
  %v2512 = vshrl.u32 %v2511, 7
  %v2513 = vsub.s32 0, %v2512
  %v2514 = vrot.slane %v2503, %v2513
  %v2547 = vunpack.c.l.b16 %v2200
  %v2548 = vunpack.c.h.b16 %v2200
  %v2549 = vunpack.c.l.b16 %v2201
  %v2550 = vunpack.c.h.b16 %v2201
  %v2551 = vunpack.c.l.b16 %v2202
  %v2552 = vunpack.c.h.b16 %v2202
  %v2553 = vunpack.c.l.b16 %v2203
  %v2554 = vunpack.c.h.b16 %v2203
  %v2555 = vunpack.c.l.b16 %v2204
  %v2556 = vunpack.c.h.b16 %v2204
  %v2557 = vunpack.c.l.b16 %v2205
  %v2558 = vunpack.c.h.b16 %v2205
  %v2559 = vunpack.c.l.b16 %v2206
  %v2560 = vunpack.c.h.b16 %v2206
  %v2561 = vunpack.c.l.b16 %v2207
  %v2562 = vunpack.c.h.b16 %v2207
  %v2563 = vunpack.c.l.b16 %v2208
  %v2564 = vunpack.c.h.b16 %v2208
  %v2565 = vunpack.c.l.b16 %v2209
  %v2566 = vunpack.c.h.b16 %v2209
  %v2567 = vunpack.c.l.b16 %v2210
  %v2568 = vunpack.c.h.b16 %v2210
  %v2569 = vunpack.c.l.b16 %v2211
  %v2570 = vunpack.c.h.b16 %v2211
  %v2571 = vunpack.c.l.b16 %v2212
  %v2572 = vunpack.c.h.b16 %v2212
  %v2573 = vunpack.c.l.b16 %v2213
  %v2574 = vunpack.c.h.b16 %v2213
  %v2575 = vunpack.c.l.b16 %v2214
  %v2576 = vunpack.c.h.b16 %v2214
  %v2577 = vunpack.c.l.b16 %v2215
  %v2578 = vunpack.c.h.b16 %v2215
  %v2579 = vunpack.c.l.b16 %v2216
  %v2580 = vunpack.c.h.b16 %v2216
  %v2581 = vunpack.c.l.b16 %v2217
  %v2582 = vunpack.c.h.b16 %v2217
  %v2583 = vunpack.c.l.b16 %v2218
  %v2584 = vunpack.c.h.b16 %v2218
  %v2585 = vunpack.c.l.b16 %v2219
  %v2586 = vunpack.c.h.b16 %v2219
  %v2587 = vunpack.c.l.b16 %v2220
  %v2588 = vunpack.c.h.b16 %v2220
  %v2589 = vunpack.c.l.b16 %v2221
  %v2590 = vunpack.c.h.b16 %v2221
  %v2591 = vunpack.c.l.b16 %v2222
  %v2592 = vunpack.c.h.b16 %v2222
  %v2593 = vunpack.c.l.b16 %v2223
  %v2594 = vunpack.c.h.b16 %v2223
  %v2595 = vunpack.c.l.b16 %v2224
  %v2596 = vunpack.c.h.b16 %v2224
  %v2597 = vunpack.c.l.b16 %v2225
  %v2598 = vunpack.c.h.b16 %v2225
  %v2599 = vunpack.c.l.b16 %v2226
  %v2600 = vunpack.c.h.b16 %v2226
  %v2601 = vunpack.c.l.b16 %v2227
  %v2602 = vunpack.c.h.b16 %v2227
  %v2603 = vunpack.c.l.b16 %v2228
  %v2604 = vunpack.c.h.b16 %v2228
  %v2605 = vunpack.c.l.b16 %v2229
  %v2606 = vunpack.c.h.b16 %v2229
  %v2607 = vunpack.c.l.b16 %v2230
  %v2608 = vunpack.c.h.b16 %v2230
  %v2609 = vunpack.c.l.b16 %v2231
  %v2610 = vunpack.c.h.b16 %v2231
  %v2611 = vpack.c.b16 %v2549, %v2547
  %v2612 = vpack.c.b16 %v2550, %v2548
  %v2613 = vpack.c.b16 %v2553, %v2551
  %v2614 = vpack.c.b16 %v2554, %v2552
  %v2615 = vpack.c.b16 %v2557, %v2555
  %v2616 = vpack.c.b16 %v2558, %v2556
  %v2617 = vpack.c.b16 %v2561, %v2559
  %v2618 = vpack.c.b16 %v2562, %v2560
  %v2619 = vpack.c.b16 %v2565, %v2563
  %v2620 = vpack.c.b16 %v2566, %v2564
  %v2621 = vpack.c.b16 %v2569, %v2567
  %v2622 = vpack.c.b16 %v2570, %v2568
  %v2623 = vpack.c.b16 %v2573, %v2571
  %v2624 = vpack.c.b16 %v2574, %v2572
  %v2625 = vpack.c.b16 %v2577, %v2575
  %v2626 = vpack.c.b16 %v2578, %v2576
  %v2627 = vpack.c.b16 %v2581, %v2579
  %v2628 = vpack.c.b16 %v2582, %v2580
  %v2629 = vpack.c.b16 %v2585, %v2583
  %v2630 = vpack.c.b16 %v2586, %v2584
  %v2631 = vpack.c.b16 %v2589, %v2587
  %v2632 = vpack.c.b16 %v2590, %v2588
  %v2633 = vpack.c.b16 %v2593, %v2591
  %v2634 = vpack.c.b16 %v2594, %v2592
  %v2635 = vpack.c.b16 %v2597, %v2595
  %v2636 = vpack.c.b16 %v2598, %v2596
  %v2637 = vpack.c.b16 %v2601, %v2599
  %v2638 = vpack.c.b16 %v2602, %v2600
  %v2639 = vpack.c.b16 %v2605, %v2603
  %v2640 = vpack.c.b16 %v2606, %v2604
  %v2641 = vpack.c.b16 %v2609, %v2607
  %v2642 = vpack.c.b16 %v2610, %v2608
  %2675 = vmatprep.subr.bf16.mxu0 %v2612
  %2676 = vmatpush1.bf16.msra.mxu0 %v2611
  %2677 = vmatprep.subr.bf16.mxu0 %v2614
  %2678 = vmatpush1.bf16.msra.mxu0 %v2613
  %2679 = vmatprep.subr.bf16.mxu0 %v2616
  %2680 = vmatpush1.bf16.msra.mxu0 %v2615
  %2681 = vmatprep.subr.bf16.mxu0 %v2618
  %2682 = vmatpush1.bf16.msra.mxu0 %v2617
  %2683 = vmatprep.subr.bf16.mxu0 %v2620
  %2684 = vmatpush1.bf16.msra.mxu0 %v2619
  %2685 = vmatprep.subr.bf16.mxu0 %v2622
  %2686 = vmatpush1.bf16.msra.mxu0 %v2621
  %2687 = vmatprep.subr.bf16.mxu0 %v2624
  %2688 = vmatpush1.bf16.msra.mxu0 %v2623
  %2689 = vmatprep.subr.bf16.mxu0 %v2626
  %2690 = vmatpush1.bf16.msra.mxu0 %v2625
  %2691 = vmatprep.subr.bf16.mxu0 %v2628
  %2692 = vmatpush1.bf16.msra.mxu0 %v2627
  %2693 = vmatprep.subr.bf16.mxu0 %v2630
  %2694 = vmatpush1.bf16.msra.mxu0 %v2629
  %2695 = vmatprep.subr.bf16.mxu0 %v2632
  %2696 = vmatpush1.bf16.msra.mxu0 %v2631
  %2697 = vmatprep.subr.bf16.mxu0 %v2634
  %2698 = vmatpush1.bf16.msra.mxu0 %v2633
  %2699 = vmatprep.subr.bf16.mxu0 %v2636
  %2700 = vmatpush1.bf16.msra.mxu0 %v2635
  %2701 = vmatprep.subr.bf16.mxu0 %v2638
  %2702 = vmatpush1.bf16.msra.mxu0 %v2637
  %2703 = vmatprep.subr.bf16.mxu0 %v2640
  %2704 = vmatpush1.bf16.msra.mxu0 %v2639
  %2705 = vmatprep.subr.bf16.mxu0 %v2642
  %2706 = vmatpush1.bf16.msra.mxu0 %v2641
  %2707 = vmatprep.mubr.bf16.mxu0 %v2004
  %2708 = vmatmul.mubr.bf16.gmra.mrb[0].mxu0 %v1879
  %v2709 = vpop.f32.mrb[0].mxu0
  %v2710 = vadd.f32 %v2510, %v2709
  %v2711 = vpop.f32.mrb[0].mxu0
  %v2712 = vadd.f32 %v2514, %v2711
  %v2713 = vpop.f32.mrb[0].mxu0
  %v2714 = vadd.f32 %v2510, %v2713
  %v2715 = vpop.f32.mrb[0].mxu0
  %v2716 = vadd.f32 %v2514, %v2715
  %2717 = vmatprep.mubr.bf16.mxu0 %v2005
  %2718 = vmatmul.mubr.bf16.gmra.mrb[0].mxu0 %v1880
  %v2719 = vpop.f32.mrb[0].mxu0
  %v2720 = vadd.f32 %v2510, %v2719
  %v2721 = vpop.f32.mrb[0].mxu0
  %v2722 = vadd.f32 %v2514, %v2721
  %v2723 = vpop.f32.mrb[0].mxu0
  %v2724 = vadd.f32 %v2510, %v2723
  %v2725 = vpop.f32.mrb[0].mxu0
  %v2726 = vadd.f32 %v2514, %v2725
  %2727 = vmatprep.mubr.bf16.mxu0 %v2006
  %2728 = vmatmul.mubr.bf16.gmra.mrb[0].mxu0 %v1881
  %v2729 = vpop.f32.mrb[0].mxu0
  %v2730 = vadd.f32 %v2510, %v2729
  %v2731 = vpop.f32.mrb[0].mxu0
  %v2732 = vadd.f32 %v2514, %v2731
  %v2733 = vpop.f32.mrb[0].mxu0
  %v2734 = vadd.f32 %v2510, %v2733
  %v2735 = vpop.f32.mrb[0].mxu0
  %v2736 = vadd.f32 %v2514, %v2735
  %2737 = vmatprep.mubr.bf16.mxu0 %v2007
  %2738 = vmatmul.mubr.bf16.gmra.mrb[0].mxu0 %v1882
  %v2739 = vpop.f32.mrb[0].mxu0
  %v2740 = vadd.f32 %v2510, %v2739
  %v2741 = vpop.f32.mrb[0].mxu0
  %v2742 = vadd.f32 %v2514, %v2741
  %v2743 = vpop.f32.mrb[0].mxu0
  %v2744 = vadd.f32 %v2510, %v2743
  %v2745 = vpop.f32.mrb[0].mxu0
  %v2746 = vadd.f32 %v2514, %v2745
  %2747 = vmatprep.mubr.bf16.mxu0 %v2008
  %2748 = vmatmul.mubr.bf16.gmra.mrb[0].mxu0 %v1883
  %v2749 = vpop.f32.mrb[0].mxu0
  %v2750 = vadd.f32 %v2510, %v2749
  %v2751 = vpop.f32.mrb[0].mxu0
  %v2752 = vadd.f32 %v2514, %v2751
  %v2753 = vpop.f32.mrb[0].mxu0
  %v2754 = vadd.f32 %v2510, %v2753
  %v2755 = vpop.f32.mrb[0].mxu0
  %v2756 = vadd.f32 %v2514, %v2755
  %2757 = vmatprep.mubr.bf16.mxu0 %v2009
  %2758 = vmatmul.mubr.bf16.gmra.mrb[0].mxu0 %v1884
  %v2759 = vpop.f32.mrb[0].mxu0
  %v2760 = vadd.f32 %v2510, %v2759
  %v2761 = vpop.f32.mrb[0].mxu0
  %v2762 = vadd.f32 %v2514, %v2761
  %v2763 = vpop.f32.mrb[0].mxu0
  %v2764 = vadd.f32 %v2510, %v2763
  %v2765 = vpop.f32.mrb[0].mxu0
  %v2766 = vadd.f32 %v2514, %v2765
  %2767 = vmatprep.mubr.bf16.mxu0 %v2010
  %2768 = vmatmul.mubr.bf16.gmra.mrb[0].mxu0 %v1885
  %v2769 = vpop.f32.mrb[0].mxu0
  %v2770 = vadd.f32 %v2510, %v2769
  %v2771 = vpop.f32.mrb[0].mxu0
  %v2772 = vadd.f32 %v2514, %v2771
  %v2773 = vpop.f32.mrb[0].mxu0
  %v2774 = vadd.f32 %v2510, %v2773
  %v2775 = vpop.f32.mrb[0].mxu0
  %v2776 = vadd.f32 %v2514, %v2775
  %2777 = vmatprep.mubr.bf16.mxu0 %v2011
  %2778 = vmatmul.mubr.bf16.gmra.mrb[0].mxu0 %v1886
  %v2779 = vpop.f32.mrb[0].mxu0
  %v2780 = vadd.f32 %v2510, %v2779
  %v2781 = vpop.f32.mrb[0].mxu0
  %v2782 = vadd.f32 %v2514, %v2781
  %v2783 = vpop.f32.mrb[0].mxu0
  %v2784 = vadd.f32 %v2510, %v2783
  %v2785 = vpop.f32.mrb[0].mxu0
  %v2786 = vadd.f32 %v2514, %v2785
  %2787 = vdwg.mxu0
  %v2788 = vmax.f32 %v2710, 0.0
  %v2789 = vmax.f32 %v2712, 0.0
  %v2790 = vmax.f32 %v2714, 0.0
  %v2791 = vmax.f32 %v2716, 0.0
  %v2792 = vmax.f32 %v2720, 0.0
  %v2793 = vmax.f32 %v2722, 0.0
  %v2794 = vmax.f32 %v2724, 0.0
  %v2795 = vmax.f32 %v2726, 0.0
  %v2796 = vmax.f32 %v2730, 0.0
  %v2797 = vmax.f32 %v2732, 0.0
  %v2798 = vmax.f32 %v2734, 0.0
  %v2799 = vmax.f32 %v2736, 0.0
  %v2800 = vmax.f32 %v2740, 0.0
  %v2801 = vmax.f32 %v2742, 0.0
  %v2802 = vmax.f32 %v2744, 0.0
  %v2803 = vmax.f32 %v2746, 0.0
  %v2804 = vmax.f32 %v2750, 0.0
  %v2805 = vmax.f32 %v2752, 0.0
  %v2806 = vmax.f32 %v2754, 0.0
  %v2807 = vmax.f32 %v2756, 0.0
  %v2808 = vmax.f32 %v2760, 0.0
  %v2809 = vmax.f32 %v2762, 0.0
  %v2810 = vmax.f32 %v2764, 0.0
  %v2811 = vmax.f32 %v2766, 0.0
  %v2812 = vmax.f32 %v2770, 0.0
  %v2813 = vmax.f32 %v2772, 0.0
  %v2814 = vmax.f32 %v2774, 0.0
  %v2815 = vmax.f32 %v2776, 0.0
  %v2816 = vmax.f32 %v2780, 0.0
  %v2817 = vmax.f32 %v2782, 0.0
  %v2818 = vmax.f32 %v2784, 0.0
  %v2819 = vmax.f32 %v2786, 0.0
  %2820 = vmatprep.subr.mxu0 %v2789
  %2821 = vmatpush1.xpose.msra.mxu0 %v2788
  %2822 = vmatprep.subr.mxu0 %v2791
  %2823 = vmatpush1.xpose.msra.mxu0 %v2790
  %2824 = vmatprep.subr.mxu0 %v2793
  %2825 = vmatpush1.xpose.msra.mxu0 %v2792
  %2826 = vmatprep.subr.mxu0 %v2795
  %2827 = vmatpush1.xpose.msra.mxu0 %v2794
  %2828 = vmatprep.subr.mxu0 %v2797
  %2829 = vmatpush1.xpose.msra.mxu0 %v2796
  %2830 = vmatprep.subr.mxu0 %v2799
  %2831 = vmatpush1.xpose.msra.mxu0 %v2798
  %2832 = vmatprep.subr.mxu0 %v2801
  %2833 = vmatpush1.xpose.msra.mxu0 %v2800
  %2834 = vmatprep.subr.mxu0 %v2803
  %2835 = vmatpush1.xpose.msra.mxu0 %v2802
  %2836 = vmatprep.subr.mxu0 %v2805
  %2837 = vmatpush1.xpose.msra.mxu0 %v2804
  %2838 = vmatprep.subr.mxu0 %v2807
  %2839 = vmatpush1.xpose.msra.mxu0 %v2806
  %2840 = vmatprep.subr.mxu0 %v2809
  %2841 = vmatpush1.xpose.msra.mxu0 %v2808
  %2842 = vmatprep.subr.mxu0 %v2811
  %2843 = vmatpush1.xpose.msra.mxu0 %v2810
  %2844 = vmatprep.subr.mxu0 %v2813
  %2845 = vmatpush1.xpose.msra.mxu0 %v2812
  %2846 = vmatprep.subr.mxu0 %v2815
  %2847 = vmatpush1.xpose.msra.mxu0 %v2814
  %2848 = vmatprep.subr.mxu0 %v2817
  %2849 = vmatpush1.xpose.msra.mxu0 %v2816
  %2850 = vmatprep.subr.mxu0 %v2819
  %2851 = vmatpush1.xpose.msra.mxu0 %v2818
  %2852 = vmatprep.subr.mxu0 0.0
  %2853 = vmatpush1.xpose.msra.mxu0 0.0
  %2854 = vmatprep.subr.mxu0 0.0
  %2855 = vmatpush1.xpose.msra.mxu0 0.0
  %2856 = vmatprep.subr.mxu0 0.0
  %2857 = vmatpush1.xpose.msra.mxu0 0.0
  %2858 = vmatprep.subr.mxu0 0.0
  %2859 = vmatpush1.xpose.msra.mxu0 0.0
  %2860 = vmatprep.subr.mxu0 0.0
  %2861 = vmatpush1.xpose.msra.mxu0 0.0
  %2862 = vmatprep.subr.mxu0 0.0
  %2863 = vmatpush1.xpose.msra.mxu0 0.0
  %2864 = vmatprep.subr.mxu0 0.0
  %2865 = vmatpush1.xpose.msra.mxu0 0.0
  %2866 = vmatprep.subr.mxu0 0.0
  %2867 = vmatpush1.xpose.msra.mxu0 0.0
  %2868 = vmatprep.subr.mxu0 0.0
  %2869 = vmatpush1.xpose.msra.mxu0 0.0
  %2870 = vmatprep.subr.mxu0 0.0
  %2871 = vmatpush1.xpose.msra.mxu0 0.0
  %2872 = vmatprep.subr.mxu0 0.0
  %2873 = vmatpush1.xpose.msra.mxu0 0.0
  %2874 = vmatprep.subr.mxu0 0.0
  %2875 = vmatpush1.xpose.msra.mxu0 0.0
  %2876 = vmatprep.subr.mxu0 0.0
  %2877 = vmatpush1.xpose.msra.mxu0 0.0
  %2878 = vmatprep.subr.mxu0 0.0
  %2879 = vmatpush1.xpose.msra.mxu0 0.0
  %2880 = vmatprep.subr.mxu0 0.0
  %2881 = vmatpush1.xpose.msra.mxu0 0.0
  %2882 = vmatprep.subr.mxu0 0.0
  %2883 = vmatpush1.xpose.msra.mxu0 0.0
  %2884 = vmatprep.mubr.f32.mxu0 %v2302
  %2885 = vmatmul.mubr.f32.gmra.mrb[0].mxu0 %v2301
  %v2886 = vpop.f32.mrb[0].mxu0
  %v2887 = vadd.f32 0.0, %v2886
  %v2888 = vpop.f32.mrb[0].mxu0
  %2889 = vdwg.mxu0
  %vm2890 = vcmp.gt.f32.partialorder %v97, 0.5
  %v2891 = vsel %vm2890, %v2887, -1e+09
  %2892 = vmax.xlane.f32.xlu0 %v2891
  %v2893 = vpop.xlane.xlu0 %2892
  %v2894 = vsub.f32 %v2891, %v2893
  %v2895 = vmul.f32 %v2894, 1.442695
  %v2896 = vpow.pop %v2895
  %v2897 = vsel %vm2890, %v2896, 0.0
  %2898 = vadd.xlane.f32.xlu0 %v2897
  %v2899 = vpop.xlane.xlu0 %2898
  %v2900 = vmax.f32 %v2899, 1e-30
  %v2901 = vlog2.pop %v2900
  %v2902 = vmul.f32 %v2901, 0.6931472
  %v2903 = vsub.f32 %v2894, %v2902
  %v2904 = vsel %vm2890, %v2903, -1e+09
  %v2905 = vrcp.pop %v2900
  %v2906 = vmul.f32 %v2897, %v2905
  %v2907 = vmul.f32 %v2906, %v2904
  %v2908 = vsel %vm2890, %v2907, 0.0
  %2909 = vadd.xlane.f32.xlu0 %v2908
  %v2910 = vpop.xlane.xlu0 %2909
  %v2911 = vsub.f32 0.0, %v2910
  %v2944 = vunpack.c.l.b16 %v2266
  %v2945 = vunpack.c.h.b16 %v2266
  %v2946 = vunpack.c.l.b16 %v2267
  %v2947 = vunpack.c.h.b16 %v2267
  %v2948 = vunpack.c.l.b16 %v2268
  %v2949 = vunpack.c.h.b16 %v2268
  %v2950 = vunpack.c.l.b16 %v2269
  %v2951 = vunpack.c.h.b16 %v2269
  %v2952 = vunpack.c.l.b16 %v2270
  %v2953 = vunpack.c.h.b16 %v2270
  %v2954 = vunpack.c.l.b16 %v2271
  %v2955 = vunpack.c.h.b16 %v2271
  %v2956 = vunpack.c.l.b16 %v2272
  %v2957 = vunpack.c.h.b16 %v2272
  %v2958 = vunpack.c.l.b16 %v2273
  %v2959 = vunpack.c.h.b16 %v2273
  %v2960 = vunpack.c.l.b16 %v2274
  %v2961 = vunpack.c.h.b16 %v2274
  %v2962 = vunpack.c.l.b16 %v2275
  %v2963 = vunpack.c.h.b16 %v2275
  %v2964 = vunpack.c.l.b16 %v2276
  %v2965 = vunpack.c.h.b16 %v2276
  %v2966 = vunpack.c.l.b16 %v2277
  %v2967 = vunpack.c.h.b16 %v2277
  %v2968 = vunpack.c.l.b16 %v2278
  %v2969 = vunpack.c.h.b16 %v2278
  %v2970 = vunpack.c.l.b16 %v2279
  %v2971 = vunpack.c.h.b16 %v2279
  %v2972 = vunpack.c.l.b16 %v2280
  %v2973 = vunpack.c.h.b16 %v2280
  %v2974 = vunpack.c.l.b16 %v2281
  %v2975 = vunpack.c.h.b16 %v2281
  %v2976 = vunpack.c.l.b16 %v2282
  %v2977 = vunpack.c.h.b16 %v2282
  %v2978 = vunpack.c.l.b16 %v2283
  %v2979 = vunpack.c.h.b16 %v2283
  %v2980 = vunpack.c.l.b16 %v2284
  %v2981 = vunpack.c.h.b16 %v2284
  %v2982 = vunpack.c.l.b16 %v2285
  %v2983 = vunpack.c.h.b16 %v2285
  %v2984 = vunpack.c.l.b16 %v2286
  %v2985 = vunpack.c.h.b16 %v2286
  %v2986 = vunpack.c.l.b16 %v2287
  %v2987 = vunpack.c.h.b16 %v2287
  %v2988 = vunpack.c.l.b16 %v2288
  %v2989 = vunpack.c.h.b16 %v2288
  %v2990 = vunpack.c.l.b16 %v2289
  %v2991 = vunpack.c.h.b16 %v2289
  %v2992 = vunpack.c.l.b16 %v2290
  %v2993 = vunpack.c.h.b16 %v2290
  %v2994 = vunpack.c.l.b16 %v2291
  %v2995 = vunpack.c.h.b16 %v2291
  %v2996 = vunpack.c.l.b16 %v2292
  %v2997 = vunpack.c.h.b16 %v2292
  %v2998 = vunpack.c.l.b16 %v2293
  %v2999 = vunpack.c.h.b16 %v2293
  %v3000 = vunpack.c.l.b16 %v2294
  %v3001 = vunpack.c.h.b16 %v2294
  %v3002 = vunpack.c.l.b16 %v2295
  %v3003 = vunpack.c.h.b16 %v2295
  %v3004 = vunpack.c.l.b16 %v2296
  %v3005 = vunpack.c.h.b16 %v2296
  %v3006 = vunpack.c.l.b16 %v2297
  %v3007 = vunpack.c.h.b16 %v2297
  %v3008 = vpack.c.b16 %v2946, %v2944
  %v3009 = vpack.c.b16 %v2947, %v2945
  %v3010 = vpack.c.b16 %v2950, %v2948
  %v3011 = vpack.c.b16 %v2951, %v2949
  %v3012 = vpack.c.b16 %v2954, %v2952
  %v3013 = vpack.c.b16 %v2955, %v2953
  %v3014 = vpack.c.b16 %v2958, %v2956
  %v3015 = vpack.c.b16 %v2959, %v2957
  %v3016 = vpack.c.b16 %v2962, %v2960
  %v3017 = vpack.c.b16 %v2963, %v2961
  %v3018 = vpack.c.b16 %v2966, %v2964
  %v3019 = vpack.c.b16 %v2967, %v2965
  %v3020 = vpack.c.b16 %v2970, %v2968
  %v3021 = vpack.c.b16 %v2971, %v2969
  %v3022 = vpack.c.b16 %v2974, %v2972
  %v3023 = vpack.c.b16 %v2975, %v2973
  %v3024 = vpack.c.b16 %v2978, %v2976
  %v3025 = vpack.c.b16 %v2979, %v2977
  %v3026 = vpack.c.b16 %v2982, %v2980
  %v3027 = vpack.c.b16 %v2983, %v2981
  %v3028 = vpack.c.b16 %v2986, %v2984
  %v3029 = vpack.c.b16 %v2987, %v2985
  %v3030 = vpack.c.b16 %v2990, %v2988
  %v3031 = vpack.c.b16 %v2991, %v2989
  %v3032 = vpack.c.b16 %v2994, %v2992
  %v3033 = vpack.c.b16 %v2995, %v2993
  %v3034 = vpack.c.b16 %v2998, %v2996
  %v3035 = vpack.c.b16 %v2999, %v2997
  %v3036 = vpack.c.b16 %v3002, %v3000
  %v3037 = vpack.c.b16 %v3003, %v3001
  %v3038 = vpack.c.b16 %v3006, %v3004
  %v3039 = vpack.c.b16 %v3007, %v3005
  %v3074 = vrot.slane %v2298, 1
  %v3075 = vrot.slane %v2299, 1
  %3078 = vmatprep.subr.bf16.mxu0 %v3009
  %3079 = vmatpush1.bf16.msra.mxu0 %v3008
  %3080 = vmatprep.subr.bf16.mxu0 %v3011
  %3081 = vmatpush1.bf16.msra.mxu0 %v3010
  %3082 = vmatprep.subr.bf16.mxu0 %v3013
  %3083 = vmatpush1.bf16.msra.mxu0 %v3012
  %3084 = vmatprep.subr.bf16.mxu0 %v3015
  %3085 = vmatpush1.bf16.msra.mxu0 %v3014
  %3086 = vmatprep.subr.bf16.mxu0 %v3017
  %3087 = vmatpush1.bf16.msra.mxu0 %v3016
  %3088 = vmatprep.subr.bf16.mxu0 %v3019
  %3089 = vmatpush1.bf16.msra.mxu0 %v3018
  %3090 = vmatprep.subr.bf16.mxu0 %v3021
  %3091 = vmatpush1.bf16.msra.mxu0 %v3020
  %3092 = vmatprep.subr.bf16.mxu0 %v3023
  %3093 = vmatpush1.bf16.msra.mxu0 %v3022
  %3094 = vmatprep.subr.bf16.mxu0 %v3025
  %3095 = vmatpush1.bf16.msra.mxu0 %v3024
  %3096 = vmatprep.subr.bf16.mxu0 %v3027
  %3097 = vmatpush1.bf16.msra.mxu0 %v3026
  %3098 = vmatprep.subr.bf16.mxu0 %v3029
  %3099 = vmatpush1.bf16.msra.mxu0 %v3028
  %3100 = vmatprep.subr.bf16.mxu0 %v3031
  %3101 = vmatpush1.bf16.msra.mxu0 %v3030
  %3102 = vmatprep.subr.bf16.mxu0 %v3033
  %3103 = vmatpush1.bf16.msra.mxu0 %v3032
  %3104 = vmatprep.subr.bf16.mxu0 %v3035
  %3105 = vmatpush1.bf16.msra.mxu0 %v3034
  %3106 = vmatprep.subr.bf16.mxu0 %v3037
  %3107 = vmatpush1.bf16.msra.mxu0 %v3036
  %3108 = vmatprep.subr.bf16.mxu0 %v3039
  %3109 = vmatpush1.bf16.msra.mxu0 %v3038
  %3110 = vmatprep.mubr.bf16.mxu0 %v2199
  %3111 = vmatmul.mubr.bf16.gmra.mrb[0].mxu0 %v2198
  %v3112 = vpop.f32.mrb[0].mxu0
  %v3113 = vadd.f32 %v3074, %v3112
  %v3114 = vpop.f32.mrb[0].mxu0
  %v3115 = vadd.f32 %v3075, %v3114
  %v3116 = vpop.f32.mrb[0].mxu0
  %v3117 = vpop.f32.mrb[0].mxu0
  %3118 = vdwg.mxu0
  %v3119 = vmax.f32 %v3113, 0.0
  %v3120 = vmax.f32 %v3115, 0.0
  %v3121 = vlaneseq
  %v3122 = vshrl.u32 %v3121, 7
  %v3123 = vsub.s32 0, %v3122
  %v3124 = vrot.slane %v3119, %v3123
  %v3125 = vlaneseq
  %v3126 = vshrl.u32 %v3125, 7
  %v3127 = vsub.s32 0, %v3126
  %v3128 = vrot.slane %v3120, %v3127
  %v3129 = vmul.f32 %v3124, %v2304
  %v3130 = vmul.f32 %v3128, %v2305
  %v3131 = vadd.f32 %v3129, %v3130
  %3132 = vadd.xlane.f32.xlu0 %v3131
  %v3133 = vpop.xlane.xlu0 %3132
  %v3134 = vlaneseq
  %v3135 = vshrl.u32 %v3134, 7
  %v3136 = vsub.s32 2, %v3135
  %v3137 = vrot.slane %v2298, %v3136
  %v3138 = vadd.f32 %v3133, %v3137
  %3140 = vset.pattern.permute.xlu0 0
  %3141 = vperm.xlu0 %3140, %v3138
  %v3142 = vpop.permute.xlu0 %3141
  %3144 = vst [vmem:[%s9] sm:$0xff] %v2904
  %3145 = vst [vmem:[%s9 + $0x8] sm:$0xff] %v2911
  %3146 = vst [vmem:[%s9 + $0x10] sm:$0xff] %v3142
  // Predicated region
  $region38: #{_forward_impl.1} parent=0 // pred_check
    _
  $region39: #{_forward_impl.1} parent=0 // pred_check_branch
    %3148 = sbr.rel (0) target = $region41
  $region40: #{_forward_impl.1} parent=0 // pred_region
    _
  $region41: #{_forward_impl.1} parent=0 // pred_fallthru
    _
  // Predicated region
  $region42: #{_forward_impl.1} parent=0 // pred_check
    _
  $region43: #{_forward_impl.1} parent=0 // pred_check_branch
    %3150 = sbr.rel (0) target = $region45
  $region44: #{_forward_impl.1} parent=0 // pred_region
    _
  $region45: #{_forward_impl.1} parent=0 // pred_fallthru
    _

</llo_original>
